<compile_context>
chip_gen: v6e
topology: v6e:2x2x1
jax: 0.10.0
libtpu: 0.0.40
codegen_flags: <defaults>
</compile_context>

<pallas_src>
import numpy as np
import jax
import jax.numpy as jnp
from jax import lax
from jax.experimental import pallas as pl
from jax.experimental.pallas import tpu as pltpu

LEAKY_SLOPE = 0.2
LANE = 128


def _round_up(v, m):
    return ((v + m - 1) // m) * m


# ----------------------------------------------------------------------------
# Host-side packing (numpy, runs once at build time)
# ----------------------------------------------------------------------------
def _conv_block(w, b, c_pad):
    """HWIO (3,3,Cin,Cout) -> fused-tap weight block (c_pad, 9*c_pad), bias (c_pad,1)."""
    w = np.asarray(w, np.float32)
    b = np.asarray(b, np.float32)
    cin, cout = w.shape[2], w.shape[3]
    blk = np.zeros((c_pad, 9 * c_pad), np.float32)
    for kh in range(3):
        for kw in range(3):
            t = 3 * kh + kw
            blk[:cout, t * c_pad:t * c_pad + cin] = w[kh, kw].T
    bias = np.zeros((c_pad, 1), np.float32)
    bias[:cout, 0] = b
    return blk, bias


def pack_params(params, features, c_pad):
    """Pack all conv weights into one slab (NBLK, c_pad, 9*c_pad) + bias slab."""
    blocks_w, blocks_b = [], []

    def add(blk, bias):
        blocks_w.append(blk)
        blocks_b.append(bias)
        return len(blocks_w) - 1

    enc_idx = [[add(*_conv_block(w, b, c_pad)) for (w, b) in stage]
               for stage in params["enc"]]

    dec_idx = []
    dec_feat = features[::-1]
    for j, stage in enumerate(params["dec"]):
        lst = []
        for l, (w, b) in enumerate(stage):
            if j > 0 and l == 0:
                # conv(concat([up, skip])) == conv_up(up) + conv_skip(skip)
                c_up = dec_feat[j - 1]
                w = np.asarray(w, np.float32)
                i_up = add(*_conv_block(w[:, :, :c_up, :], b, c_pad))
                i_sk = add(*_conv_block(w[:, :, c_up:, :],
                                        np.zeros(w.shape[3], np.float32), c_pad))
                lst.append((i_up, i_sk))
            else:
                lst.append(add(*_conv_block(w, b, c_pad)))
        dec_idx.append(lst)

    head3_idx = add(*_conv_block(params["head0"][0], params["head0"][1], c_pad))

    w1, b1 = params["head1"]                         # (Cin, Cout), (Cout,)
    w1 = np.asarray(w1, np.float32)
    b1 = np.asarray(b1, np.float32)
    blk = np.zeros((c_pad, 9 * c_pad), np.float32)
    blk[:w1.shape[1], :w1.shape[0]] = w1.T
    bias = np.zeros((c_pad, 1), np.float32)
    bias[:b1.shape[0], 0] = b1
    head1_idx = add(blk, bias)

    wslab = np.stack(blocks_w, axis=0)               # (NBLK, c_pad, 9*c_pad)
    bslab = np.stack(blocks_b, axis=0)               # (NBLK, c_pad, 1)
    meta = dict(enc=enc_idx, dec=dec_idx, head3=head3_idx, head1=head1_idx)
    return wslab, bslab, meta


def _mask_slab(levels_hw, lane_w, nb, c_pad):
    """Per-level 0/1 boundary masks, pre-expanded to the (9*c_pad, L) stack layout."""
    cols = []
    for (hs, ws), ls in zip(levels_hw, lane_w):
        hw = hs * ws
        lane = np.arange(ls)
        pos = lane % hw
        hh, ww = pos // ws, pos % ws
        in_img = lane < nb * hw
        m = np.zeros((9 * c_pad, ls), np.float32)
        t = 0
        for dh in (-1, 0, 1):
            for dw in (-1, 0, 1):
                ok = (in_img & (hh + dh >= 0) & (hh + dh < hs)
                      & (ww + dw >= 0) & (ww + dw < ws))
                m[t * c_pad:(t + 1) * c_pad, :] = ok.astype(np.float32)[None, :]
                t += 1
        cols.append(m)
    return np.concatenate(cols, axis=1)


def _pool_matrix(hs, ws, ls_src, ls_dst, nb):
    """0/1 selection: flattened (hs,ws) -> (hs//2, ws//2), batch folded into lanes."""
    m = np.zeros((ls_src, ls_dst), np.float32)
    hd, wd = hs // 2, ws // 2
    for b in range(nb):
        for h2 in range(hd):
            for w2 in range(wd):
                m[b * hs * ws + (2 * h2) * ws + 2 * w2,
                  b * hd * wd + h2 * wd + w2] = 1.0
    return m


def _up_matrix(hs, ws, ls_src, ls_dst, nb):
    """0/1 nearest-neighbour 2x upsample: (hs,ws) -> (2hs,2ws), batch folded."""
    m = np.zeros((ls_src, ls_dst), np.float32)
    for b in range(nb):
        for hd in range(2 * hs):
            for wd in range(2 * ws):
                m[b * hs * ws + (hd // 2) * ws + (wd // 2),
                  b * 4 * hs * ws + hd * (2 * ws) + wd] = 1.0
    return m


# ----------------------------------------------------------------------------
# Parameter construction (deterministic, synthetic, PyTorch-like structure)
# ----------------------------------------------------------------------------
def init_params(key, features, in_channels, out_channels, conv_layers_per_stage):
    keys = iter(jax.random.split(key, 128))

    def conv_p(cin, cout, k):
        w = jax.random.normal(next(keys), (k, k, cin, cout), jnp.float32) * 0.1
        b = jax.random.normal(next(keys), (cout,), jnp.float32) * 0.01
        return (w, b)

    enc, prev = [], in_channels
    for f in features:
        stage = []
        for _ in range(conv_layers_per_stage):
            stage.append(conv_p(prev, f, 3))
            prev = f
        enc.append(stage)

    dec = []
    dec_feat = features[::-1]
    for j, f in enumerate(dec_feat):
        stage = []
        cin = prev if j == 0 else prev + features[len(dec_feat) - 1 - j]
        for l in range(conv_layers_per_stage):
            stage.append(conv_p(cin if l == 0 else f, f, 3))
        prev = f
        dec.append(stage)

    head0 = conv_p(prev, out_channels * 2, 3)
    w1 = jax.random.normal(next(keys), (out_channels * 2, out_channels),
                           jnp.float32) * 0.1
    b1 = jax.random.normal(next(keys), (out_channels,), jnp.float32) * 0.01
    return {"enc": enc, "dec": dec, "head0": head0, "head1": (w1, b1)}


# ----------------------------------------------------------------------------
# Pure-JAX f32 reference (same assumed architecture) for validation
# ----------------------------------------------------------------------------
def segnet_reference(params, x, features):
    def conv3x3(a, w, b):
        y = lax.conv_general_dilated(a, w, (1, 1), ((1, 1), (1, 1)),
                                     dimension_numbers=("NCHW", "HWIO", "NCHW"))
        y = y + b[None, :, None, None]
        return jnp.maximum(y, LEAKY_SLOPE * y)

    def maxpool(a):
        return lax.reduce_window(a, -jnp.inf, lax.max,
                                 (1, 1, 2, 2), (1, 1, 2, 2), "VALID")

    def upsample(a):
        return jnp.repeat(jnp.repeat(a, 2, axis=2), 2, axis=3)

    n = len(features)
    act = x.astype(jnp.float32)
    skips = []
    for i, stage in enumerate(params["enc"]):
        if i > 0:
            act = maxpool(act)
        for (w, b) in stage:
            act = conv3x3(act, w, b)
        skips.append(act)

    act = skips[-1]
    for j, stage in enumerate(params["dec"]):
        level = n - 1 - j
        if j > 0:
            act = jnp.concatenate([upsample(act), skips[level]], axis=1)
        for (w, b) in stage:
            act = conv3x3(act, w, b)

    w, b = params["head0"]
    act = conv3x3(act, w, b)
    w1, b1 = params["head1"]
    return jnp.einsum("nchw,co->nohw", act, w1) + b1[None, :, None, None]


# ----------------------------------------------------------------------------
# Fused forward-pass builder (packing done once, at build time)
# ----------------------------------------------------------------------------
def make_segnet_forward(params, features, in_channels, out_channels, H, W,
                        batch_size):
    n = len(features)
    assert H % (1 << (n - 1)) == 0 and W % (1 << (n - 1)) == 0, (H, W)

    # Keep >= 2 "parallel" grid steps when possible (feeds both v7x TensorCores),
    # fold the rest of the batch into the lane axis of every matmul.
    G = 2 if (batch_size % 2 == 0 and batch_size >= 2) else 1
    NB = batch_size // G

    levels_hw = [(H >> l, W >> l) for l in range(n)]
    lane_w = [_round_up(NB * h * w, LANE) for (h, w) in levels_hw]
    lane_off = [0]
    for lw_ in lane_w[:-1]:
        lane_off.append(lane_off[-1] + lw_)
    L0 = lane_w[0]
    HW0 = H * W

    c_pad = _round_up(max(list(features) + [in_channels, 2 * out_channels]), 8)

    # ---- one-time host-side packing (numpy) ----
    wslab_np, bslab_np, meta = pack_params(params, features, c_pad)
    mask_np = _mask_slab(levels_hw, lane_w, NB, c_pad)
    pools_np = [_pool_matrix(levels_hw[i][0], levels_hw[i][1],
                             lane_w[i], lane_w[i + 1], NB) for i in range(n - 1)]
    ups_np = [_up_matrix(levels_hw[i + 1][0], levels_hw[i + 1][1],
                         lane_w[i + 1], lane_w[i], NB) for i in range(n - 1)]

    wslab = jnp.asarray(wslab_np).astype(jnp.bfloat16)   # (NBLK, c_pad, 9*c_pad)
    bslab = jnp.asarray(bslab_np)                        # (NBLK, c_pad, 1) f32
    maskslab = jnp.asarray(mask_np)                      # (9*c_pad, sum L) f32
    pools = [jnp.asarray(p).astype(jnp.bfloat16) for p in pools_np]
    ups = [jnp.asarray(u).astype(jnp.bfloat16) for u in ups_np]

    enc_idx, dec_idx = meta["enc"], meta["dec"]
    head3_idx, head1_idx = meta["head3"], meta["head1"]
    n_pool = n - 1

    # ------------------------------------------------------------------
    # fused kernel: NB batch elements per grid step, everything in VMEM
    # ------------------------------------------------------------------
    def kernel(x_ref, w_ref, b_ref, m_ref, *rest):
        pool_refs = rest[:n_pool]
        up_refs = rest[n_pool:2 * n_pool]
        o_ref = rest[2 * n_pool]

        def lrelu(a):
            return jnp.maximum(a, LEAKY_SLOPE * a)

        def tap_stack(act, level):
            """(c_pad, L) f32 -> masked 9-tap stack (9*c_pad, L) bf16, 4 rolls."""
            ws = levels_hw[level][1]
            ls = lane_w[level]
            off = lane_off[level]
            # +-1 column shifts (dw = -1, 0, +1)
            col = jnp.concatenate(
                [pltpu.roll(act, 1, axis=1), act,
                 pltpu.roll(act, ls - 1, axis=1)], axis=0)
            # +-1 row shifts of the 3-block column stack (dh = -1, 0, +1)
            stk = jnp.concatenate(
                [pltpu.roll(col, ws, axis=1), col,
                 pltpu.roll(col, ls - ws, axis=1)], axis=0)
            # single 0/1 boundary-mask multiply for all 9 taps, then one cast
            stk = stk * m_ref[:, off:off + ls]
            return stk.astype(jnp.bfloat16)

        def conv3x3(act, idx, level):
            s = tap_stack(act, level)
            y = jnp.dot(w_ref[idx], s, preferred_element_type=jnp.float32)
            return lrelu(y + b_ref[idx])

        def maxpool2(act, level):
            """2x2/stride-2 max pool: rolled maxima + bf16 0/1 selection matmul."""
            ws = levels_hw[level][1]
            ls = lane_w[level]
            m = act
            for d in (1, ws, ws + 1):
                m = jnp.maximum(m, pltpu.roll(act, ls - d, axis=1))
            return jnp.dot(m.astype(jnp.bfloat16), pool_refs[level][...],
                           preferred_element_type=jnp.float32)

        # ---------------- encoder ----------------
        act = x_ref[...]
        skips = []
        for i in range(n):
            if i > 0:
                act = maxpool2(act, i - 1)
            for idx in enc_idx[i]:
                act = conv3x3(act, idx, i)
            skips.append(act)

        # ---------------- decoder ----------------
        act = skips[-1]
        for j in range(n):
            level = n - 1 - j
            stage = dec_idx[j]
            if j == 0:
                for idx in stage:
                    act = conv3x3(act, idx, level)
            else:
                # 2x nearest upsample (bf16 0/1 matmul); skip "concat" folded
                # into the first conv as the sum of two fused-tap matmuls.
                act = jnp.dot(act.astype(jnp.bfloat16), up_refs[level][...],
                              preferred_element_type=jnp.float32)
                i_up, i_sk = stage[0]
                y = (jnp.dot(w_ref[i_up], tap_stack(act, level),
                             preferred_element_type=jnp.float32)
                     + jnp.dot(w_ref[i_sk], tap_stack(skips[level], level),
                               preferred_element_type=jnp.float32)
                     + b_ref[i_up])
                act = lrelu(y)
                for idx in stage[1:]:
                    act = conv3x3(act, idx, level)

        # ------- head: Conv3x3 -> LeakyReLU(0.2) -> Conv1x1 (no activation) ----
        act = conv3x3(act, head3_idx, 0)
        w1 = w_ref[head1_idx][:, :c_pad]
        out = (jnp.dot(w1, act.astype(jnp.bfloat16),
                       preferred_element_type=jnp.float32) + b_ref[head1_idx])
        o_ref[...] = out[:out_channels]

    const_arrays = [wslab, bslab, maskslab] + pools + ups

    def const_spec(a):
        nd = a.ndim
        return pl.BlockSpec(a.shape, lambda g, _n=nd: (0,) * _n)

    in_specs = ([pl.BlockSpec((None, c_pad, L0), lambda g: (g, 0, 0))]
                + [const_spec(a) for a in const_arrays])
    out_spec = pl.BlockSpec((None, out_channels, L0), lambda g: (g, 0, 0))

    call = pl.pallas_call(
        kernel,
        out_shape=jax.ShapeDtypeStruct((G, out_channels, L0), jnp.float32),
        grid=(G,),
        in_specs=in_specs,
        out_specs=out_spec,
        compiler_params=pltpu.CompilerParams(dimension_semantics=("parallel",)),
    )

    def forward(x):
        assert x.shape == (batch_size, in_channels, H, W), x.shape
        N = x.shape[0]
        # NCHW -> (G, c_pad, NB*H*W): pad channels, fold NB images into lanes.
        xc = x.astype(jnp.float32).reshape(N, in_channels, HW0)
        xc = jnp.pad(xc, ((0, 0), (0, c_pad - in_channels), (0, 0)))
        xg = (xc.reshape(G, NB, c_pad, HW0)
                .transpose(0, 2, 1, 3)
                .reshape(G, c_pad, NB * HW0))
        if L0 > NB * HW0:
            xg = jnp.pad(xg, ((0, 0), (0, 0), (0, L0 - NB * HW0)))
        out = call(xg, *const_arrays)
        out = (out[:, :, :NB * HW0]
               .reshape(G, out_channels, NB, HW0)
               .transpose(0, 2, 1, 3)
               .reshape(N, out_channels, H, W))
        return out

    return forward


# ----------------------------------------------------------------------------
if __name__ == "__main__":
    features = [4, 8]
    in_channels, out_channels = 4, 1
    conv_layers_per_stage = 2
    H = W = 16
    N = 4   # 2 "parallel" grid steps x 2 images folded into lanes per step

    key = jax.random.PRNGKey(0)
    kx, kp = jax.random.split(key)
    x = jax.random.normal(kx, (N, in_channels, H, W), jnp.float32)
    params = init_params(kp, features, in_channels, out_channels,
                         conv_layers_per_stage)

    forward = jax.jit(make_segnet_forward(params, features, in_channels,
                                          out_channels, H, W, batch_size=N))
    out = forward(x)
    jax.block_until_ready(out)
    assert out.shape == (N, out_channels, H, W), out.shape
    assert bool(jnp.all(jnp.isfinite(out)))

    # Validate against the f32 pure-JAX reference (bf16 MXU tolerance).
    ref = segnet_reference(params, x, features)
    np.testing.assert_allclose(np.asarray(out), np.asarray(ref),
                               rtol=5e-2, atol=2e-2)
    print("KERNEL_OK")
</pallas_src>

<mosaic_0001>
module attributes {stable_mosaic.version = 11 : i64} {
  func.func @kernel(%arg0: i32, %arg1: memref<1x8x512xf32, #tpu.memory_space<vmem>>, %arg2: memref<11x8x72xbf16, #tpu.memory_space<vmem>>, %arg3: memref<11x8x1xf32, #tpu.memory_space<vmem>>, %arg4: memref<72x640xf32, #tpu.memory_space<vmem>>, %arg5: memref<512x128xbf16, #tpu.memory_space<vmem>>, %arg6: memref<128x512xbf16, #tpu.memory_space<vmem>>, %arg7: memref<1x1x512xf32, #tpu.memory_space<vmem>>) attributes {dimension_semantics = [#tpu.dimension_semantics<parallel>], iteration_bounds = array<i64: 2>, scalar_prefetch = 0 : i64, scratch_operands = 0 : i64, tpu.core_type = #tpu.core_type<tc>, window_params = [{transform_indices = @transform_0, window_bounds = array<i64: 1, 8, 512>}, {pipeline_mode = #tpu.pipeline_mode<synchronous>, transform_indices = @transform_1, window_bounds = array<i64: 11, 8, 72>}, {pipeline_mode = #tpu.pipeline_mode<synchronous>, transform_indices = @transform_2, window_bounds = array<i64: 11, 8, 1>}, {pipeline_mode = #tpu.pipeline_mode<synchronous>, transform_indices = @transform_3, window_bounds = array<i64: 72, 640>}, {pipeline_mode = #tpu.pipeline_mode<synchronous>, transform_indices = @transform_4, window_bounds = array<i64: 512, 128>}, {pipeline_mode = #tpu.pipeline_mode<synchronous>, transform_indices = @transform_5, window_bounds = array<i64: 128, 512>}, {transform_indices = @transform_6, window_bounds = array<i64: 1, 1, 512>}]} {
    %c0 = arith.constant 0 : index
    %c0_0 = arith.constant 0 : index
    %c0_1 = arith.constant 0 : index
    %0 = vector.load %arg1[%c0, %c0_0, %c0_1] : memref<1x8x512xf32, #tpu.memory_space<vmem>>, vector<1x8x512xf32>
    %1 = vector.shape_cast %0 : vector<1x8x512xf32> to vector<8x512xf32>
    %c1_i32 = arith.constant 1 : i32
    %2 = tpu.dynamic_rotate %1 by %c1_i32 dim 1 : vector<8x512xf32>, i32 -> vector<8x512xf32>
    %c511_i32 = arith.constant 511 : i32
    %3 = tpu.dynamic_rotate %1 by %c511_i32 dim 1 : vector<8x512xf32>, i32 -> vector<8x512xf32>
    %4 = tpu.concatenate %2, %1, %3 in 0 : vector<8x512xf32>, vector<8x512xf32>, vector<8x512xf32> -> vector<24x512xf32>
    %c16_i32 = arith.constant 16 : i32
    %5 = tpu.dynamic_rotate %4 by %c16_i32 dim 1 : vector<24x512xf32>, i32 -> vector<24x512xf32>
    %c496_i32 = arith.constant 496 : i32
    %6 = tpu.dynamic_rotate %4 by %c496_i32 dim 1 : vector<24x512xf32>, i32 -> vector<24x512xf32>
    %7 = tpu.concatenate %5, %4, %6 in 0 : vector<24x512xf32>, vector<24x512xf32>, vector<24x512xf32> -> vector<72x512xf32>
    %c0_2 = arith.constant 0 : index
    %c0_3 = arith.constant 0 : index
    %8 = vector.load %arg4[%c0_2, %c0_3] : memref<72x640xf32, #tpu.memory_space<vmem>>, vector<72x512xf32>
    %9 = arith.mulf %7, %8 : vector<72x512xf32>
    %10 = arith.truncf %9 : vector<72x512xf32> to vector<72x512xbf16>
    %c0_4 = arith.constant 0 : index
    %c0_5 = arith.constant 0 : index
    %c0_6 = arith.constant 0 : index
    %11 = vector.load %arg2[%c0_4, %c0_5, %c0_6] : memref<11x8x72xbf16, #tpu.memory_space<vmem>>, vector<1x8x72xbf16>
    %12 = vector.shape_cast %11 : vector<1x8x72xbf16> to vector<8x72xbf16>
    %cst = arith.constant dense<0.000000e+00> : vector<8x512xf32>
    %13 = tpu.matmul %12, %10, %cst {dimension_numbers = #tpu.dot_dimension_numbers<[1], [0], [0], [1], [0, 0, 1, 1], [], []>} : vector<8x72xbf16>, vector<72x512xbf16>, vector<8x512xf32> -> vector<8x512xf32>
    %c0_7 = arith.constant 0 : index
    %c0_8 = arith.constant 0 : index
    %c0_9 = arith.constant 0 : index
    %14 = vector.load %arg3[%c0_7, %c0_8, %c0_9] : memref<11x8x1xf32, #tpu.memory_space<vmem>>, vector<1x8x1xf32>
    %15 = vector.shape_cast %14 : vector<1x8x1xf32> to vector<8x1xf32>
    %16 = vector.broadcast %15 : vector<8x1xf32> to vector<8x512xf32>
    %17 = arith.addf %13, %16 : vector<8x512xf32>
    %cst_10 = arith.constant 2.000000e-01 : f32
    %18 = vector.broadcast %cst_10 : f32 to vector<8x512xf32>
    %19 = arith.mulf %18, %17 : vector<8x512xf32>
    %20 = arith.maximumf %17, %19 : vector<8x512xf32>
    %c1_i32_11 = arith.constant 1 : i32
    %21 = tpu.dynamic_rotate %20 by %c1_i32_11 dim 1 : vector<8x512xf32>, i32 -> vector<8x512xf32>
    %c511_i32_12 = arith.constant 511 : i32
    %22 = tpu.dynamic_rotate %20 by %c511_i32_12 dim 1 : vector<8x512xf32>, i32 -> vector<8x512xf32>
    %23 = tpu.concatenate %21, %20, %22 in 0 : vector<8x512xf32>, vector<8x512xf32>, vector<8x512xf32> -> vector<24x512xf32>
    %c16_i32_13 = arith.constant 16 : i32
    %24 = tpu.dynamic_rotate %23 by %c16_i32_13 dim 1 : vector<24x512xf32>, i32 -> vector<24x512xf32>
    %c496_i32_14 = arith.constant 496 : i32
    %25 = tpu.dynamic_rotate %23 by %c496_i32_14 dim 1 : vector<24x512xf32>, i32 -> vector<24x512xf32>
    %26 = tpu.concatenate %24, %23, %25 in 0 : vector<24x512xf32>, vector<24x512xf32>, vector<24x512xf32> -> vector<72x512xf32>
    %c0_15 = arith.constant 0 : index
    %c0_16 = arith.constant 0 : index
    %27 = vector.load %arg4[%c0_15, %c0_16] : memref<72x640xf32, #tpu.memory_space<vmem>>, vector<72x512xf32>
    %28 = arith.mulf %26, %27 : vector<72x512xf32>
    %29 = arith.truncf %28 : vector<72x512xf32> to vector<72x512xbf16>
    %c1 = arith.constant 1 : index
    %c0_17 = arith.constant 0 : index
    %c0_18 = arith.constant 0 : index
    %30 = vector.load %arg2[%c1, %c0_17, %c0_18] : memref<11x8x72xbf16, #tpu.memory_space<vmem>>, vector<1x8x72xbf16>
    %31 = vector.shape_cast %30 : vector<1x8x72xbf16> to vector<8x72xbf16>
    %cst_19 = arith.constant dense<0.000000e+00> : vector<8x512xf32>
    %32 = tpu.matmul %31, %29, %cst_19 {dimension_numbers = #tpu.dot_dimension_numbers<[1], [0], [0], [1], [0, 0, 1, 1], [], []>} : vector<8x72xbf16>, vector<72x512xbf16>, vector<8x512xf32> -> vector<8x512xf32>
    %c1_20 = arith.constant 1 : index
    %c0_21 = arith.constant 0 : index
    %c0_22 = arith.constant 0 : index
    %33 = vector.load %arg3[%c1_20, %c0_21, %c0_22] : memref<11x8x1xf32, #tpu.memory_space<vmem>>, vector<1x8x1xf32>
    %34 = vector.shape_cast %33 : vector<1x8x1xf32> to vector<8x1xf32>
    %35 = vector.broadcast %34 : vector<8x1xf32> to vector<8x512xf32>
    %36 = arith.addf %32, %35 : vector<8x512xf32>
    %cst_23 = arith.constant 2.000000e-01 : f32
    %37 = vector.broadcast %cst_23 : f32 to vector<8x512xf32>
    %38 = arith.mulf %37, %36 : vector<8x512xf32>
    %39 = arith.maximumf %36, %38 : vector<8x512xf32>
    %c511_i32_24 = arith.constant 511 : i32
    %40 = tpu.dynamic_rotate %39 by %c511_i32_24 dim 1 : vector<8x512xf32>, i32 -> vector<8x512xf32>
    %41 = arith.maximumf %39, %40 : vector<8x512xf32>
    %c496_i32_25 = arith.constant 496 : i32
    %42 = tpu.dynamic_rotate %39 by %c496_i32_25 dim 1 : vector<8x512xf32>, i32 -> vector<8x512xf32>
    %43 = arith.maximumf %41, %42 : vector<8x512xf32>
    %c495_i32 = arith.constant 495 : i32
    %44 = tpu.dynamic_rotate %39 by %c495_i32 dim 1 : vector<8x512xf32>, i32 -> vector<8x512xf32>
    %45 = arith.maximumf %43, %44 : vector<8x512xf32>
    %46 = arith.truncf %45 : vector<8x512xf32> to vector<8x512xbf16>
    %c0_26 = arith.constant 0 : index
    %c0_27 = arith.constant 0 : index
    %47 = vector.load %arg5[%c0_26, %c0_27] : memref<512x128xbf16, #tpu.memory_space<vmem>>, vector<512x128xbf16>
    %cst_28 = arith.constant dense<0.000000e+00> : vector<8x128xf32>
    %48 = tpu.matmul %46, %47, %cst_28 {dimension_numbers = #tpu.dot_dimension_numbers<[1], [0], [0], [1], [0, 0, 1, 1], [], []>} : vector<8x512xbf16>, vector<512x128xbf16>, vector<8x128xf32> -> vector<8x128xf32>
    %c1_i32_29 = arith.constant 1 : i32
    %49 = tpu.dynamic_rotate %48 by %c1_i32_29 dim 1 : vector<8x128xf32>, i32 -> vector<8x128xf32>
    %c127_i32 = arith.constant 127 : i32
    %50 = tpu.dynamic_rotate %48 by %c127_i32 dim 1 : vector<8x128xf32>, i32 -> vector<8x128xf32>
    %51 = tpu.concatenate %49, %48, %50 in 0 : vector<8x128xf32>, vector<8x128xf32>, vector<8x128xf32> -> vector<24x128xf32>
    %c8_i32 = arith.constant 8 : i32
    %52 = tpu.dynamic_rotate %51 by %c8_i32 dim 1 : vector<24x128xf32>, i32 -> vector<24x128xf32>
    %c120_i32 = arith.constant 120 : i32
    %53 = tpu.dynamic_rotate %51 by %c120_i32 dim 1 : vector<24x128xf32>, i32 -> vector<24x128xf32>
    %54 = tpu.concatenate %52, %51, %53 in 0 : vector<24x128xf32>, vector<24x128xf32>, vector<24x128xf32> -> vector<72x128xf32>
    %c0_30 = arith.constant 0 : index
    %c512 = arith.constant 512 : index
    %55 = vector.load %arg4[%c0_30, %c512] : memref<72x640xf32, #tpu.memory_space<vmem>>, vector<72x128xf32>
    %56 = arith.mulf %54, %55 : vector<72x128xf32>
    %57 = arith.truncf %56 : vector<72x128xf32> to vector<72x128xbf16>
    %c2 = arith.constant 2 : index
    %c0_31 = arith.constant 0 : index
    %c0_32 = arith.constant 0 : index
    %58 = vector.load %arg2[%c2, %c0_31, %c0_32] : memref<11x8x72xbf16, #tpu.memory_space<vmem>>, vector<1x8x72xbf16>
    %59 = vector.shape_cast %58 : vector<1x8x72xbf16> to vector<8x72xbf16>
    %cst_33 = arith.constant dense<0.000000e+00> : vector<8x128xf32>
    %60 = tpu.matmul %59, %57, %cst_33 {dimension_numbers = #tpu.dot_dimension_numbers<[1], [0], [0], [1], [0, 0, 1, 1], [], []>} : vector<8x72xbf16>, vector<72x128xbf16>, vector<8x128xf32> -> vector<8x128xf32>
    %c2_34 = arith.constant 2 : index
    %c0_35 = arith.constant 0 : index
    %c0_36 = arith.constant 0 : index
    %61 = vector.load %arg3[%c2_34, %c0_35, %c0_36] : memref<11x8x1xf32, #tpu.memory_space<vmem>>, vector<1x8x1xf32>
    %62 = vector.shape_cast %61 : vector<1x8x1xf32> to vector<8x1xf32>
    %63 = vector.broadcast %62 : vector<8x1xf32> to vector<8x128xf32>
    %64 = arith.addf %60, %63 : vector<8x128xf32>
    %cst_37 = arith.constant 2.000000e-01 : f32
    %65 = vector.broadcast %cst_37 : f32 to vector<8x128xf32>
    %66 = arith.mulf %65, %64 : vector<8x128xf32>
    %67 = arith.maximumf %64, %66 : vector<8x128xf32>
    %c1_i32_38 = arith.constant 1 : i32
    %68 = tpu.dynamic_rotate %67 by %c1_i32_38 dim 1 : vector<8x128xf32>, i32 -> vector<8x128xf32>
    %c127_i32_39 = arith.constant 127 : i32
    %69 = tpu.dynamic_rotate %67 by %c127_i32_39 dim 1 : vector<8x128xf32>, i32 -> vector<8x128xf32>
    %70 = tpu.concatenate %68, %67, %69 in 0 : vector<8x128xf32>, vector<8x128xf32>, vector<8x128xf32> -> vector<24x128xf32>
    %c8_i32_40 = arith.constant 8 : i32
    %71 = tpu.dynamic_rotate %70 by %c8_i32_40 dim 1 : vector<24x128xf32>, i32 -> vector<24x128xf32>
    %c120_i32_41 = arith.constant 120 : i32
    %72 = tpu.dynamic_rotate %70 by %c120_i32_41 dim 1 : vector<24x128xf32>, i32 -> vector<24x128xf32>
    %73 = tpu.concatenate %71, %70, %72 in 0 : vector<24x128xf32>, vector<24x128xf32>, vector<24x128xf32> -> vector<72x128xf32>
    %c0_42 = arith.constant 0 : index
    %c512_43 = arith.constant 512 : index
    %74 = vector.load %arg4[%c0_42, %c512_43] : memref<72x640xf32, #tpu.memory_space<vmem>>, vector<72x128xf32>
    %75 = arith.mulf %73, %74 : vector<72x128xf32>
    %76 = arith.truncf %75 : vector<72x128xf32> to vector<72x128xbf16>
    %c3 = arith.constant 3 : index
    %c0_44 = arith.constant 0 : index
    %c0_45 = arith.constant 0 : index
    %77 = vector.load %arg2[%c3, %c0_44, %c0_45] : memref<11x8x72xbf16, #tpu.memory_space<vmem>>, vector<1x8x72xbf16>
    %78 = vector.shape_cast %77 : vector<1x8x72xbf16> to vector<8x72xbf16>
    %cst_46 = arith.constant dense<0.000000e+00> : vector<8x128xf32>
    %79 = tpu.matmul %78, %76, %cst_46 {dimension_numbers = #tpu.dot_dimension_numbers<[1], [0], [0], [1], [0, 0, 1, 1], [], []>} : vector<8x72xbf16>, vector<72x128xbf16>, vector<8x128xf32> -> vector<8x128xf32>
    %c3_47 = arith.constant 3 : index
    %c0_48 = arith.constant 0 : index
    %c0_49 = arith.constant 0 : index
    %80 = vector.load %arg3[%c3_47, %c0_48, %c0_49] : memref<11x8x1xf32, #tpu.memory_space<vmem>>, vector<1x8x1xf32>
    %81 = vector.shape_cast %80 : vector<1x8x1xf32> to vector<8x1xf32>
    %82 = vector.broadcast %81 : vector<8x1xf32> to vector<8x128xf32>
    %83 = arith.addf %79, %82 : vector<8x128xf32>
    %cst_50 = arith.constant 2.000000e-01 : f32
    %84 = vector.broadcast %cst_50 : f32 to vector<8x128xf32>
    %85 = arith.mulf %84, %83 : vector<8x128xf32>
    %86 = arith.maximumf %83, %85 : vector<8x128xf32>
    %c1_i32_51 = arith.constant 1 : i32
    %87 = tpu.dynamic_rotate %86 by %c1_i32_51 dim 1 : vector<8x128xf32>, i32 -> vector<8x128xf32>
    %c127_i32_52 = arith.constant 127 : i32
    %88 = tpu.dynamic_rotate %86 by %c127_i32_52 dim 1 : vector<8x128xf32>, i32 -> vector<8x128xf32>
    %89 = tpu.concatenate %87, %86, %88 in 0 : vector<8x128xf32>, vector<8x128xf32>, vector<8x128xf32> -> vector<24x128xf32>
    %c8_i32_53 = arith.constant 8 : i32
    %90 = tpu.dynamic_rotate %89 by %c8_i32_53 dim 1 : vector<24x128xf32>, i32 -> vector<24x128xf32>
    %c120_i32_54 = arith.constant 120 : i32
    %91 = tpu.dynamic_rotate %89 by %c120_i32_54 dim 1 : vector<24x128xf32>, i32 -> vector<24x128xf32>
    %92 = tpu.concatenate %90, %89, %91 in 0 : vector<24x128xf32>, vector<24x128xf32>, vector<24x128xf32> -> vector<72x128xf32>
    %c0_55 = arith.constant 0 : index
    %c512_56 = arith.constant 512 : index
    %93 = vector.load %arg4[%c0_55, %c512_56] : memref<72x640xf32, #tpu.memory_space<vmem>>, vector<72x128xf32>
    %94 = arith.mulf %92, %93 : vector<72x128xf32>
    %95 = arith.truncf %94 : vector<72x128xf32> to vector<72x128xbf16>
    %c4 = arith.constant 4 : index
    %c0_57 = arith.constant 0 : index
    %c0_58 = arith.constant 0 : index
    %96 = vector.load %arg2[%c4, %c0_57, %c0_58] : memref<11x8x72xbf16, #tpu.memory_space<vmem>>, vector<1x8x72xbf16>
    %97 = vector.shape_cast %96 : vector<1x8x72xbf16> to vector<8x72xbf16>
    %cst_59 = arith.constant dense<0.000000e+00> : vector<8x128xf32>
    %98 = tpu.matmul %97, %95, %cst_59 {dimension_numbers = #tpu.dot_dimension_numbers<[1], [0], [0], [1], [0, 0, 1, 1], [], []>} : vector<8x72xbf16>, vector<72x128xbf16>, vector<8x128xf32> -> vector<8x128xf32>
    %c4_60 = arith.constant 4 : index
    %c0_61 = arith.constant 0 : index
    %c0_62 = arith.constant 0 : index
    %99 = vector.load %arg3[%c4_60, %c0_61, %c0_62] : memref<11x8x1xf32, #tpu.memory_space<vmem>>, vector<1x8x1xf32>
    %100 = vector.shape_cast %99 : vector<1x8x1xf32> to vector<8x1xf32>
    %101 = vector.broadcast %100 : vector<8x1xf32> to vector<8x128xf32>
    %102 = arith.addf %98, %101 : vector<8x128xf32>
    %cst_63 = arith.constant 2.000000e-01 : f32
    %103 = vector.broadcast %cst_63 : f32 to vector<8x128xf32>
    %104 = arith.mulf %103, %102 : vector<8x128xf32>
    %105 = arith.maximumf %102, %104 : vector<8x128xf32>
    %c1_i32_64 = arith.constant 1 : i32
    %106 = tpu.dynamic_rotate %105 by %c1_i32_64 dim 1 : vector<8x128xf32>, i32 -> vector<8x128xf32>
    %c127_i32_65 = arith.constant 127 : i32
    %107 = tpu.dynamic_rotate %105 by %c127_i32_65 dim 1 : vector<8x128xf32>, i32 -> vector<8x128xf32>
    %108 = tpu.concatenate %106, %105, %107 in 0 : vector<8x128xf32>, vector<8x128xf32>, vector<8x128xf32> -> vector<24x128xf32>
    %c8_i32_66 = arith.constant 8 : i32
    %109 = tpu.dynamic_rotate %108 by %c8_i32_66 dim 1 : vector<24x128xf32>, i32 -> vector<24x128xf32>
    %c120_i32_67 = arith.constant 120 : i32
    %110 = tpu.dynamic_rotate %108 by %c120_i32_67 dim 1 : vector<24x128xf32>, i32 -> vector<24x128xf32>
    %111 = tpu.concatenate %109, %108, %110 in 0 : vector<24x128xf32>, vector<24x128xf32>, vector<24x128xf32> -> vector<72x128xf32>
    %c0_68 = arith.constant 0 : index
    %c512_69 = arith.constant 512 : index
    %112 = vector.load %arg4[%c0_68, %c512_69] : memref<72x640xf32, #tpu.memory_space<vmem>>, vector<72x128xf32>
    %113 = arith.mulf %111, %112 : vector<72x128xf32>
    %114 = arith.truncf %113 : vector<72x128xf32> to vector<72x128xbf16>
    %c5 = arith.constant 5 : index
    %c0_70 = arith.constant 0 : index
    %c0_71 = arith.constant 0 : index
    %115 = vector.load %arg2[%c5, %c0_70, %c0_71] : memref<11x8x72xbf16, #tpu.memory_space<vmem>>, vector<1x8x72xbf16>
    %116 = vector.shape_cast %115 : vector<1x8x72xbf16> to vector<8x72xbf16>
    %cst_72 = arith.constant dense<0.000000e+00> : vector<8x128xf32>
    %117 = tpu.matmul %116, %114, %cst_72 {dimension_numbers = #tpu.dot_dimension_numbers<[1], [0], [0], [1], [0, 0, 1, 1], [], []>} : vector<8x72xbf16>, vector<72x128xbf16>, vector<8x128xf32> -> vector<8x128xf32>
    %c5_73 = arith.constant 5 : index
    %c0_74 = arith.constant 0 : index
    %c0_75 = arith.constant 0 : index
    %118 = vector.load %arg3[%c5_73, %c0_74, %c0_75] : memref<11x8x1xf32, #tpu.memory_space<vmem>>, vector<1x8x1xf32>
    %119 = vector.shape_cast %118 : vector<1x8x1xf32> to vector<8x1xf32>
    %120 = vector.broadcast %119 : vector<8x1xf32> to vector<8x128xf32>
    %121 = arith.addf %117, %120 : vector<8x128xf32>
    %cst_76 = arith.constant 2.000000e-01 : f32
    %122 = vector.broadcast %cst_76 : f32 to vector<8x128xf32>
    %123 = arith.mulf %122, %121 : vector<8x128xf32>
    %124 = arith.maximumf %121, %123 : vector<8x128xf32>
    %125 = arith.truncf %124 : vector<8x128xf32> to vector<8x128xbf16>
    %c0_77 = arith.constant 0 : index
    %c0_78 = arith.constant 0 : index
    %126 = vector.load %arg6[%c0_77, %c0_78] : memref<128x512xbf16, #tpu.memory_space<vmem>>, vector<128x512xbf16>
    %cst_79 = arith.constant dense<0.000000e+00> : vector<8x512xf32>
    %127 = tpu.matmul %125, %126, %cst_79 {dimension_numbers = #tpu.dot_dimension_numbers<[1], [0], [0], [1], [0, 0, 1, 1], [], []>} : vector<8x128xbf16>, vector<128x512xbf16>, vector<8x512xf32> -> vector<8x512xf32>
    %c6 = arith.constant 6 : index
    %c0_80 = arith.constant 0 : index
    %c0_81 = arith.constant 0 : index
    %128 = vector.load %arg2[%c6, %c0_80, %c0_81] : memref<11x8x72xbf16, #tpu.memory_space<vmem>>, vector<1x8x72xbf16>
    %129 = vector.shape_cast %128 : vector<1x8x72xbf16> to vector<8x72xbf16>
    %c1_i32_82 = arith.constant 1 : i32
    %130 = tpu.dynamic_rotate %127 by %c1_i32_82 dim 1 : vector<8x512xf32>, i32 -> vector<8x512xf32>
    %c511_i32_83 = arith.constant 511 : i32
    %131 = tpu.dynamic_rotate %127 by %c511_i32_83 dim 1 : vector<8x512xf32>, i32 -> vector<8x512xf32>
    %132 = tpu.concatenate %130, %127, %131 in 0 : vector<8x512xf32>, vector<8x512xf32>, vector<8x512xf32> -> vector<24x512xf32>
    %c16_i32_84 = arith.constant 16 : i32
    %133 = tpu.dynamic_rotate %132 by %c16_i32_84 dim 1 : vector<24x512xf32>, i32 -> vector<24x512xf32>
    %c496_i32_85 = arith.constant 496 : i32
    %134 = tpu.dynamic_rotate %132 by %c496_i32_85 dim 1 : vector<24x512xf32>, i32 -> vector<24x512xf32>
    %135 = tpu.concatenate %133, %132, %134 in 0 : vector<24x512xf32>, vector<24x512xf32>, vector<24x512xf32> -> vector<72x512xf32>
    %c0_86 = arith.constant 0 : index
    %c0_87 = arith.constant 0 : index
    %136 = vector.load %arg4[%c0_86, %c0_87] : memref<72x640xf32, #tpu.memory_space<vmem>>, vector<72x512xf32>
    %137 = arith.mulf %135, %136 : vector<72x512xf32>
    %138 = arith.truncf %137 : vector<72x512xf32> to vector<72x512xbf16>
    %cst_88 = arith.constant dense<0.000000e+00> : vector<8x512xf32>
    %139 = tpu.matmul %129, %138, %cst_88 {dimension_numbers = #tpu.dot_dimension_numbers<[1], [0], [0], [1], [0, 0, 1, 1], [], []>} : vector<8x72xbf16>, vector<72x512xbf16>, vector<8x512xf32> -> vector<8x512xf32>
    %c7 = arith.constant 7 : index
    %c0_89 = arith.constant 0 : index
    %c0_90 = arith.constant 0 : index
    %140 = vector.load %arg2[%c7, %c0_89, %c0_90] : memref<11x8x72xbf16, #tpu.memory_space<vmem>>, vector<1x8x72xbf16>
    %141 = vector.shape_cast %140 : vector<1x8x72xbf16> to vector<8x72xbf16>
    %c1_i32_91 = arith.constant 1 : i32
    %142 = tpu.dynamic_rotate %39 by %c1_i32_91 dim 1 : vector<8x512xf32>, i32 -> vector<8x512xf32>
    %c511_i32_92 = arith.constant 511 : i32
    %143 = tpu.dynamic_rotate %39 by %c511_i32_92 dim 1 : vector<8x512xf32>, i32 -> vector<8x512xf32>
    %144 = tpu.concatenate %142, %39, %143 in 0 : vector<8x512xf32>, vector<8x512xf32>, vector<8x512xf32> -> vector<24x512xf32>
    %c16_i32_93 = arith.constant 16 : i32
    %145 = tpu.dynamic_rotate %144 by %c16_i32_93 dim 1 : vector<24x512xf32>, i32 -> vector<24x512xf32>
    %c496_i32_94 = arith.constant 496 : i32
    %146 = tpu.dynamic_rotate %144 by %c496_i32_94 dim 1 : vector<24x512xf32>, i32 -> vector<24x512xf32>
    %147 = tpu.concatenate %145, %144, %146 in 0 : vector<24x512xf32>, vector<24x512xf32>, vector<24x512xf32> -> vector<72x512xf32>
    %c0_95 = arith.constant 0 : index
    %c0_96 = arith.constant 0 : index
    %148 = vector.load %arg4[%c0_95, %c0_96] : memref<72x640xf32, #tpu.memory_space<vmem>>, vector<72x512xf32>
    %149 = arith.mulf %147, %148 : vector<72x512xf32>
    %150 = arith.truncf %149 : vector<72x512xf32> to vector<72x512xbf16>
    %cst_97 = arith.constant dense<0.000000e+00> : vector<8x512xf32>
    %151 = tpu.matmul %141, %150, %cst_97 {dimension_numbers = #tpu.dot_dimension_numbers<[1], [0], [0], [1], [0, 0, 1, 1], [], []>} : vector<8x72xbf16>, vector<72x512xbf16>, vector<8x512xf32> -> vector<8x512xf32>
    %152 = arith.addf %139, %151 : vector<8x512xf32>
    %c6_98 = arith.constant 6 : index
    %c0_99 = arith.constant 0 : index
    %c0_100 = arith.constant 0 : index
    %153 = vector.load %arg3[%c6_98, %c0_99, %c0_100] : memref<11x8x1xf32, #tpu.memory_space<vmem>>, vector<1x8x1xf32>
    %154 = vector.shape_cast %153 : vector<1x8x1xf32> to vector<8x1xf32>
    %155 = vector.broadcast %154 : vector<8x1xf32> to vector<8x512xf32>
    %156 = arith.addf %152, %155 : vector<8x512xf32>
    %cst_101 = arith.constant 2.000000e-01 : f32
    %157 = vector.broadcast %cst_101 : f32 to vector<8x512xf32>
    %158 = arith.mulf %157, %156 : vector<8x512xf32>
    %159 = arith.maximumf %156, %158 : vector<8x512xf32>
    %c1_i32_102 = arith.constant 1 : i32
    %160 = tpu.dynamic_rotate %159 by %c1_i32_102 dim 1 : vector<8x512xf32>, i32 -> vector<8x512xf32>
    %c511_i32_103 = arith.constant 511 : i32
    %161 = tpu.dynamic_rotate %159 by %c511_i32_103 dim 1 : vector<8x512xf32>, i32 -> vector<8x512xf32>
    %162 = tpu.concatenate %160, %159, %161 in 0 : vector<8x512xf32>, vector<8x512xf32>, vector<8x512xf32> -> vector<24x512xf32>
    %c16_i32_104 = arith.constant 16 : i32
    %163 = tpu.dynamic_rotate %162 by %c16_i32_104 dim 1 : vector<24x512xf32>, i32 -> vector<24x512xf32>
    %c496_i32_105 = arith.constant 496 : i32
    %164 = tpu.dynamic_rotate %162 by %c496_i32_105 dim 1 : vector<24x512xf32>, i32 -> vector<24x512xf32>
    %165 = tpu.concatenate %163, %162, %164 in 0 : vector<24x512xf32>, vector<24x512xf32>, vector<24x512xf32> -> vector<72x512xf32>
    %c0_106 = arith.constant 0 : index
    %c0_107 = arith.constant 0 : index
    %166 = vector.load %arg4[%c0_106, %c0_107] : memref<72x640xf32, #tpu.memory_space<vmem>>, vector<72x512xf32>
    %167 = arith.mulf %165, %166 : vector<72x512xf32>
    %168 = arith.truncf %167 : vector<72x512xf32> to vector<72x512xbf16>
    %c8 = arith.constant 8 : index
    %c0_108 = arith.constant 0 : index
    %c0_109 = arith.constant 0 : index
    %169 = vector.load %arg2[%c8, %c0_108, %c0_109] : memref<11x8x72xbf16, #tpu.memory_space<vmem>>, vector<1x8x72xbf16>
    %170 = vector.shape_cast %169 : vector<1x8x72xbf16> to vector<8x72xbf16>
    %cst_110 = arith.constant dense<0.000000e+00> : vector<8x512xf32>
    %171 = tpu.matmul %170, %168, %cst_110 {dimension_numbers = #tpu.dot_dimension_numbers<[1], [0], [0], [1], [0, 0, 1, 1], [], []>} : vector<8x72xbf16>, vector<72x512xbf16>, vector<8x512xf32> -> vector<8x512xf32>
    %c8_111 = arith.constant 8 : index
    %c0_112 = arith.constant 0 : index
    %c0_113 = arith.constant 0 : index
    %172 = vector.load %arg3[%c8_111, %c0_112, %c0_113] : memref<11x8x1xf32, #tpu.memory_space<vmem>>, vector<1x8x1xf32>
    %173 = vector.shape_cast %172 : vector<1x8x1xf32> to vector<8x1xf32>
    %174 = vector.broadcast %173 : vector<8x1xf32> to vector<8x512xf32>
    %175 = arith.addf %171, %174 : vector<8x512xf32>
    %cst_114 = arith.constant 2.000000e-01 : f32
    %176 = vector.broadcast %cst_114 : f32 to vector<8x512xf32>
    %177 = arith.mulf %176, %175 : vector<8x512xf32>
    %178 = arith.maximumf %175, %177 : vector<8x512xf32>
    %c1_i32_115 = arith.constant 1 : i32
    %179 = tpu.dynamic_rotate %178 by %c1_i32_115 dim 1 : vector<8x512xf32>, i32 -> vector<8x512xf32>
    %c511_i32_116 = arith.constant 511 : i32
    %180 = tpu.dynamic_rotate %178 by %c511_i32_116 dim 1 : vector<8x512xf32>, i32 -> vector<8x512xf32>
    %181 = tpu.concatenate %179, %178, %180 in 0 : vector<8x512xf32>, vector<8x512xf32>, vector<8x512xf32> -> vector<24x512xf32>
    %c16_i32_117 = arith.constant 16 : i32
    %182 = tpu.dynamic_rotate %181 by %c16_i32_117 dim 1 : vector<24x512xf32>, i32 -> vector<24x512xf32>
    %c496_i32_118 = arith.constant 496 : i32
    %183 = tpu.dynamic_rotate %181 by %c496_i32_118 dim 1 : vector<24x512xf32>, i32 -> vector<24x512xf32>
    %184 = tpu.concatenate %182, %181, %183 in 0 : vector<24x512xf32>, vector<24x512xf32>, vector<24x512xf32> -> vector<72x512xf32>
    %c0_119 = arith.constant 0 : index
    %c0_120 = arith.constant 0 : index
    %185 = vector.load %arg4[%c0_119, %c0_120] : memref<72x640xf32, #tpu.memory_space<vmem>>, vector<72x512xf32>
    %186 = arith.mulf %184, %185 : vector<72x512xf32>
    %187 = arith.truncf %186 : vector<72x512xf32> to vector<72x512xbf16>
    %c9 = arith.constant 9 : index
    %c0_121 = arith.constant 0 : index
    %c0_122 = arith.constant 0 : index
    %188 = vector.load %arg2[%c9, %c0_121, %c0_122] : memref<11x8x72xbf16, #tpu.memory_space<vmem>>, vector<1x8x72xbf16>
    %189 = vector.shape_cast %188 : vector<1x8x72xbf16> to vector<8x72xbf16>
    %cst_123 = arith.constant dense<0.000000e+00> : vector<8x512xf32>
    %190 = tpu.matmul %189, %187, %cst_123 {dimension_numbers = #tpu.dot_dimension_numbers<[1], [0], [0], [1], [0, 0, 1, 1], [], []>} : vector<8x72xbf16>, vector<72x512xbf16>, vector<8x512xf32> -> vector<8x512xf32>
    %c9_124 = arith.constant 9 : index
    %c0_125 = arith.constant 0 : index
    %c0_126 = arith.constant 0 : index
    %191 = vector.load %arg3[%c9_124, %c0_125, %c0_126] : memref<11x8x1xf32, #tpu.memory_space<vmem>>, vector<1x8x1xf32>
    %192 = vector.shape_cast %191 : vector<1x8x1xf32> to vector<8x1xf32>
    %193 = vector.broadcast %192 : vector<8x1xf32> to vector<8x512xf32>
    %194 = arith.addf %190, %193 : vector<8x512xf32>
    %cst_127 = arith.constant 2.000000e-01 : f32
    %195 = vector.broadcast %cst_127 : f32 to vector<8x512xf32>
    %196 = arith.mulf %195, %194 : vector<8x512xf32>
    %197 = arith.maximumf %194, %196 : vector<8x512xf32>
    %c10 = arith.constant 10 : index
    %c0_128 = arith.constant 0 : index
    %c0_129 = arith.constant 0 : index
    %198 = vector.load %arg2[%c10, %c0_128, %c0_129] : memref<11x8x72xbf16, #tpu.memory_space<vmem>>, vector<1x8x72xbf16>
    %199 = vector.shape_cast %198 : vector<1x8x72xbf16> to vector<8x72xbf16>
    %200 = vector.extract_strided_slice %199 {offsets = [0, 0], sizes = [8, 8], strides = [1, 1]} : vector<8x72xbf16> to vector<8x8xbf16>
    %201 = arith.truncf %197 : vector<8x512xf32> to vector<8x512xbf16>
    %cst_130 = arith.constant dense<0.000000e+00> : vector<8x512xf32>
    %202 = tpu.matmul %200, %201, %cst_130 {dimension_numbers = #tpu.dot_dimension_numbers<[1], [0], [0], [1], [0, 0, 1, 1], [], []>} : vector<8x8xbf16>, vector<8x512xbf16>, vector<8x512xf32> -> vector<8x512xf32>
    %c10_131 = arith.constant 10 : index
    %c0_132 = arith.constant 0 : index
    %c0_133 = arith.constant 0 : index
    %203 = vector.load %arg3[%c10_131, %c0_132, %c0_133] : memref<11x8x1xf32, #tpu.memory_space<vmem>>, vector<1x8x1xf32>
    %204 = vector.shape_cast %203 : vector<1x8x1xf32> to vector<8x1xf32>
    %205 = vector.broadcast %204 : vector<8x1xf32> to vector<8x512xf32>
    %206 = arith.addf %202, %205 : vector<8x512xf32>
    %207 = vector.extract_strided_slice %206 {offsets = [0, 0], sizes = [1, 512], strides = [1, 1]} : vector<8x512xf32> to vector<1x512xf32>
    %c0_134 = arith.constant 0 : index
    %c0_135 = arith.constant 0 : index
    %c0_136 = arith.constant 0 : index
    %208 = vector.load %arg7[%c0_134, %c0_135, %c0_136] : memref<1x1x512xf32, #tpu.memory_space<vmem>>, vector<1x1x512xf32>
    %209 = vector.shape_cast %208 : vector<1x1x512xf32> to vector<1x512xf32>
    %210 = vector.shape_cast %207 : vector<1x512xf32> to vector<1x1x512xf32>
    tpu.vector_store %arg7[%c0_134, %c0_135, %c0_136], %210 {strides = array<i32>} : memref<1x1x512xf32, #tpu.memory_space<vmem>>, vector<1x1x512xf32>,
    return
  }
  func.func @transform_0(%arg0: i32) -> (i32, i32, i32) {
    %c0_i32 = arith.constant 0 : i32
    %c0_i32_0 = arith.constant 0 : i32
    %c0_i32_1 = arith.constant 0 : i32
    return %arg0, %c0_i32, %c0_i32_0 : i32, i32, i32
  }
  func.func @transform_1(%arg0: i32) -> (i32, i32, i32) {
    %c0_i32 = arith.constant 0 : i32
    %c0_i32_0 = arith.constant 0 : i32
    %c0_i32_1 = arith.constant 0 : i32
    %c0_i32_2 = arith.constant 0 : i32
    return %c0_i32, %c0_i32_0, %c0_i32_1 : i32, i32, i32
  }
  func.func @transform_2(%arg0: i32) -> (i32, i32, i32) {
    %c0_i32 = arith.constant 0 : i32
    %c0_i32_0 = arith.constant 0 : i32
    %c0_i32_1 = arith.constant 0 : i32
    %c0_i32_2 = arith.constant 0 : i32
    return %c0_i32, %c0_i32_0, %c0_i32_1 : i32, i32, i32
  }
  func.func @transform_3(%arg0: i32) -> (i32, i32) {
    %c0_i32 = arith.constant 0 : i32
    %c0_i32_0 = arith.constant 0 : i32
    %c0_i32_1 = arith.constant 0 : i32
    return %c0_i32, %c0_i32_0 : i32, i32
  }
  func.func @transform_4(%arg0: i32) -> (i32, i32) {
    %c0_i32 = arith.constant 0 : i32
    %c0_i32_0 = arith.constant 0 : i32
    %c0_i32_1 = arith.constant 0 : i32
    return %c0_i32, %c0_i32_0 : i32, i32
  }
  func.func @transform_5(%arg0: i32) -> (i32, i32) {
    %c0_i32 = arith.constant 0 : i32
    %c0_i32_0 = arith.constant 0 : i32
    %c0_i32_1 = arith.constant 0 : i32
    return %c0_i32, %c0_i32_0 : i32, i32
  }
  func.func @transform_6(%arg0: i32) -> (i32, i32, i32) {
    %c0_i32 = arith.constant 0 : i32
    %c0_i32_0 = arith.constant 0 : i32
    %c0_i32_1 = arith.constant 0 : i32
    return %arg0, %c0_i32, %c0_i32_0 : i32, i32, i32
  }
}

</mosaic_0001>

<llo_original>
// kernel: forward.1
$region0: #{forward.1}
  #allocation0 [shape = 'u32[]', space=smem, size = 0x4, offset = 0x4, fixed_abs, tag = 'smem constant byte address 0x4 - core index']
  #allocation1 [shape = 'u32[144,128]{1,0:T(1,128)}', space=vmem, size = 0x12000, scoped, tag = 'internal scratch']
  %s0 = inlined_call_operand.vmem [shape: f32[2,8,512], index: 0, kind: input, shape index: {}]
  %s1 = inlined_call_operand.hbm [shape: bf16[11,8,72], index: 1, kind: input, shape index: {}]
  %s2 = inlined_call_operand.hbm [shape: f32[11,8,1], index: 2, kind: input, shape index: {}]
  %s3 = inlined_call_operand.vmem [shape: f32[72,640], index: 3, kind: input, shape index: {}]
  %s4 = inlined_call_operand.hbm [shape: bf16[512,128], index: 4, kind: input, shape index: {}]
  %s5 = inlined_call_operand.hbm [shape: bf16[128,512], index: 5, kind: input, shape index: {}]
  %s6 = inlined_call_operand.vmem [shape: f32[2,1,512], index: 6, kind: output, shape index: {}]
  %s7 = sld [smem:[#allocation0]]
  $region73: #{forward.1} parent=0
    _
  %s9 = ssub.s32 1, %s7
  %s10 = scalar_select 0, %s9, %s7
  $region1: #{forward.1} parent=0
    #allocation2 [shape = 'u8[22528]{0}', space=vmem, size = 0x5800, scoped, tag = 'input window, operand 1, single buffered']
    #allocation3 [shape = 's32[2]{0}', space=sflag, size = 0x8, scoped, tag = 'scoped memory for forward.1']
    #allocation4 [shape = 'u8[45056]{0}', space=vmem, size = 0xb000, scoped, tag = 'input window, operand 2, single buffered']
    #allocation5 [shape = 's32[1]{0}', space=sflag, size = 0x4, scoped, tag = 'scoped memory for forward.1']
    #allocation6 [shape = 'u8[131072]{0}', space=vmem, size = 0x20000, scoped, tag = 'input window, operand 4, single buffered']
    #allocation7 [shape = 'u8[131072]{0}', space=vmem, size = 0x20000, scoped, tag = 'input window, operand 5, single buffered']
    #allocation8 [shape = 's32[1]{0}', space=sflag, size = 0x4, scoped, tag = 'scoped memory for forward.1']
    %11 = vsyncpa [#allocation3], 0
    %12 = vsyncpa [#allocation5], 0
    %13 = vsyncpa [#allocation8], 0
    loop: start=0, step=1, limit=4
    $region2: #{forward.1} parent=1 // loop_pre_header
      _
    $region3: #{forward.1} parent=1 // loop_header
      %s15 = sphi 0, %s19
      %p16 = scmp.ge.s32.totalorder %s15, 4
      %s25 = sphi 0, %s27
      %s28 = sphi 0, %s25
      %s29 = sphi 0, %s28
      %s45 = sphi 0, %s29
      %s49 = sphi 0, %s49
      %s51 = sphi 0, %s49
      %s52 = sphi 0, %s51
      %s66 = sphi 0, %s52
      %s70 = sphi 0, %s70
      %s72 = sphi 0, %s70
      %s73 = sphi 0, %s72
      %s87 = sphi 0, %s73
      %s91 = sphi 0, %s91
      %s93 = sphi 0, %s91
      %s94 = sphi 0, %s93
      %s108 = sphi 0, %s94
      %s112 = sphi 0, %s112
      %s114 = sphi 0, %s112
      %s115 = sphi 0, %s114
      %s129 = sphi 0, %s115
      %s133 = sphi 0, %s133
      %s135 = sphi 0, %s133
      %s136 = sphi 0, %s135
      %s150 = sphi 0, %s136
      %s156 = sphi 0, %s158
      %s159 = sphi 0, %s156
      %s160 = sphi 0, %s159
      %s176 = sphi 0, %s160
    $region4: #{forward.1} parent=1 // loop_header_branch
      %18 = sbr.rel (%p16) target = $region8
    $region5: #{forward.1} parent=1 // loop_body
      %s20 = ssub.s32 %s15, 1
      %s21 = ssub.s32 %s15, 2
      %s22 = sadd.s32 %s15, 1
      %s23 = ssub.s32 %s15, %s22
      %p24 = scmp.eq.s32.totalorder %s23, 0
      %s26 = sadd.s32 %s25, 1
      %s27 = scalar_select %p24, %s25, %s26
      %p30 = pneg %p24
      %p31 = scmp.eq.s32.totalorder %s15, 1
      %p32 = por %p30, %p31
      %p33 = scmp.ne.s32.totalorder %s25, %s28
      %p34 = scmp.eq.s32.totalorder %s15, 0
      %p35 = por %p33, %p34
      %p36 = scmp.ne.s32.totalorder %s25, %s28
      %p37 = scmp.eq.s32.totalorder %s20, 1
      %p38 = por %p36, %p37
      %p39 = scmp.ne.s32.totalorder %s28, %s29
      %p40 = scmp.eq.s32.totalorder %s20, 0
      %p41 = por %p39, %p40
      %p42 = scmp.ne.s32.totalorder %s28, %s29
      %p43 = scmp.eq.s32.totalorder %s21, 1
      %p44 = por %p42, %p43
      %p46 = scmp.ne.s32.totalorder %s29, %s45
      %p47 = scmp.eq.s32.totalorder %s21, 0
      %p48 = por %p46, %p47
      %s50 = sadd.s32 %s49, 1
      %p53 = scmp.eq.s32.totalorder %s15, 1
      %p54 = scmp.ne.s32.totalorder %s49, %s51
      %p55 = scmp.eq.s32.totalorder %s15, 0
      %p56 = por %p54, %p55
      %p57 = scmp.ne.s32.totalorder %s49, %s51
      %p58 = scmp.eq.s32.totalorder %s20, 1
      %p59 = por %p57, %p58
      %p60 = scmp.ne.s32.totalorder %s51, %s52
      %p61 = scmp.eq.s32.totalorder %s20, 0
      %p62 = por %p60, %p61
      %p63 = scmp.ne.s32.totalorder %s51, %s52
      %p64 = scmp.eq.s32.totalorder %s21, 1
      %p65 = por %p63, %p64
      %p67 = scmp.ne.s32.totalorder %s52, %s66
      %p68 = scmp.eq.s32.totalorder %s21, 0
      %p69 = por %p67, %p68
      %s71 = sadd.s32 %s70, 1
      %p74 = scmp.eq.s32.totalorder %s15, 1
      %p75 = scmp.ne.s32.totalorder %s70, %s72
      %p76 = scmp.eq.s32.totalorder %s15, 0
      %p77 = por %p75, %p76
      %p78 = scmp.ne.s32.totalorder %s70, %s72
      %p79 = scmp.eq.s32.totalorder %s20, 1
      %p80 = por %p78, %p79
      %p81 = scmp.ne.s32.totalorder %s72, %s73
      %p82 = scmp.eq.s32.totalorder %s20, 0
      %p83 = por %p81, %p82
      %p84 = scmp.ne.s32.totalorder %s72, %s73
      %p85 = scmp.eq.s32.totalorder %s21, 1
      %p86 = por %p84, %p85
      %p88 = scmp.ne.s32.totalorder %s73, %s87
      %p89 = scmp.eq.s32.totalorder %s21, 0
      %p90 = por %p88, %p89
      %s92 = sadd.s32 %s91, 1
      %p95 = scmp.eq.s32.totalorder %s15, 1
      %p96 = scmp.ne.s32.totalorder %s91, %s93
      %p97 = scmp.eq.s32.totalorder %s15, 0
      %p98 = por %p96, %p97
      %p99 = scmp.ne.s32.totalorder %s91, %s93
      %p100 = scmp.eq.s32.totalorder %s20, 1
      %p101 = por %p99, %p100
      %p102 = scmp.ne.s32.totalorder %s93, %s94
      %p103 = scmp.eq.s32.totalorder %s20, 0
      %p104 = por %p102, %p103
      %p105 = scmp.ne.s32.totalorder %s93, %s94
      %p106 = scmp.eq.s32.totalorder %s21, 1
      %p107 = por %p105, %p106
      %p109 = scmp.ne.s32.totalorder %s94, %s108
      %p110 = scmp.eq.s32.totalorder %s21, 0
      %p111 = por %p109, %p110
      %s113 = sadd.s32 %s112, 1
      %p116 = scmp.eq.s32.totalorder %s15, 1
      %p117 = scmp.ne.s32.totalorder %s112, %s114
      %p118 = scmp.eq.s32.totalorder %s15, 0
      %p119 = por %p117, %p118
      %p120 = scmp.ne.s32.totalorder %s112, %s114
      %p121 = scmp.eq.s32.totalorder %s20, 1
      %p122 = por %p120, %p121
      %p123 = scmp.ne.s32.totalorder %s114, %s115
      %p124 = scmp.eq.s32.totalorder %s20, 0
      %p125 = por %p123, %p124
      %p126 = scmp.ne.s32.totalorder %s114, %s115
      %p127 = scmp.eq.s32.totalorder %s21, 1
      %p128 = por %p126, %p127
      %p130 = scmp.ne.s32.totalorder %s115, %s129
      %p131 = scmp.eq.s32.totalorder %s21, 0
      %p132 = por %p130, %p131
      %s134 = sadd.s32 %s133, 1
      %p137 = scmp.eq.s32.totalorder %s15, 1
      %p138 = scmp.ne.s32.totalorder %s133, %s135
      %p139 = scmp.eq.s32.totalorder %s15, 0
      %p140 = por %p138, %p139
      %p141 = scmp.ne.s32.totalorder %s133, %s135
      %p142 = scmp.eq.s32.totalorder %s20, 1
      %p143 = por %p141, %p142
      %p144 = scmp.ne.s32.totalorder %s135, %s136
      %p145 = scmp.eq.s32.totalorder %s20, 0
      %p146 = por %p144, %p145
      %p147 = scmp.ne.s32.totalorder %s135, %s136
      %p148 = scmp.eq.s32.totalorder %s21, 1
      %p149 = por %p147, %p148
      %p151 = scmp.ne.s32.totalorder %s136, %s150
      %p152 = scmp.eq.s32.totalorder %s21, 0
      %p153 = por %p151, %p152
      %s154 = ssub.s32 %s15, %s22
      %p155 = scmp.eq.s32.totalorder %s154, 0
      %s157 = sadd.s32 %s156, 1
      %s158 = scalar_select %p155, %s156, %s157
      %p161 = pneg %p155
      %p162 = scmp.eq.s32.totalorder %s15, 1
      %p163 = por %p161, %p162
      %p164 = scmp.ne.s32.totalorder %s156, %s159
      %p165 = scmp.eq.s32.totalorder %s15, 0
      %p166 = por %p164, %p165
      %p167 = scmp.ne.s32.totalorder %s156, %s159
      %p168 = scmp.eq.s32.totalorder %s20, 1
      %p169 = por %p167, %p168
      %p170 = scmp.ne.s32.totalorder %s159, %s160
      %p171 = scmp.eq.s32.totalorder %s20, 0
      %p172 = por %p170, %p171
      %p173 = scmp.ne.s32.totalorder %s159, %s160
      %p174 = scmp.eq.s32.totalorder %s21, 1
      %p175 = por %p173, %p174
      %p177 = scmp.ne.s32.totalorder %s160, %s176
      %p178 = scmp.eq.s32.totalorder %s21, 0
      %p179 = por %p177, %p178
      %p180 = scmp.le.s32.totalorder 1, %s15
      %p181 = scmp.lt.s32.totalorder %s15, 3
      %p182 = pnand %p180, %p181
      %p183 = pneg %p182
      // Predicated region
      $region9: #{forward.1} parent=5 // pred_check
        _
      $region10: #{forward.1} parent=5 // pred_check_branch
        %185 = sbr.rel (%p182) target = $region12
      $region11: #{forward.1} parent=5 // pred_region
        %s186 = ssub.s32 %s15, 1
        // Predicated region
        $region13: #{forward.1} parent=11 // pred_check
          %p187 = pneg %p62
        $region14: #{forward.1} parent=11 // pred_check_branch
          %189 = sbr.rel (%p187) target = $region16
        $region15: #{forward.1} parent=11 // pred_region
          %s191 = ssub.s32 704, 704
          %192 = vsyncadd [#allocation3], %s191
          %s193 = sshll.u32 [#allocation2], 4
          %s194 = int_to_ptr.vmem [resolvable:$true] %s193
          %199 = dma.hbm_to_vmem [thread:$0]  %s1, 704, %s194, [#allocation3], 64, 64, 4
        $region16: #{forward.1} parent=11 // pred_fallthru
          _
        // Predicated region
        $region17: #{forward.1} parent=11 // pred_check
          %p200 = pneg %p83
        $region18: #{forward.1} parent=11 // pred_check_branch
          %202 = sbr.rel (%p200) target = $region20
        $region19: #{forward.1} parent=11 // pred_region
          %s204 = ssub.s32 1408, 1408
          %205 = vsyncadd [#allocation5], %s204
          %s206 = sshll.u32 [#allocation4], 4
          %s207 = int_to_ptr.vmem [resolvable:$true] %s206
          %212 = dma.hbm_to_vmem [thread:$0]  %s2, 1408, %s207, [#allocation5], 128, 128, 8
        $region20: #{forward.1} parent=11 // pred_fallthru
          _
        // Predicated region
        $region21: #{forward.1} parent=11 // pred_check
          %p213 = pneg %p104
        $region22: #{forward.1} parent=11 // pred_check_branch
          %215 = sbr.rel (%p213) target = $region24
        $region23: #{forward.1} parent=11 // pred_region
          _
        $region24: #{forward.1} parent=11 // pred_fallthru
          _
        // Predicated region
        $region25: #{forward.1} parent=11 // pred_check
          %p216 = pneg %p125
        $region26: #{forward.1} parent=11 // pred_check_branch
          %218 = sbr.rel (%p216) target = $region28
        $region27: #{forward.1} parent=11 // pred_region
          %s220 = ssub.s32 4096, 4096
          %221 = vsyncadd [#allocation5], %s220
          %s222 = sshll.u32 [#allocation6], 4
          %s223 = int_to_ptr.vmem [resolvable:$true] %s222
          %228 = dma.hbm_to_vmem [thread:$0]  %s4, 4096, %s223, [#allocation5], 64, 64, 4
        $region28: #{forward.1} parent=11 // pred_fallthru
          _
        // Predicated region
        $region29: #{forward.1} parent=11 // pred_check
          %p229 = pneg %p146
        $region30: #{forward.1} parent=11 // pred_check_branch
          %231 = sbr.rel (%p229) target = $region32
        $region31: #{forward.1} parent=11 // pred_region
          %s233 = ssub.s32 4096, 4096
          %234 = vsyncadd [#allocation8], %s233
          %s235 = sshll.u32 [#allocation7], 4
          %s236 = int_to_ptr.vmem [resolvable:$true] %s235
          %241 = dma.hbm_to_vmem [thread:$0]  %s5, 4096, %s236, [#allocation8], 256, 256, 16
        $region32: #{forward.1} parent=11 // pred_fallthru
          _
      $region12: #{forward.1} parent=5 // pred_fallthru
        _
      %p242 = scmp.lt.s32.totalorder %s15, 2
      // Predicated region
      $region33: #{forward.1} parent=5 // pred_check
        %p243 = pneg %p242
      $region34: #{forward.1} parent=5 // pred_check_branch
        %245 = sbr.rel (%p243) target = $region36
      $region35: #{forward.1} parent=5 // pred_region
        // Predicated region
        $region37: #{forward.1} parent=35 // pred_check
          %p246 = pneg %p35
        $region38: #{forward.1} parent=35 // pred_check_branch
          %248 = sbr.rel (%p246) target = $region40
        $region39: #{forward.1} parent=35 // pred_region
          %p249 = scmp.lt.s32.totalorder %s15, 1
          %s250 = scalar_select %p249, %s15, 1
          %s251 = smul.addr %s250, 4
          %s252 = smul.addr %s251, 8
          %s253 = scalar_lea.vmem %s0, %s252
        $region40: #{forward.1} parent=35 // pred_fallthru
          _
      $region36: #{forward.1} parent=5 // pred_fallthru
        _
      %p254 = scmp.le.s32.totalorder 1, %s15
      %p255 = scmp.lt.s32.totalorder %s15, 3
      %p256 = pnand %p254, %p255
      %p257 = pneg %p256
      // Predicated region
      $region41: #{forward.1} parent=5 // pred_check
        _
      $region42: #{forward.1} parent=5 // pred_check_branch
        %259 = sbr.rel (%p256) target = $region44
      $region43: #{forward.1} parent=5 // pred_region
        %s260 = ssub.s32 %s15, 1
        // Predicated region
        $region45: #{forward.1} parent=43 // pred_check
          %p261 = pneg %p62
        $region46: #{forward.1} parent=43 // pred_check_branch
          %263 = sbr.rel (%p261) target = $region48
        $region47: #{forward.1} parent=43 // pred_region
          %264 = dma.done [#allocation3], 704
        $region48: #{forward.1} parent=43 // pred_fallthru
          _
        // Predicated region
        $region49: #{forward.1} parent=43 // pred_check
          %p265 = pneg %p83
        $region50: #{forward.1} parent=43 // pred_check_branch
          %267 = sbr.rel (%p265) target = $region52
        $region51: #{forward.1} parent=43 // pred_region
          %268 = dma.done [#allocation5], 1408
        $region52: #{forward.1} parent=43 // pred_fallthru
          _
        // Predicated region
        $region53: #{forward.1} parent=43 // pred_check
          %p269 = pneg %p125
        $region54: #{forward.1} parent=43 // pred_check_branch
          %271 = sbr.rel (%p269) target = $region56
        $region55: #{forward.1} parent=43 // pred_region
          %272 = dma.done [#allocation5], 4096
        $region56: #{forward.1} parent=43 // pred_fallthru
          _
        // Predicated region
        $region57: #{forward.1} parent=43 // pred_check
          %p273 = pneg %p146
        $region58: #{forward.1} parent=43 // pred_check_branch
          %275 = sbr.rel (%p273) target = $region60
        $region59: #{forward.1} parent=43 // pred_region
          %276 = dma.done [#allocation8], 4096
        $region60: #{forward.1} parent=43 // pred_fallthru
          _
        %p277 = scmp.lt.s32.totalorder %s20, 1
        %s278 = scalar_select %p277, %s20, 1
        %s279 = smul.addr %s278, 4
        %s280 = smul.addr %s279, 8
        %s281 = scalar_lea.vmem %s0, %s280
        %p282 = pneg %p41
        %p283 = pneg %p38
        %p284 = pneg %p62
        %p285 = pneg %p59
        %p286 = pneg %p83
        %p287 = pneg %p80
        %p288 = pneg %p104
        %p289 = pneg %p101
        %p290 = pneg %p125
        %p291 = pneg %p122
        %p292 = pneg %p146
        %p293 = pneg %p143
        %p294 = pneg %p172
        %p295 = pneg %p169
        %p296 = scmp.lt.s32.totalorder %s20, 1
        %s297 = scalar_select %p296, %s20, 1
        %s298 = smul.addr %s297, 4
        %s299 = scalar_lea.vmem %s6, %s298
        %p300 = scmp.lt.s32.totalorder %s20, 1
        %s301 = scalar_select %p300, %s20, 1
        %s302 = smul.addr %s301, 4
        %s303 = smul.addr %s302, 8
        %s304 = scalar_lea.vmem %s0, %s303
        %p305 = scmp.lt.s32.totalorder %s20, 1
        %s306 = scalar_select %p305, %s20, 1
        %s307 = smul.addr %s306, 4
        %s308 = scalar_lea.vmem %s6, %s307
        %v310 = vld [vmem:[%s304] sm:$0xff]
        %v311 = vld [vmem:[%s304 + $0x8] sm:$0xff]
        %v312 = vld [vmem:[%s304 + $0x10] sm:$0xff]
        %v313 = vld [vmem:[%s304 + $0x18] sm:$0xff]
        %314 = vrot.lane.b32.xlu0 %v310, 1
        %v315 = vpop.permute.xlu0 %314
        %316 = vrot.lane.b32.xlu0 %v311, 1
        %v317 = vpop.permute.xlu0 %316
        %318 = vrot.lane.b32.xlu0 %v312, 1
        %v319 = vpop.permute.xlu0 %318
        %320 = vrot.lane.b32.xlu0 %v313, 1
        %v321 = vpop.permute.xlu0 %320
        %v322 = vlaneseq
        %v323 = vand.u32 %v322, 127
        %vm324 = vcmp.lt.s32.totalorder %v323, 1
        %v325 = vsel %vm324, %v319, %v321
        %v326 = vsel %vm324, %v317, %v319
        %v327 = vsel %vm324, %v315, %v317
        %v328 = vsel %vm324, %v321, %v315
        %329 = vrot.lane.b32.xlu0 %v310, 127
        %v330 = vpop.permute.xlu0 %329
        %331 = vrot.lane.b32.xlu0 %v311, 127
        %v332 = vpop.permute.xlu0 %331
        %333 = vrot.lane.b32.xlu0 %v312, 127
        %v334 = vpop.permute.xlu0 %333
        %335 = vrot.lane.b32.xlu0 %v313, 127
        %v336 = vpop.permute.xlu0 %335
        %vm337 = vcmp.lt.s32.totalorder %v323, 127
        %v338 = vsel %vm337, %v334, %v336
        %v339 = vsel %vm337, %v332, %v334
        %v340 = vsel %vm337, %v330, %v332
        %v341 = vsel %vm337, %v336, %v330
        %342 = vrot.lane.b32.xlu0 %v328, 16
        %v343 = vpop.permute.xlu0 %342
        %344 = vrot.lane.b32.xlu0 %v310, 16
        %v345 = vpop.permute.xlu0 %344
        %346 = vrot.lane.b32.xlu0 %v340, 16
        %v347 = vpop.permute.xlu0 %346
        %348 = vrot.lane.b32.xlu0 %v327, 16
        %v349 = vpop.permute.xlu0 %348
        %350 = vrot.lane.b32.xlu0 %v311, 16
        %v351 = vpop.permute.xlu0 %350
        %352 = vrot.lane.b32.xlu0 %v339, 16
        %v353 = vpop.permute.xlu0 %352
        %354 = vrot.lane.b32.xlu0 %v326, 16
        %v355 = vpop.permute.xlu0 %354
        %356 = vrot.lane.b32.xlu0 %v312, 16
        %v357 = vpop.permute.xlu0 %356
        %358 = vrot.lane.b32.xlu0 %v338, 16
        %v359 = vpop.permute.xlu0 %358
        %360 = vrot.lane.b32.xlu0 %v325, 16
        %v361 = vpop.permute.xlu0 %360
        %362 = vrot.lane.b32.xlu0 %v313, 16
        %v363 = vpop.permute.xlu0 %362
        %364 = vrot.lane.b32.xlu0 %v341, 16
        %v365 = vpop.permute.xlu0 %364
        %vm366 = vcmp.lt.s32.totalorder %v323, 16
        %v367 = vsel %vm366, %v355, %v361
        %v368 = vsel %vm366, %v357, %v363
        %v369 = vsel %vm366, %v359, %v365
        %v370 = vsel %vm366, %v349, %v355
        %v371 = vsel %vm366, %v351, %v357
        %v372 = vsel %vm366, %v353, %v359
        %v373 = vsel %vm366, %v343, %v349
        %v374 = vsel %vm366, %v345, %v351
        %v375 = vsel %vm366, %v347, %v353
        %v376 = vsel %vm366, %v361, %v343
        %v377 = vsel %vm366, %v363, %v345
        %v378 = vsel %vm366, %v365, %v347
        %379 = vrot.lane.b32.xlu0 %v328, 112
        %v380 = vpop.permute.xlu0 %379
        %381 = vrot.lane.b32.xlu0 %v310, 112
        %v382 = vpop.permute.xlu0 %381
        %383 = vrot.lane.b32.xlu0 %v340, 112
        %v384 = vpop.permute.xlu0 %383
        %385 = vrot.lane.b32.xlu0 %v327, 112
        %v386 = vpop.permute.xlu0 %385
        %387 = vrot.lane.b32.xlu0 %v311, 112
        %v388 = vpop.permute.xlu0 %387
        %389 = vrot.lane.b32.xlu0 %v339, 112
        %v390 = vpop.permute.xlu0 %389
        %391 = vrot.lane.b32.xlu0 %v326, 112
        %v392 = vpop.permute.xlu0 %391
        %393 = vrot.lane.b32.xlu0 %v312, 112
        %v394 = vpop.permute.xlu0 %393
        %395 = vrot.lane.b32.xlu0 %v338, 112
        %v396 = vpop.permute.xlu0 %395
        %397 = vrot.lane.b32.xlu0 %v325, 112
        %v398 = vpop.permute.xlu0 %397
        %399 = vrot.lane.b32.xlu0 %v313, 112
        %v400 = vpop.permute.xlu0 %399
        %401 = vrot.lane.b32.xlu0 %v341, 112
        %v402 = vpop.permute.xlu0 %401
        %vm403 = vcmp.lt.s32.totalorder %v323, 112
        %v404 = vsel %vm403, %v392, %v398
        %v405 = vsel %vm403, %v394, %v400
        %v406 = vsel %vm403, %v396, %v402
        %v407 = vsel %vm403, %v386, %v392
        %v408 = vsel %vm403, %v388, %v394
        %v409 = vsel %vm403, %v390, %v396
        %v410 = vsel %vm403, %v380, %v386
        %v411 = vsel %vm403, %v382, %v388
        %v412 = vsel %vm403, %v384, %v390
        %v413 = vsel %vm403, %v398, %v380
        %v414 = vsel %vm403, %v400, %v382
        %v415 = vsel %vm403, %v402, %v384
        %v416 = vld [vmem:[%s3] sm:$0xff]
        %v417 = vld [vmem:[%s3 + $0x8] sm:$0xff]
        %v418 = vld [vmem:[%s3 + $0x10] sm:$0xff]
        %v419 = vld [vmem:[%s3 + $0x18] sm:$0xff]
        %v420 = vld [vmem:[%s3 + $0x28] sm:$0xff]
        %v421 = vld [vmem:[%s3 + $0x30] sm:$0xff]
        %v422 = vld [vmem:[%s3 + $0x38] sm:$0xff]
        %v423 = vld [vmem:[%s3 + $0x40] sm:$0xff]
        %v424 = vld [vmem:[%s3 + $0x50] sm:$0xff]
        %v425 = vld [vmem:[%s3 + $0x58] sm:$0xff]
        %v426 = vld [vmem:[%s3 + $0x60] sm:$0xff]
        %v427 = vld [vmem:[%s3 + $0x68] sm:$0xff]
        %v428 = vld [vmem:[%s3 + $0x78] sm:$0xff]
        %v429 = vld [vmem:[%s3 + $0x80] sm:$0xff]
        %v430 = vld [vmem:[%s3 + $0x88] sm:$0xff]
        %v431 = vld [vmem:[%s3 + $0x90] sm:$0xff]
        %v432 = vld [vmem:[%s3 + $0xa0] sm:$0xff]
        %v433 = vld [vmem:[%s3 + $0xa8] sm:$0xff]
        %v434 = vld [vmem:[%s3 + $0xb0] sm:$0xff]
        %v435 = vld [vmem:[%s3 + $0xb8] sm:$0xff]
        %v436 = vld [vmem:[%s3 + $0xc8] sm:$0xff]
        %v437 = vld [vmem:[%s3 + $0xd0] sm:$0xff]
        %v438 = vld [vmem:[%s3 + $0xd8] sm:$0xff]
        %v439 = vld [vmem:[%s3 + $0xe0] sm:$0xff]
        %v440 = vld [vmem:[%s3 + $0xf0] sm:$0xff]
        %v441 = vld [vmem:[%s3 + $0xf8] sm:$0xff]
        %v442 = vld [vmem:[%s3 + $0x100] sm:$0xff]
        %v443 = vld [vmem:[%s3 + $0x108] sm:$0xff]
        %v444 = vld [vmem:[%s3 + $0x118] sm:$0xff]
        %v445 = vld [vmem:[%s3 + $0x120] sm:$0xff]
        %v446 = vld [vmem:[%s3 + $0x128] sm:$0xff]
        %v447 = vld [vmem:[%s3 + $0x130] sm:$0xff]
        %v448 = vld [vmem:[%s3 + $0x140] sm:$0xff]
        %v449 = vld [vmem:[%s3 + $0x148] sm:$0xff]
        %v450 = vld [vmem:[%s3 + $0x150] sm:$0xff]
        %v451 = vld [vmem:[%s3 + $0x158] sm:$0xff]
        %v452 = vmul.f32 %v376, %v416
        %v453 = vmul.f32 %v373, %v417
        %v454 = vmul.f32 %v370, %v418
        %v455 = vmul.f32 %v367, %v419
        %v456 = vmul.f32 %v377, %v420
        %v457 = vmul.f32 %v374, %v421
        %v458 = vmul.f32 %v371, %v422
        %v459 = vmul.f32 %v368, %v423
        %v460 = vmul.f32 %v378, %v424
        %v461 = vmul.f32 %v375, %v425
        %v462 = vmul.f32 %v372, %v426
        %v463 = vmul.f32 %v369, %v427
        %v464 = vmul.f32 %v328, %v428
        %v465 = vmul.f32 %v327, %v429
        %v466 = vmul.f32 %v326, %v430
        %v467 = vmul.f32 %v325, %v431
        %v468 = vmul.f32 %v310, %v432
        %v469 = vmul.f32 %v311, %v433
        %v470 = vmul.f32 %v312, %v434
        %v471 = vmul.f32 %v313, %v435
        %v472 = vmul.f32 %v340, %v436
        %v473 = vmul.f32 %v339, %v437
        %v474 = vmul.f32 %v338, %v438
        %v475 = vmul.f32 %v341, %v439
        %v476 = vmul.f32 %v410, %v440
        %v477 = vmul.f32 %v407, %v441
        %v478 = vmul.f32 %v404, %v442
        %v479 = vmul.f32 %v413, %v443
        %v480 = vmul.f32 %v411, %v444
        %v481 = vmul.f32 %v408, %v445
        %v482 = vmul.f32 %v405, %v446
        %v483 = vmul.f32 %v414, %v447
        %v484 = vmul.f32 %v412, %v448
        %v485 = vmul.f32 %v409, %v449
        %v486 = vmul.f32 %v406, %v450
        %v487 = vmul.f32 %v415, %v451
        %v488 = vpack.c.bf16 %v456, %v452
        %v489 = vpack.c.bf16 %v457, %v453
        %v490 = vpack.c.bf16 %v458, %v454
        %v491 = vpack.c.bf16 %v459, %v455
        %v492 = vpack.c.bf16 %v464, %v460
        %v493 = vpack.c.bf16 %v465, %v461
        %v494 = vpack.c.bf16 %v466, %v462
        %v495 = vpack.c.bf16 %v467, %v463
        %v496 = vpack.c.bf16 %v472, %v468
        %v497 = vpack.c.bf16 %v473, %v469
        %v498 = vpack.c.bf16 %v474, %v470
        %v499 = vpack.c.bf16 %v475, %v471
        %v500 = vpack.c.bf16 %v480, %v476
        %v501 = vpack.c.bf16 %v481, %v477
        %v502 = vpack.c.bf16 %v482, %v478
        %v503 = vpack.c.bf16 %v483, %v479
        %v504 = vpack.c.bf16 %v484, %v484
        %v505 = vpack.c.bf16 %v485, %v485
        %v506 = vpack.c.bf16 %v486, %v486
        %v507 = vpack.c.bf16 %v487, %v487
        %v508 = vld [vmem:[#allocation2] sm:$0xf]
        %v509 = vld [vmem:[#allocation4] sm:$0xff]
        %511 = vset.pattern.permute.xlu0 0
        %512 = vperm.xlu0 %511, %v509
        %v513 = vpop.permute.xlu0 %512
        %vm515 = vcmask 588800
        %v517 = vsel %vm515, %v508, 0
        %vm519 = vcmask 1043456
        %v521 = vsel %vm519, %v504, 0
        %v524 = vsel %vm519, %v505, 0
        %v527 = vsel %vm519, %v506, 0
        %v530 = vsel %vm519, %v507, 0
        %532 = vmatprep.subr.bf16.mxu0 0
        %533 = vmatpush1.bf16.msra.mxu0 0
        %534 = vmatprep.subr.bf16.mxu0 0
        %535 = vmatpush1.bf16.msra.mxu0 0
        %536 = vmatprep.subr.bf16.mxu0 0
        %537 = vmatpush1.bf16.msra.mxu0 0
        %538 = vmatprep.subr.bf16.mxu0 %v524
        %539 = vmatpush1.bf16.msra.mxu0 %v521
        %540 = vmatprep.subr.bf16.mxu0 %v501
        %541 = vmatpush1.bf16.msra.mxu0 %v500
        %542 = vmatprep.subr.bf16.mxu0 %v497
        %543 = vmatpush1.bf16.msra.mxu0 %v496
        %544 = vmatprep.subr.bf16.mxu0 %v493
        %545 = vmatpush1.bf16.msra.mxu0 %v492
        %546 = vmatprep.subr.bf16.mxu0 %v489
        %547 = vmatpush1.bf16.msra.mxu0 %v488
        %548 = vmatprep.subr.bf16.mxu0 0
        %549 = vmatpush2.bf16.msra.mxu0 0
        %550 = vmatprep.subr.bf16.mxu0 0
        %551 = vmatpush2.bf16.msra.mxu0 0
        %552 = vmatprep.subr.bf16.mxu0 0
        %553 = vmatpush2.bf16.msra.mxu0 0
        %554 = vmatprep.subr.bf16.mxu0 0
        %555 = vmatpush2.bf16.msra.mxu0 0
        %556 = vmatprep.subr.bf16.mxu0 0
        %557 = vmatpush2.bf16.msra.mxu0 0
        %558 = vmatprep.subr.bf16.mxu0 0
        %559 = vmatpush2.bf16.msra.mxu0 0
        %560 = vmatprep.subr.bf16.mxu0 0
        %561 = vmatpush2.bf16.msra.mxu0 0
        %562 = vmatprep.subr.bf16.mxu0 0
        %563 = vmatpush2.bf16.msra.mxu0 0
        %564 = vmatprep.mubr.bf16.mxu0 0
        %565 = vmatmul.mubr.bf16.gmra.mxu0 %v517
        %v566 = vpop.f32.mrf.mxu0
        %v567 = vadd.f32 %v513, %v566
        %v568 = vpop.f32.mrf.mxu0
        %v569 = vadd.f32 %v513, %v568
        %v570 = vpop.f32.mrf.mxu0
        %v571 = vpop.f32.mrf.mxu0
        %572 = vdwg.mxu0
        %573 = vmatprep.subr.bf16.mxu0 0
        %574 = vmatpush1.bf16.msra.mxu0 0
        %575 = vmatprep.subr.bf16.mxu0 0
        %576 = vmatpush1.bf16.msra.mxu0 0
        %577 = vmatprep.subr.bf16.mxu0 0
        %578 = vmatpush1.bf16.msra.mxu0 0
        %579 = vmatprep.subr.bf16.mxu0 %v530
        %580 = vmatpush1.bf16.msra.mxu0 %v527
        %581 = vmatprep.subr.bf16.mxu0 %v503
        %582 = vmatpush1.bf16.msra.mxu0 %v502
        %583 = vmatprep.subr.bf16.mxu0 %v499
        %584 = vmatpush1.bf16.msra.mxu0 %v498
        %585 = vmatprep.subr.bf16.mxu0 %v495
        %586 = vmatpush1.bf16.msra.mxu0 %v494
        %587 = vmatprep.subr.bf16.mxu0 %v491
        %588 = vmatpush1.bf16.msra.mxu0 %v490
        %589 = vmatprep.subr.bf16.mxu0 0
        %590 = vmatpush2.bf16.msra.mxu0 0
        %591 = vmatprep.subr.bf16.mxu0 0
        %592 = vmatpush2.bf16.msra.mxu0 0
        %593 = vmatprep.subr.bf16.mxu0 0
        %594 = vmatpush2.bf16.msra.mxu0 0
        %595 = vmatprep.subr.bf16.mxu0 0
        %596 = vmatpush2.bf16.msra.mxu0 0
        %597 = vmatprep.subr.bf16.mxu0 0
        %598 = vmatpush2.bf16.msra.mxu0 0
        %599 = vmatprep.subr.bf16.mxu0 0
        %600 = vmatpush2.bf16.msra.mxu0 0
        %601 = vmatprep.subr.bf16.mxu0 0
        %602 = vmatpush2.bf16.msra.mxu0 0
        %603 = vmatprep.subr.bf16.mxu0 0
        %604 = vmatpush2.bf16.msra.mxu0 0
        %605 = vmatprep.mubr.bf16.mxu0 0
        %606 = vmatmul.mubr.bf16.gmra.mxu0 %v517
        %v607 = vpop.f32.mrf.mxu0
        %v608 = vadd.f32 %v513, %v607
        %v609 = vpop.f32.mrf.mxu0
        %v610 = vadd.f32 %v513, %v609
        %v611 = vpop.f32.mrf.mxu0
        %v612 = vpop.f32.mrf.mxu0
        %613 = vdwg.mxu0
        %v614 = vmul.f32 %v567, 0.2
        %v615 = vmul.f32 %v569, 0.2
        %v616 = vmul.f32 %v608, 0.2
        %v617 = vmul.f32 %v610, 0.2
        %v618 = vmax.f32 %v567, %v614
        %v619 = vmax.f32 %v569, %v615
        %v620 = vmax.f32 %v608, %v616
        %v621 = vmax.f32 %v610, %v617
        %622 = vrot.lane.b32.xlu0 %v618, 1
        %v623 = vpop.permute.xlu0 %622
        %624 = vrot.lane.b32.xlu0 %v619, 1
        %v625 = vpop.permute.xlu0 %624
        %626 = vrot.lane.b32.xlu0 %v620, 1
        %v627 = vpop.permute.xlu0 %626
        %628 = vrot.lane.b32.xlu0 %v621, 1
        %v629 = vpop.permute.xlu0 %628
        %v630 = vsel %vm324, %v627, %v629
        %v631 = vsel %vm324, %v625, %v627
        %v632 = vsel %vm324, %v623, %v625
        %v633 = vsel %vm324, %v629, %v623
        %634 = vrot.lane.b32.xlu0 %v618, 127
        %v635 = vpop.permute.xlu0 %634
        %636 = vrot.lane.b32.xlu0 %v619, 127
        %v637 = vpop.permute.xlu0 %636
        %638 = vrot.lane.b32.xlu0 %v620, 127
        %v639 = vpop.permute.xlu0 %638
        %640 = vrot.lane.b32.xlu0 %v621, 127
        %v641 = vpop.permute.xlu0 %640
        %v642 = vsel %vm337, %v639, %v641
        %v643 = vsel %vm337, %v637, %v639
        %v644 = vsel %vm337, %v635, %v637
        %v645 = vsel %vm337, %v641, %v635
        %646 = vrot.lane.b32.xlu0 %v633, 16
        %v647 = vpop.permute.xlu0 %646
        %648 = vrot.lane.b32.xlu0 %v618, 16
        %v649 = vpop.permute.xlu0 %648
        %650 = vrot.lane.b32.xlu0 %v644, 16
        %v651 = vpop.permute.xlu0 %650
        %652 = vrot.lane.b32.xlu0 %v632, 16
        %v653 = vpop.permute.xlu0 %652
        %654 = vrot.lane.b32.xlu0 %v619, 16
        %v655 = vpop.permute.xlu0 %654
        %656 = vrot.lane.b32.xlu0 %v643, 16
        %v657 = vpop.permute.xlu0 %656
        %658 = vrot.lane.b32.xlu0 %v631, 16
        %v659 = vpop.permute.xlu0 %658
        %660 = vrot.lane.b32.xlu0 %v620, 16
        %v661 = vpop.permute.xlu0 %660
        %662 = vrot.lane.b32.xlu0 %v642, 16
        %v663 = vpop.permute.xlu0 %662
        %664 = vrot.lane.b32.xlu0 %v630, 16
        %v665 = vpop.permute.xlu0 %664
        %666 = vrot.lane.b32.xlu0 %v621, 16
        %v667 = vpop.permute.xlu0 %666
        %668 = vrot.lane.b32.xlu0 %v645, 16
        %v669 = vpop.permute.xlu0 %668
        %v670 = vsel %vm366, %v659, %v665
        %v671 = vsel %vm366, %v661, %v667
        %v672 = vsel %vm366, %v663, %v669
        %v673 = vsel %vm366, %v653, %v659
        %v674 = vsel %vm366, %v655, %v661
        %v675 = vsel %vm366, %v657, %v663
        %v676 = vsel %vm366, %v647, %v653
        %v677 = vsel %vm366, %v649, %v655
        %v678 = vsel %vm366, %v651, %v657
        %v679 = vsel %vm366, %v665, %v647
        %v680 = vsel %vm366, %v667, %v649
        %v681 = vsel %vm366, %v669, %v651
        %682 = vrot.lane.b32.xlu0 %v633, 112
        %v683 = vpop.permute.xlu0 %682
        %684 = vrot.lane.b32.xlu0 %v618, 112
        %v685 = vpop.permute.xlu0 %684
        %686 = vrot.lane.b32.xlu0 %v644, 112
        %v687 = vpop.permute.xlu0 %686
        %688 = vrot.lane.b32.xlu0 %v632, 112
        %v689 = vpop.permute.xlu0 %688
        %690 = vrot.lane.b32.xlu0 %v619, 112
        %v691 = vpop.permute.xlu0 %690
        %692 = vrot.lane.b32.xlu0 %v643, 112
        %v693 = vpop.permute.xlu0 %692
        %694 = vrot.lane.b32.xlu0 %v631, 112
        %v695 = vpop.permute.xlu0 %694
        %696 = vrot.lane.b32.xlu0 %v620, 112
        %v697 = vpop.permute.xlu0 %696
        %698 = vrot.lane.b32.xlu0 %v642, 112
        %v699 = vpop.permute.xlu0 %698
        %700 = vrot.lane.b32.xlu0 %v630, 112
        %v701 = vpop.permute.xlu0 %700
        %702 = vrot.lane.b32.xlu0 %v621, 112
        %v703 = vpop.permute.xlu0 %702
        %704 = vrot.lane.b32.xlu0 %v645, 112
        %v705 = vpop.permute.xlu0 %704
        %v706 = vsel %vm403, %v695, %v701
        %v707 = vsel %vm403, %v697, %v703
        %v708 = vsel %vm403, %v699, %v705
        %v709 = vsel %vm403, %v689, %v695
        %v710 = vsel %vm403, %v691, %v697
        %v711 = vsel %vm403, %v693, %v699
        %v712 = vsel %vm403, %v683, %v689
        %v713 = vsel %vm403, %v685, %v691
        %v714 = vsel %vm403, %v687, %v693
        %v715 = vsel %vm403, %v701, %v683
        %v716 = vsel %vm403, %v703, %v685
        %v717 = vsel %vm403, %v705, %v687
        %v718 = vmul.f32 %v679, %v416
        %v719 = vmul.f32 %v676, %v417
        %v720 = vmul.f32 %v673, %v418
        %v721 = vmul.f32 %v670, %v419
        %v722 = vmul.f32 %v680, %v420
        %v723 = vmul.f32 %v677, %v421
        %v724 = vmul.f32 %v674, %v422
        %v725 = vmul.f32 %v671, %v423
        %v726 = vmul.f32 %v681, %v424
        %v727 = vmul.f32 %v678, %v425
        %v728 = vmul.f32 %v675, %v426
        %v729 = vmul.f32 %v672, %v427
        %v730 = vmul.f32 %v633, %v428
        %v731 = vmul.f32 %v632, %v429
        %v732 = vmul.f32 %v631, %v430
        %v733 = vmul.f32 %v630, %v431
        %v734 = vmul.f32 %v618, %v432
        %v735 = vmul.f32 %v619, %v433
        %v736 = vmul.f32 %v620, %v434
        %v737 = vmul.f32 %v621, %v435
        %v738 = vmul.f32 %v644, %v436
        %v739 = vmul.f32 %v643, %v437
        %v740 = vmul.f32 %v642, %v438
        %v741 = vmul.f32 %v645, %v439
        %v742 = vmul.f32 %v712, %v440
        %v743 = vmul.f32 %v709, %v441
        %v744 = vmul.f32 %v706, %v442
        %v745 = vmul.f32 %v715, %v443
        %v746 = vmul.f32 %v713, %v444
        %v747 = vmul.f32 %v710, %v445
        %v748 = vmul.f32 %v707, %v446
        %v749 = vmul.f32 %v716, %v447
        %v750 = vmul.f32 %v714, %v448
        %v751 = vmul.f32 %v711, %v449
        %v752 = vmul.f32 %v708, %v450
        %v753 = vmul.f32 %v717, %v451
        %v754 = vpack.c.bf16 %v722, %v718
        %v755 = vpack.c.bf16 %v723, %v719
        %v756 = vpack.c.bf16 %v724, %v720
        %v757 = vpack.c.bf16 %v725, %v721
        %v758 = vpack.c.bf16 %v730, %v726
        %v759 = vpack.c.bf16 %v731, %v727
        %v760 = vpack.c.bf16 %v732, %v728
        %v761 = vpack.c.bf16 %v733, %v729
        %v762 = vpack.c.bf16 %v738, %v734
        %v763 = vpack.c.bf16 %v739, %v735
        %v764 = vpack.c.bf16 %v740, %v736
        %v765 = vpack.c.bf16 %v741, %v737
        %v766 = vpack.c.bf16 %v746, %v742
        %v767 = vpack.c.bf16 %v747, %v743
        %v768 = vpack.c.bf16 %v748, %v744
        %v769 = vpack.c.bf16 %v749, %v745
        %v770 = vpack.c.bf16 %v750, %v750
        %v771 = vpack.c.bf16 %v751, %v751
        %v772 = vpack.c.bf16 %v752, %v752
        %v773 = vpack.c.bf16 %v753, %v753
        %s774 = scalar_lea.vmem [#allocation2], 4
        %v775 = vld [vmem:[%s774] sm:$0xf]
        %s776 = scalar_lea.vmem [#allocation4], 8
        %v777 = vld [vmem:[%s776] sm:$0xff]
        %779 = vset.pattern.permute.xlu0 0
        %780 = vperm.xlu0 %779, %v777
        %v781 = vpop.permute.xlu0 %780
        %v784 = vsel %vm515, %v775, 0
        %v787 = vsel %vm519, %v770, 0
        %v790 = vsel %vm519, %v771, 0
        %v793 = vsel %vm519, %v772, 0
        %v796 = vsel %vm519, %v773, 0
        %798 = vmatprep.subr.bf16.mxu0 0
        %799 = vmatpush1.bf16.msra.mxu0 0
        %800 = vmatprep.subr.bf16.mxu0 0
        %801 = vmatpush1.bf16.msra.mxu0 0
        %802 = vmatprep.subr.bf16.mxu0 0
        %803 = vmatpush1.bf16.msra.mxu0 0
        %804 = vmatprep.subr.bf16.mxu0 %v790
        %805 = vmatpush1.bf16.msra.mxu0 %v787
        %806 = vmatprep.subr.bf16.mxu0 %v767
        %807 = vmatpush1.bf16.msra.mxu0 %v766
        %808 = vmatprep.subr.bf16.mxu0 %v763
        %809 = vmatpush1.bf16.msra.mxu0 %v762
        %810 = vmatprep.subr.bf16.mxu0 %v759
        %811 = vmatpush1.bf16.msra.mxu0 %v758
        %812 = vmatprep.subr.bf16.mxu0 %v755
        %813 = vmatpush1.bf16.msra.mxu0 %v754
        %814 = vmatprep.subr.bf16.mxu0 0
        %815 = vmatpush2.bf16.msra.mxu0 0
        %816 = vmatprep.subr.bf16.mxu0 0
        %817 = vmatpush2.bf16.msra.mxu0 0
        %818 = vmatprep.subr.bf16.mxu0 0
        %819 = vmatpush2.bf16.msra.mxu0 0
        %820 = vmatprep.subr.bf16.mxu0 0
        %821 = vmatpush2.bf16.msra.mxu0 0
        %822 = vmatprep.subr.bf16.mxu0 0
        %823 = vmatpush2.bf16.msra.mxu0 0
        %824 = vmatprep.subr.bf16.mxu0 0
        %825 = vmatpush2.bf16.msra.mxu0 0
        %826 = vmatprep.subr.bf16.mxu0 0
        %827 = vmatpush2.bf16.msra.mxu0 0
        %828 = vmatprep.subr.bf16.mxu0 0
        %829 = vmatpush2.bf16.msra.mxu0 0
        %830 = vmatprep.mubr.bf16.mxu0 0
        %831 = vmatmul.mubr.bf16.gmra.mxu0 %v784
        %v832 = vpop.f32.mrf.mxu0
        %v833 = vadd.f32 %v781, %v832
        %v834 = vpop.f32.mrf.mxu0
        %v835 = vadd.f32 %v781, %v834
        %v836 = vpop.f32.mrf.mxu0
        %v837 = vpop.f32.mrf.mxu0
        %838 = vdwg.mxu0
        %839 = vmatprep.subr.bf16.mxu0 0
        %840 = vmatpush1.bf16.msra.mxu0 0
        %841 = vmatprep.subr.bf16.mxu0 0
        %842 = vmatpush1.bf16.msra.mxu0 0
        %843 = vmatprep.subr.bf16.mxu0 0
        %844 = vmatpush1.bf16.msra.mxu0 0
        %845 = vmatprep.subr.bf16.mxu0 %v796
        %846 = vmatpush1.bf16.msra.mxu0 %v793
        %847 = vmatprep.subr.bf16.mxu0 %v769
        %848 = vmatpush1.bf16.msra.mxu0 %v768
        %849 = vmatprep.subr.bf16.mxu0 %v765
        %850 = vmatpush1.bf16.msra.mxu0 %v764
        %851 = vmatprep.subr.bf16.mxu0 %v761
        %852 = vmatpush1.bf16.msra.mxu0 %v760
        %853 = vmatprep.subr.bf16.mxu0 %v757
        %854 = vmatpush1.bf16.msra.mxu0 %v756
        %855 = vmatprep.subr.bf16.mxu0 0
        %856 = vmatpush2.bf16.msra.mxu0 0
        %857 = vmatprep.subr.bf16.mxu0 0
        %858 = vmatpush2.bf16.msra.mxu0 0
        %859 = vmatprep.subr.bf16.mxu0 0
        %860 = vmatpush2.bf16.msra.mxu0 0
        %861 = vmatprep.subr.bf16.mxu0 0
        %862 = vmatpush2.bf16.msra.mxu0 0
        %863 = vmatprep.subr.bf16.mxu0 0
        %864 = vmatpush2.bf16.msra.mxu0 0
        %865 = vmatprep.subr.bf16.mxu0 0
        %866 = vmatpush2.bf16.msra.mxu0 0
        %867 = vmatprep.subr.bf16.mxu0 0
        %868 = vmatpush2.bf16.msra.mxu0 0
        %869 = vmatprep.subr.bf16.mxu0 0
        %870 = vmatpush2.bf16.msra.mxu0 0
        %871 = vmatprep.mubr.bf16.mxu0 0
        %872 = vmatmul.mubr.bf16.gmra.mxu0 %v784
        %v873 = vpop.f32.mrf.mxu0
        %v874 = vadd.f32 %v781, %v873
        %v875 = vpop.f32.mrf.mxu0
        %v876 = vadd.f32 %v781, %v875
        %v877 = vpop.f32.mrf.mxu0
        %v878 = vpop.f32.mrf.mxu0
        %879 = vdwg.mxu0
        %v880 = vmul.f32 %v833, 0.2
        %v881 = vmul.f32 %v835, 0.2
        %v882 = vmul.f32 %v874, 0.2
        %v883 = vmul.f32 %v876, 0.2
        %v884 = vmax.f32 %v833, %v880
        %v885 = vmax.f32 %v835, %v881
        %v886 = vmax.f32 %v874, %v882
        %v887 = vmax.f32 %v876, %v883
        %888 = vrot.lane.b32.xlu0 %v884, 127
        %v889 = vpop.permute.xlu0 %888
        %890 = vrot.lane.b32.xlu0 %v885, 127
        %v891 = vpop.permute.xlu0 %890
        %892 = vrot.lane.b32.xlu0 %v886, 127
        %v893 = vpop.permute.xlu0 %892
        %894 = vrot.lane.b32.xlu0 %v887, 127
        %v895 = vpop.permute.xlu0 %894
        %v896 = vsel %vm337, %v893, %v895
        %v897 = vsel %vm337, %v891, %v893
        %v898 = vsel %vm337, %v889, %v891
        %v899 = vsel %vm337, %v895, %v889
        %v900 = vmax.f32 %v884, %v898
        %v901 = vmax.f32 %v885, %v897
        %v902 = vmax.f32 %v886, %v896
        %v903 = vmax.f32 %v887, %v899
        %904 = vrot.lane.b32.xlu0 %v884, 112
        %v905 = vpop.permute.xlu0 %904
        %906 = vrot.lane.b32.xlu0 %v885, 112
        %v907 = vpop.permute.xlu0 %906
        %908 = vrot.lane.b32.xlu0 %v886, 112
        %v909 = vpop.permute.xlu0 %908
        %910 = vrot.lane.b32.xlu0 %v887, 112
        %v911 = vpop.permute.xlu0 %910
        %v912 = vsel %vm403, %v909, %v911
        %v913 = vsel %vm403, %v907, %v909
        %v914 = vsel %vm403, %v905, %v907
        %v915 = vsel %vm403, %v911, %v905
        %v916 = vmax.f32 %v900, %v914
        %v917 = vmax.f32 %v901, %v913
        %v918 = vmax.f32 %v902, %v912
        %v919 = vmax.f32 %v903, %v915
        %920 = vrot.lane.b32.xlu0 %v884, 111
        %v921 = vpop.permute.xlu0 %920
        %922 = vrot.lane.b32.xlu0 %v885, 111
        %v923 = vpop.permute.xlu0 %922
        %924 = vrot.lane.b32.xlu0 %v886, 111
        %v925 = vpop.permute.xlu0 %924
        %926 = vrot.lane.b32.xlu0 %v887, 111
        %v927 = vpop.permute.xlu0 %926
        %vm928 = vcmp.lt.s32.totalorder %v323, 111
        %v929 = vsel %vm928, %v925, %v927
        %v930 = vsel %vm928, %v923, %v925
        %v931 = vsel %vm928, %v921, %v923
        %v932 = vsel %vm928, %v927, %v921
        %v933 = vmax.f32 %v916, %v931
        %v934 = vmax.f32 %v917, %v930
        %v935 = vmax.f32 %v918, %v929
        %v936 = vmax.f32 %v919, %v932
        %v937 = vpack.c.bf16 %v933, %v933
        %v938 = vpack.c.bf16 %v934, %v934
        %v939 = vpack.c.bf16 %v935, %v935
        %v940 = vpack.c.bf16 %v936, %v936
        %v941 = vld [vmem:[#allocation6] sm:$0xf]
        %v942 = vld [vmem:[#allocation6 + $0x4] sm:$0xf]
        %v943 = vld [vmem:[#allocation6 + $0x8] sm:$0xf]
        %v944 = vld [vmem:[#allocation6 + $0xc] sm:$0xf]
        %v945 = vld [vmem:[#allocation6 + $0x10] sm:$0xf]
        %v946 = vld [vmem:[#allocation6 + $0x14] sm:$0xf]
        %v947 = vld [vmem:[#allocation6 + $0x18] sm:$0xf]
        %v948 = vld [vmem:[#allocation6 + $0x1c] sm:$0xf]
        %v949 = vld [vmem:[#allocation6 + $0x20] sm:$0xf]
        %v950 = vld [vmem:[#allocation6 + $0x24] sm:$0xf]
        %v951 = vld [vmem:[#allocation6 + $0x28] sm:$0xf]
        %v952 = vld [vmem:[#allocation6 + $0x2c] sm:$0xf]
        %v953 = vld [vmem:[#allocation6 + $0x30] sm:$0xf]
        %v954 = vld [vmem:[#allocation6 + $0x34] sm:$0xf]
        %v955 = vld [vmem:[#allocation6 + $0x38] sm:$0xf]
        %v956 = vld [vmem:[#allocation6 + $0x3c] sm:$0xf]
        %v957 = vld [vmem:[#allocation6 + $0x40] sm:$0xf]
        %v958 = vld [vmem:[#allocation6 + $0x44] sm:$0xf]
        %v959 = vld [vmem:[#allocation6 + $0x48] sm:$0xf]
        %v960 = vld [vmem:[#allocation6 + $0x4c] sm:$0xf]
        %v961 = vld [vmem:[#allocation6 + $0x50] sm:$0xf]
        %v962 = vld [vmem:[#allocation6 + $0x54] sm:$0xf]
        %v963 = vld [vmem:[#allocation6 + $0x58] sm:$0xf]
        %v964 = vld [vmem:[#allocation6 + $0x5c] sm:$0xf]
        %v965 = vld [vmem:[#allocation6 + $0x60] sm:$0xf]
        %v966 = vld [vmem:[#allocation6 + $0x64] sm:$0xf]
        %v967 = vld [vmem:[#allocation6 + $0x68] sm:$0xf]
        %v968 = vld [vmem:[#allocation6 + $0x6c] sm:$0xf]
        %v969 = vld [vmem:[#allocation6 + $0x70] sm:$0xf]
        %v970 = vld [vmem:[#allocation6 + $0x74] sm:$0xf]
        %v971 = vld [vmem:[#allocation6 + $0x78] sm:$0xf]
        %v972 = vld [vmem:[#allocation6 + $0x7c] sm:$0xf]
        %v973 = vld [vmem:[#allocation6 + $0x80] sm:$0xf]
        %v974 = vld [vmem:[#allocation6 + $0x84] sm:$0xf]
        %v975 = vld [vmem:[#allocation6 + $0x88] sm:$0xf]
        %v976 = vld [vmem:[#allocation6 + $0x8c] sm:$0xf]
        %v977 = vld [vmem:[#allocation6 + $0x90] sm:$0xf]
        %v978 = vld [vmem:[#allocation6 + $0x94] sm:$0xf]
        %v979 = vld [vmem:[#allocation6 + $0x98] sm:$0xf]
        %v980 = vld [vmem:[#allocation6 + $0x9c] sm:$0xf]
        %v981 = vld [vmem:[#allocation6 + $0xa0] sm:$0xf]
        %v982 = vld [vmem:[#allocation6 + $0xa4] sm:$0xf]
        %v983 = vld [vmem:[#allocation6 + $0xa8] sm:$0xf]
        %v984 = vld [vmem:[#allocation6 + $0xac] sm:$0xf]
        %v985 = vld [vmem:[#allocation6 + $0xb0] sm:$0xf]
        %v986 = vld [vmem:[#allocation6 + $0xb4] sm:$0xf]
        %v987 = vld [vmem:[#allocation6 + $0xb8] sm:$0xf]
        %v988 = vld [vmem:[#allocation6 + $0xbc] sm:$0xf]
        %v989 = vld [vmem:[#allocation6 + $0xc0] sm:$0xf]
        %v990 = vld [vmem:[#allocation6 + $0xc4] sm:$0xf]
        %v991 = vld [vmem:[#allocation6 + $0xc8] sm:$0xf]
        %v992 = vld [vmem:[#allocation6 + $0xcc] sm:$0xf]
        %v993 = vld [vmem:[#allocation6 + $0xd0] sm:$0xf]
        %v994 = vld [vmem:[#allocation6 + $0xd4] sm:$0xf]
        %v995 = vld [vmem:[#allocation6 + $0xd8] sm:$0xf]
        %v996 = vld [vmem:[#allocation6 + $0xdc] sm:$0xf]
        %v997 = vld [vmem:[#allocation6 + $0xe0] sm:$0xf]
        %v998 = vld [vmem:[#allocation6 + $0xe4] sm:$0xf]
        %v999 = vld [vmem:[#allocation6 + $0xe8] sm:$0xf]
        %v1000 = vld [vmem:[#allocation6 + $0xec] sm:$0xf]
        %v1001 = vld [vmem:[#allocation6 + $0xf0] sm:$0xf]
        %v1002 = vld [vmem:[#allocation6 + $0xf4] sm:$0xf]
        %v1003 = vld [vmem:[#allocation6 + $0xf8] sm:$0xf]
        %v1004 = vld [vmem:[#allocation6 + $0xfc] sm:$0xf]
        %v1069 = vunpack.c.l.b16 %v941
        %v1070 = vunpack.c.l.b16 %v942
        %v1071 = vunpack.c.l.b16 %v943
        %v1072 = vunpack.c.l.b16 %v944
        %v1073 = vunpack.c.l.b16 %v945
        %v1074 = vunpack.c.l.b16 %v946
        %v1075 = vunpack.c.l.b16 %v947
        %v1076 = vunpack.c.l.b16 %v948
        %v1077 = vunpack.c.l.b16 %v949
        %v1078 = vunpack.c.l.b16 %v950
        %v1079 = vunpack.c.l.b16 %v951
        %v1080 = vunpack.c.l.b16 %v952
        %v1081 = vunpack.c.l.b16 %v953
        %v1082 = vunpack.c.l.b16 %v954
        %v1083 = vunpack.c.l.b16 %v955
        %v1084 = vunpack.c.l.b16 %v956
        %v1085 = vunpack.c.l.b16 %v957
        %v1086 = vunpack.c.l.b16 %v958
        %v1087 = vunpack.c.l.b16 %v959
        %v1088 = vunpack.c.l.b16 %v960
        %v1089 = vunpack.c.l.b16 %v961
        %v1090 = vunpack.c.l.b16 %v962
        %v1091 = vunpack.c.l.b16 %v963
        %v1092 = vunpack.c.l.b16 %v964
        %v1093 = vunpack.c.l.b16 %v965
        %v1094 = vunpack.c.l.b16 %v966
        %v1095 = vunpack.c.l.b16 %v967
        %v1096 = vunpack.c.l.b16 %v968
        %v1097 = vunpack.c.l.b16 %v969
        %v1098 = vunpack.c.l.b16 %v970
        %v1099 = vunpack.c.l.b16 %v971
        %v1100 = vunpack.c.l.b16 %v972
        %v1101 = vunpack.c.l.b16 %v973
        %v1102 = vunpack.c.l.b16 %v974
        %v1103 = vunpack.c.l.b16 %v975
        %v1104 = vunpack.c.l.b16 %v976
        %v1105 = vunpack.c.l.b16 %v977
        %v1106 = vunpack.c.l.b16 %v978
        %v1107 = vunpack.c.l.b16 %v979
        %v1108 = vunpack.c.l.b16 %v980
        %v1109 = vunpack.c.l.b16 %v981
        %v1110 = vunpack.c.l.b16 %v982
        %v1111 = vunpack.c.l.b16 %v983
        %v1112 = vunpack.c.l.b16 %v984
        %v1113 = vunpack.c.l.b16 %v985
        %v1114 = vunpack.c.l.b16 %v986
        %v1115 = vunpack.c.l.b16 %v987
        %v1116 = vunpack.c.l.b16 %v988
        %v1117 = vunpack.c.l.b16 %v989
        %v1118 = vunpack.c.l.b16 %v990
        %v1119 = vunpack.c.l.b16 %v991
        %v1120 = vunpack.c.l.b16 %v992
        %v1121 = vunpack.c.l.b16 %v993
        %v1122 = vunpack.c.l.b16 %v994
        %v1123 = vunpack.c.l.b16 %v995
        %v1124 = vunpack.c.l.b16 %v996
        %v1125 = vunpack.c.l.b16 %v997
        %v1126 = vunpack.c.l.b16 %v998
        %v1127 = vunpack.c.l.b16 %v999
        %v1128 = vunpack.c.l.b16 %v1000
        %v1129 = vunpack.c.l.b16 %v1001
        %v1130 = vunpack.c.l.b16 %v1002
        %v1131 = vunpack.c.l.b16 %v1003
        %v1132 = vunpack.c.l.b16 %v1004
        %v1133 = vpack.c.b16 %v1070, %v1069
        %v1134 = vpack.c.b16 %v1072, %v1071
        %v1135 = vpack.c.b16 %v1074, %v1073
        %v1136 = vpack.c.b16 %v1076, %v1075
        %v1137 = vpack.c.b16 %v1078, %v1077
        %v1138 = vpack.c.b16 %v1080, %v1079
        %v1139 = vpack.c.b16 %v1082, %v1081
        %v1140 = vpack.c.b16 %v1084, %v1083
        %v1141 = vpack.c.b16 %v1086, %v1085
        %v1142 = vpack.c.b16 %v1088, %v1087
        %v1143 = vpack.c.b16 %v1090, %v1089
        %v1144 = vpack.c.b16 %v1092, %v1091
        %v1145 = vpack.c.b16 %v1094, %v1093
        %v1146 = vpack.c.b16 %v1096, %v1095
        %v1147 = vpack.c.b16 %v1098, %v1097
        %v1148 = vpack.c.b16 %v1100, %v1099
        %v1149 = vpack.c.b16 %v1102, %v1101
        %v1150 = vpack.c.b16 %v1104, %v1103
        %v1151 = vpack.c.b16 %v1106, %v1105
        %v1152 = vpack.c.b16 %v1108, %v1107
        %v1153 = vpack.c.b16 %v1110, %v1109
        %v1154 = vpack.c.b16 %v1112, %v1111
        %v1155 = vpack.c.b16 %v1114, %v1113
        %v1156 = vpack.c.b16 %v1116, %v1115
        %v1157 = vpack.c.b16 %v1118, %v1117
        %v1158 = vpack.c.b16 %v1120, %v1119
        %v1159 = vpack.c.b16 %v1122, %v1121
        %v1160 = vpack.c.b16 %v1124, %v1123
        %v1161 = vpack.c.b16 %v1126, %v1125
        %v1162 = vpack.c.b16 %v1128, %v1127
        %v1163 = vpack.c.b16 %v1130, %v1129
        %v1164 = vpack.c.b16 %v1132, %v1131
        %1197 = vmatprep.subr.bf16.mxu0 0
        %1198 = vmatpush1.bf16.msra.mxu0 %v1140
        %1199 = vmatprep.subr.bf16.mxu0 0
        %1200 = vmatpush1.bf16.msra.mxu0 %v1139
        %1201 = vmatprep.subr.bf16.mxu0 0
        %1202 = vmatpush1.bf16.msra.mxu0 %v1138
        %1203 = vmatprep.subr.bf16.mxu0 0
        %1204 = vmatpush1.bf16.msra.mxu0 %v1137
        %1205 = vmatprep.subr.bf16.mxu0 0
        %1206 = vmatpush1.bf16.msra.mxu0 %v1136
        %1207 = vmatprep.subr.bf16.mxu0 0
        %1208 = vmatpush1.bf16.msra.mxu0 %v1135
        %1209 = vmatprep.subr.bf16.mxu0 0
        %1210 = vmatpush1.bf16.msra.mxu0 %v1134
        %1211 = vmatprep.subr.bf16.mxu0 0
        %1212 = vmatpush1.bf16.msra.mxu0 %v1133
        %1213 = vmatprep.subr.bf16.mxu0 0
        %1214 = vmatpush2.bf16.msra.mxu0 %v1148
        %1215 = vmatprep.subr.bf16.mxu0 0
        %1216 = vmatpush2.bf16.msra.mxu0 %v1147
        %1217 = vmatprep.subr.bf16.mxu0 0
        %1218 = vmatpush2.bf16.msra.mxu0 %v1146
        %1219 = vmatprep.subr.bf16.mxu0 0
        %1220 = vmatpush2.bf16.msra.mxu0 %v1145
        %1221 = vmatprep.subr.bf16.mxu0 0
        %1222 = vmatpush2.bf16.msra.mxu0 %v1144
        %1223 = vmatprep.subr.bf16.mxu0 0
        %1224 = vmatpush2.bf16.msra.mxu0 %v1143
        %1225 = vmatprep.subr.bf16.mxu0 0
        %1226 = vmatpush2.bf16.msra.mxu0 %v1142
        %1227 = vmatprep.subr.bf16.mxu0 0
        %1228 = vmatpush2.bf16.msra.mxu0 %v1141
        %1229 = vmatprep.mubr.bf16.mxu0 %v938
        %1230 = vmatmul.mubr.bf16.gmra.mxu0 %v937
        %v1231 = vpop.f32.mrf.mxu0
        %v1232 = vadd.f32 0.0, %v1231
        %v1233 = vpop.f32.mrf.mxu0
        %v1234 = vpop.f32.mrf.mxu0
        %v1235 = vpop.f32.mrf.mxu0
        %1236 = vdwg.mxu0
        %1237 = vmatprep.subr.bf16.mxu0 0
        %1238 = vmatpush1.bf16.msra.mxu0 %v1156
        %1239 = vmatprep.subr.bf16.mxu0 0
        %1240 = vmatpush1.bf16.msra.mxu0 %v1155
        %1241 = vmatprep.subr.bf16.mxu0 0
        %1242 = vmatpush1.bf16.msra.mxu0 %v1154
        %1243 = vmatprep.subr.bf16.mxu0 0
        %1244 = vmatpush1.bf16.msra.mxu0 %v1153
        %1245 = vmatprep.subr.bf16.mxu0 0
        %1246 = vmatpush1.bf16.msra.mxu0 %v1152
        %1247 = vmatprep.subr.bf16.mxu0 0
        %1248 = vmatpush1.bf16.msra.mxu0 %v1151
        %1249 = vmatprep.subr.bf16.mxu0 0
        %1250 = vmatpush1.bf16.msra.mxu0 %v1150
        %1251 = vmatprep.subr.bf16.mxu0 0
        %1252 = vmatpush1.bf16.msra.mxu0 %v1149
        %1253 = vmatprep.subr.bf16.mxu0 0
        %1254 = vmatpush2.bf16.msra.mxu0 %v1164
        %1255 = vmatprep.subr.bf16.mxu0 0
        %1256 = vmatpush2.bf16.msra.mxu0 %v1163
        %1257 = vmatprep.subr.bf16.mxu0 0
        %1258 = vmatpush2.bf16.msra.mxu0 %v1162
        %1259 = vmatprep.subr.bf16.mxu0 0
        %1260 = vmatpush2.bf16.msra.mxu0 %v1161
        %1261 = vmatprep.subr.bf16.mxu0 0
        %1262 = vmatpush2.bf16.msra.mxu0 %v1160
        %1263 = vmatprep.subr.bf16.mxu0 0
        %1264 = vmatpush2.bf16.msra.mxu0 %v1159
        %1265 = vmatprep.subr.bf16.mxu0 0
        %1266 = vmatpush2.bf16.msra.mxu0 %v1158
        %1267 = vmatprep.subr.bf16.mxu0 0
        %1268 = vmatpush2.bf16.msra.mxu0 %v1157
        %1269 = vmatprep.mubr.bf16.mxu0 %v940
        %1270 = vmatmul.mubr.bf16.gmra.mxu0 %v939
        %v1271 = vpop.f32.mrf.mxu0
        %v1272 = vadd.f32 %v1232, %v1271
        %v1273 = vpop.f32.mrf.mxu0
        %v1274 = vpop.f32.mrf.mxu0
        %v1275 = vpop.f32.mrf.mxu0
        %1276 = vdwg.mxu0
        %1277 = vrot.lane.b32.xlu0 %v1272, 1
        %v1278 = vpop.permute.xlu0 %1277
        %1279 = vrot.lane.b32.xlu0 %v1272, 127
        %v1280 = vpop.permute.xlu0 %1279
        %1281 = vrot.lane.b32.xlu0 %v1278, 8
        %v1282 = vpop.permute.xlu0 %1281
        %1283 = vrot.lane.b32.xlu0 %v1272, 8
        %v1284 = vpop.permute.xlu0 %1283
        %1285 = vrot.lane.b32.xlu0 %v1280, 8
        %v1286 = vpop.permute.xlu0 %1285
        %1287 = vrot.lane.b32.xlu0 %v1278, 120
        %v1288 = vpop.permute.xlu0 %1287
        %1289 = vrot.lane.b32.xlu0 %v1272, 120
        %v1290 = vpop.permute.xlu0 %1289
        %1291 = vrot.lane.b32.xlu0 %v1280, 120
        %v1292 = vpop.permute.xlu0 %1291
        %v1293 = vld [vmem:[%s3 + $0x20] sm:$0xff]
        %v1294 = vld [vmem:[%s3 + $0x48] sm:$0xff]
        %v1295 = vld [vmem:[%s3 + $0x70] sm:$0xff]
        %v1296 = vld [vmem:[%s3 + $0x98] sm:$0xff]
        %v1297 = vld [vmem:[%s3 + $0xc0] sm:$0xff]
        %v1298 = vld [vmem:[%s3 + $0xe8] sm:$0xff]
        %v1299 = vld [vmem:[%s3 + $0x110] sm:$0xff]
        %v1300 = vld [vmem:[%s3 + $0x138] sm:$0xff]
        %v1301 = vld [vmem:[%s3 + $0x160] sm:$0xff]
        %v1302 = vmul.f32 %v1282, %v1293
        %v1303 = vmul.f32 %v1284, %v1294
        %v1304 = vmul.f32 %v1286, %v1295
        %v1305 = vmul.f32 %v1278, %v1296
        %v1306 = vmul.f32 %v1272, %v1297
        %v1307 = vmul.f32 %v1280, %v1298
        %v1308 = vmul.f32 %v1288, %v1299
        %v1309 = vmul.f32 %v1290, %v1300
        %v1310 = vmul.f32 %v1292, %v1301
        %v1311 = vpack.c.bf16 %v1303, %v1302
        %v1312 = vpack.c.bf16 %v1305, %v1304
        %v1313 = vpack.c.bf16 %v1307, %v1306
        %v1314 = vpack.c.bf16 %v1309, %v1308
        %v1315 = vpack.c.bf16 %v1310, %v1310
        %s1316 = scalar_lea.vmem [#allocation2], 8
        %v1317 = vld [vmem:[%s1316] sm:$0xf]
        %s1318 = scalar_lea.vmem [#allocation4], 16
        %v1319 = vld [vmem:[%s1318] sm:$0xff]
        %1321 = vset.pattern.permute.xlu0 0
        %1322 = vperm.xlu0 %1321, %v1319
        %v1323 = vpop.permute.xlu0 %1322
        %v1326 = vsel %vm515, %v1317, 0
        %v1329 = vsel %vm519, %v1315, 0
        %1331 = vmatprep.subr.bf16.mxu0 0
        %1332 = vmatpush1.bf16.msra.mxu0 0
        %1333 = vmatprep.subr.bf16.mxu0 0
        %1334 = vmatpush1.bf16.msra.mxu0 0
        %1335 = vmatprep.subr.bf16.mxu0 0
        %1336 = vmatpush1.bf16.msra.mxu0 0
        %1337 = vmatprep.subr.bf16.mxu0 0
        %1338 = vmatpush1.bf16.msra.mxu0 %v1329
        %1339 = vmatprep.subr.bf16.mxu0 0
        %1340 = vmatpush1.bf16.msra.mxu0 %v1314
        %1341 = vmatprep.subr.bf16.mxu0 0
        %1342 = vmatpush1.bf16.msra.mxu0 %v1313
        %1343 = vmatprep.subr.bf16.mxu0 0
        %1344 = vmatpush1.bf16.msra.mxu0 %v1312
        %1345 = vmatprep.subr.bf16.mxu0 0
        %1346 = vmatpush1.bf16.msra.mxu0 %v1311
        %1347 = vmatprep.subr.bf16.mxu0 0
        %1348 = vmatpush2.bf16.msra.mxu0 0
        %1349 = vmatprep.subr.bf16.mxu0 0
        %1350 = vmatpush2.bf16.msra.mxu0 0
        %1351 = vmatprep.subr.bf16.mxu0 0
        %1352 = vmatpush2.bf16.msra.mxu0 0
        %1353 = vmatprep.subr.bf16.mxu0 0
        %1354 = vmatpush2.bf16.msra.mxu0 0
        %1355 = vmatprep.subr.bf16.mxu0 0
        %1356 = vmatpush2.bf16.msra.mxu0 0
        %1357 = vmatprep.subr.bf16.mxu0 0
        %1358 = vmatpush2.bf16.msra.mxu0 0
        %1359 = vmatprep.subr.bf16.mxu0 0
        %1360 = vmatpush2.bf16.msra.mxu0 0
        %1361 = vmatprep.subr.bf16.mxu0 0
        %1362 = vmatpush2.bf16.msra.mxu0 0
        %1363 = vmatprep.mubr.bf16.mxu0 0
        %1364 = vmatmul.mubr.bf16.gmra.mxu0 %v1326
        %v1365 = vpop.f32.mrf.mxu0
        %v1366 = vadd.f32 %v1323, %v1365
        %v1367 = vpop.f32.mrf.mxu0
        %v1368 = vpop.f32.mrf.mxu0
        %v1369 = vpop.f32.mrf.mxu0
        %1370 = vdwg.mxu0
        %v1371 = vmul.f32 %v1366, 0.2
        %v1372 = vmax.f32 %v1366, %v1371
        %1373 = vrot.lane.b32.xlu0 %v1372, 1
        %v1374 = vpop.permute.xlu0 %1373
        %1375 = vrot.lane.b32.xlu0 %v1372, 127
        %v1376 = vpop.permute.xlu0 %1375
        %1377 = vrot.lane.b32.xlu0 %v1374, 8
        %v1378 = vpop.permute.xlu0 %1377
        %1379 = vrot.lane.b32.xlu0 %v1372, 8
        %v1380 = vpop.permute.xlu0 %1379
        %1381 = vrot.lane.b32.xlu0 %v1376, 8
        %v1382 = vpop.permute.xlu0 %1381
        %1383 = vrot.lane.b32.xlu0 %v1374, 120
        %v1384 = vpop.permute.xlu0 %1383
        %1385 = vrot.lane.b32.xlu0 %v1372, 120
        %v1386 = vpop.permute.xlu0 %1385
        %1387 = vrot.lane.b32.xlu0 %v1376, 120
        %v1388 = vpop.permute.xlu0 %1387
        %v1389 = vmul.f32 %v1378, %v1293
        %v1390 = vmul.f32 %v1380, %v1294
        %v1391 = vmul.f32 %v1382, %v1295
        %v1392 = vmul.f32 %v1374, %v1296
        %v1393 = vmul.f32 %v1372, %v1297
        %v1394 = vmul.f32 %v1376, %v1298
        %v1395 = vmul.f32 %v1384, %v1299
        %v1396 = vmul.f32 %v1386, %v1300
        %v1397 = vmul.f32 %v1388, %v1301
        %v1398 = vpack.c.bf16 %v1390, %v1389
        %v1399 = vpack.c.bf16 %v1392, %v1391
        %v1400 = vpack.c.bf16 %v1394, %v1393
        %v1401 = vpack.c.bf16 %v1396, %v1395
        %v1402 = vpack.c.bf16 %v1397, %v1397
        %s1403 = scalar_lea.vmem [#allocation2], 12
        %v1404 = vld [vmem:[%s1403] sm:$0xf]
        %s1405 = scalar_lea.vmem [#allocation4], 24
        %v1406 = vld [vmem:[%s1405] sm:$0xff]
        %1408 = vset.pattern.permute.xlu0 0
        %1409 = vperm.xlu0 %1408, %v1406
        %v1410 = vpop.permute.xlu0 %1409
        %v1413 = vsel %vm515, %v1404, 0
        %v1416 = vsel %vm519, %v1402, 0
        %1418 = vmatprep.subr.bf16.mxu0 0
        %1419 = vmatpush1.bf16.msra.mxu0 0
        %1420 = vmatprep.subr.bf16.mxu0 0
        %1421 = vmatpush1.bf16.msra.mxu0 0
        %1422 = vmatprep.subr.bf16.mxu0 0
        %1423 = vmatpush1.bf16.msra.mxu0 0
        %1424 = vmatprep.subr.bf16.mxu0 0
        %1425 = vmatpush1.bf16.msra.mxu0 %v1416
        %1426 = vmatprep.subr.bf16.mxu0 0
        %1427 = vmatpush1.bf16.msra.mxu0 %v1401
        %1428 = vmatprep.subr.bf16.mxu0 0
        %1429 = vmatpush1.bf16.msra.mxu0 %v1400
        %1430 = vmatprep.subr.bf16.mxu0 0
        %1431 = vmatpush1.bf16.msra.mxu0 %v1399
        %1432 = vmatprep.subr.bf16.mxu0 0
        %1433 = vmatpush1.bf16.msra.mxu0 %v1398
        %1434 = vmatprep.subr.bf16.mxu0 0
        %1435 = vmatpush2.bf16.msra.mxu0 0
        %1436 = vmatprep.subr.bf16.mxu0 0
        %1437 = vmatpush2.bf16.msra.mxu0 0
        %1438 = vmatprep.subr.bf16.mxu0 0
        %1439 = vmatpush2.bf16.msra.mxu0 0
        %1440 = vmatprep.subr.bf16.mxu0 0
        %1441 = vmatpush2.bf16.msra.mxu0 0
        %1442 = vmatprep.subr.bf16.mxu0 0
        %1443 = vmatpush2.bf16.msra.mxu0 0
        %1444 = vmatprep.subr.bf16.mxu0 0
        %1445 = vmatpush2.bf16.msra.mxu0 0
        %1446 = vmatprep.subr.bf16.mxu0 0
        %1447 = vmatpush2.bf16.msra.mxu0 0
        %1448 = vmatprep.subr.bf16.mxu0 0
        %1449 = vmatpush2.bf16.msra.mxu0 0
        %1450 = vmatprep.mubr.bf16.mxu0 0
        %1451 = vmatmul.mubr.bf16.gmra.mxu0 %v1413
        %v1452 = vpop.f32.mrf.mxu0
        %v1453 = vadd.f32 %v1410, %v1452
        %v1454 = vpop.f32.mrf.mxu0
        %v1455 = vpop.f32.mrf.mxu0
        %v1456 = vpop.f32.mrf.mxu0
        %1457 = vdwg.mxu0
        %v1458 = vmul.f32 %v1453, 0.2
        %v1459 = vmax.f32 %v1453, %v1458
        %1460 = vrot.lane.b32.xlu0 %v1459, 1
        %v1461 = vpop.permute.xlu0 %1460
        %1462 = vrot.lane.b32.xlu0 %v1459, 127
        %v1463 = vpop.permute.xlu0 %1462
        %1464 = vrot.lane.b32.xlu0 %v1461, 8
        %v1465 = vpop.permute.xlu0 %1464
        %1466 = vrot.lane.b32.xlu0 %v1459, 8
        %v1467 = vpop.permute.xlu0 %1466
        %1468 = vrot.lane.b32.xlu0 %v1463, 8
        %v1469 = vpop.permute.xlu0 %1468
        %1470 = vrot.lane.b32.xlu0 %v1461, 120
        %v1471 = vpop.permute.xlu0 %1470
        %1472 = vrot.lane.b32.xlu0 %v1459, 120
        %v1473 = vpop.permute.xlu0 %1472
        %1474 = vrot.lane.b32.xlu0 %v1463, 120
        %v1475 = vpop.permute.xlu0 %1474
        %v1476 = vmul.f32 %v1465, %v1293
        %v1477 = vmul.f32 %v1467, %v1294
        %v1478 = vmul.f32 %v1469, %v1295
        %v1479 = vmul.f32 %v1461, %v1296
        %v1480 = vmul.f32 %v1459, %v1297
        %v1481 = vmul.f32 %v1463, %v1298
        %v1482 = vmul.f32 %v1471, %v1299
        %v1483 = vmul.f32 %v1473, %v1300
        %v1484 = vmul.f32 %v1475, %v1301
        %v1485 = vpack.c.bf16 %v1477, %v1476
        %v1486 = vpack.c.bf16 %v1479, %v1478
        %v1487 = vpack.c.bf16 %v1481, %v1480
        %v1488 = vpack.c.bf16 %v1483, %v1482
        %v1489 = vpack.c.bf16 %v1484, %v1484
        %s1490 = scalar_lea.vmem [#allocation2], 16
        %v1491 = vld [vmem:[%s1490] sm:$0xf]
        %s1492 = scalar_lea.vmem [#allocation4], 32
        %v1493 = vld [vmem:[%s1492] sm:$0xff]
        %1495 = vset.pattern.permute.xlu0 0
        %1496 = vperm.xlu0 %1495, %v1493
        %v1497 = vpop.permute.xlu0 %1496
        %v1500 = vsel %vm515, %v1491, 0
        %v1503 = vsel %vm519, %v1489, 0
        %1505 = vmatprep.subr.bf16.mxu0 0
        %1506 = vmatpush1.bf16.msra.mxu0 0
        %1507 = vmatprep.subr.bf16.mxu0 0
        %1508 = vmatpush1.bf16.msra.mxu0 0
        %1509 = vmatprep.subr.bf16.mxu0 0
        %1510 = vmatpush1.bf16.msra.mxu0 0
        %1511 = vmatprep.subr.bf16.mxu0 0
        %1512 = vmatpush1.bf16.msra.mxu0 %v1503
        %1513 = vmatprep.subr.bf16.mxu0 0
        %1514 = vmatpush1.bf16.msra.mxu0 %v1488
        %1515 = vmatprep.subr.bf16.mxu0 0
        %1516 = vmatpush1.bf16.msra.mxu0 %v1487
        %1517 = vmatprep.subr.bf16.mxu0 0
        %1518 = vmatpush1.bf16.msra.mxu0 %v1486
        %1519 = vmatprep.subr.bf16.mxu0 0
        %1520 = vmatpush1.bf16.msra.mxu0 %v1485
        %1521 = vmatprep.subr.bf16.mxu0 0
        %1522 = vmatpush2.bf16.msra.mxu0 0
        %1523 = vmatprep.subr.bf16.mxu0 0
        %1524 = vmatpush2.bf16.msra.mxu0 0
        %1525 = vmatprep.subr.bf16.mxu0 0
        %1526 = vmatpush2.bf16.msra.mxu0 0
        %1527 = vmatprep.subr.bf16.mxu0 0
        %1528 = vmatpush2.bf16.msra.mxu0 0
        %1529 = vmatprep.subr.bf16.mxu0 0
        %1530 = vmatpush2.bf16.msra.mxu0 0
        %1531 = vmatprep.subr.bf16.mxu0 0
        %1532 = vmatpush2.bf16.msra.mxu0 0
        %1533 = vmatprep.subr.bf16.mxu0 0
        %1534 = vmatpush2.bf16.msra.mxu0 0
        %1535 = vmatprep.subr.bf16.mxu0 0
        %1536 = vmatpush2.bf16.msra.mxu0 0
        %1537 = vmatprep.mubr.bf16.mxu0 0
        %1538 = vmatmul.mubr.bf16.gmra.mxu0 %v1500
        %v1539 = vpop.f32.mrf.mxu0
        %v1540 = vadd.f32 %v1497, %v1539
        %v1541 = vpop.f32.mrf.mxu0
        %v1542 = vpop.f32.mrf.mxu0
        %v1543 = vpop.f32.mrf.mxu0
        %1544 = vdwg.mxu0
        %v1545 = vmul.f32 %v1540, 0.2
        %v1546 = vmax.f32 %v1540, %v1545
        %1547 = vrot.lane.b32.xlu0 %v1546, 1
        %v1548 = vpop.permute.xlu0 %1547
        %1549 = vrot.lane.b32.xlu0 %v1546, 127
        %v1550 = vpop.permute.xlu0 %1549
        %1551 = vrot.lane.b32.xlu0 %v1548, 8
        %v1552 = vpop.permute.xlu0 %1551
        %1553 = vrot.lane.b32.xlu0 %v1546, 8
        %v1554 = vpop.permute.xlu0 %1553
        %1555 = vrot.lane.b32.xlu0 %v1550, 8
        %v1556 = vpop.permute.xlu0 %1555
        %1557 = vrot.lane.b32.xlu0 %v1548, 120
        %v1558 = vpop.permute.xlu0 %1557
        %1559 = vrot.lane.b32.xlu0 %v1546, 120
        %v1560 = vpop.permute.xlu0 %1559
        %1561 = vrot.lane.b32.xlu0 %v1550, 120
        %v1562 = vpop.permute.xlu0 %1561
        %v1563 = vmul.f32 %v1552, %v1293
        %v1564 = vmul.f32 %v1554, %v1294
        %v1565 = vmul.f32 %v1556, %v1295
        %v1566 = vmul.f32 %v1548, %v1296
        %v1567 = vmul.f32 %v1546, %v1297
        %v1568 = vmul.f32 %v1550, %v1298
        %v1569 = vmul.f32 %v1558, %v1299
        %v1570 = vmul.f32 %v1560, %v1300
        %v1571 = vmul.f32 %v1562, %v1301
        %v1572 = vpack.c.bf16 %v1564, %v1563
        %v1573 = vpack.c.bf16 %v1566, %v1565
        %v1574 = vpack.c.bf16 %v1568, %v1567
        %v1575 = vpack.c.bf16 %v1570, %v1569
        %v1576 = vpack.c.bf16 %v1571, %v1571
        %s1577 = scalar_lea.vmem [#allocation2], 20
        %v1578 = vld [vmem:[%s1577] sm:$0xf]
        %s1579 = scalar_lea.vmem [#allocation4], 40
        %v1580 = vld [vmem:[%s1579] sm:$0xff]
        %1582 = vset.pattern.permute.xlu0 0
        %1583 = vperm.xlu0 %1582, %v1580
        %v1584 = vpop.permute.xlu0 %1583
        %v1587 = vsel %vm515, %v1578, 0
        %v1590 = vsel %vm519, %v1576, 0
        %1592 = vmatprep.subr.bf16.mxu0 0
        %1593 = vmatpush1.bf16.msra.mxu0 0
        %1594 = vmatprep.subr.bf16.mxu0 0
        %1595 = vmatpush1.bf16.msra.mxu0 0
        %1596 = vmatprep.subr.bf16.mxu0 0
        %1597 = vmatpush1.bf16.msra.mxu0 0
        %1598 = vmatprep.subr.bf16.mxu0 0
        %1599 = vmatpush1.bf16.msra.mxu0 %v1590
        %1600 = vmatprep.subr.bf16.mxu0 0
        %1601 = vmatpush1.bf16.msra.mxu0 %v1575
        %1602 = vmatprep.subr.bf16.mxu0 0
        %1603 = vmatpush1.bf16.msra.mxu0 %v1574
        %1604 = vmatprep.subr.bf16.mxu0 0
        %1605 = vmatpush1.bf16.msra.mxu0 %v1573
        %1606 = vmatprep.subr.bf16.mxu0 0
        %1607 = vmatpush1.bf16.msra.mxu0 %v1572
        %1608 = vmatprep.subr.bf16.mxu0 0
        %1609 = vmatpush2.bf16.msra.mxu0 0
        %1610 = vmatprep.subr.bf16.mxu0 0
        %1611 = vmatpush2.bf16.msra.mxu0 0
        %1612 = vmatprep.subr.bf16.mxu0 0
        %1613 = vmatpush2.bf16.msra.mxu0 0
        %1614 = vmatprep.subr.bf16.mxu0 0
        %1615 = vmatpush2.bf16.msra.mxu0 0
        %1616 = vmatprep.subr.bf16.mxu0 0
        %1617 = vmatpush2.bf16.msra.mxu0 0
        %1618 = vmatprep.subr.bf16.mxu0 0
        %1619 = vmatpush2.bf16.msra.mxu0 0
        %1620 = vmatprep.subr.bf16.mxu0 0
        %1621 = vmatpush2.bf16.msra.mxu0 0
        %1622 = vmatprep.subr.bf16.mxu0 0
        %1623 = vmatpush2.bf16.msra.mxu0 0
        %1624 = vmatprep.mubr.bf16.mxu0 0
        %1625 = vmatmul.mubr.bf16.gmra.mxu0 %v1587
        %v1626 = vpop.f32.mrf.mxu0
        %v1627 = vadd.f32 %v1584, %v1626
        %v1628 = vpop.f32.mrf.mxu0
        %v1629 = vpop.f32.mrf.mxu0
        %v1630 = vpop.f32.mrf.mxu0
        %1631 = vdwg.mxu0
        %v1632 = vmul.f32 %v1627, 0.2
        %v1633 = vmax.f32 %v1627, %v1632
        %v1634 = vpack.c.bf16 %v1633, %v1633
        %v1635 = vld [vmem:[#allocation7] sm:$0xff]
        %v1636 = vld [vmem:[#allocation7 + $0x8] sm:$0xff]
        %v1637 = vld [vmem:[#allocation7 + $0x10] sm:$0xff]
        %v1638 = vld [vmem:[#allocation7 + $0x18] sm:$0xff]
        %v1639 = vld [vmem:[#allocation7 + $0x20] sm:$0xff]
        %v1640 = vld [vmem:[#allocation7 + $0x28] sm:$0xff]
        %v1641 = vld [vmem:[#allocation7 + $0x30] sm:$0xff]
        %v1642 = vld [vmem:[#allocation7 + $0x38] sm:$0xff]
        %v1643 = vld [vmem:[#allocation7 + $0x40] sm:$0xff]
        %v1644 = vld [vmem:[#allocation7 + $0x48] sm:$0xff]
        %v1645 = vld [vmem:[#allocation7 + $0x50] sm:$0xff]
        %v1646 = vld [vmem:[#allocation7 + $0x58] sm:$0xff]
        %v1647 = vld [vmem:[#allocation7 + $0x60] sm:$0xff]
        %v1648 = vld [vmem:[#allocation7 + $0x68] sm:$0xff]
        %v1649 = vld [vmem:[#allocation7 + $0x70] sm:$0xff]
        %v1650 = vld [vmem:[#allocation7 + $0x78] sm:$0xff]
        %v1651 = vld [vmem:[#allocation7 + $0x80] sm:$0xff]
        %v1652 = vld [vmem:[#allocation7 + $0x88] sm:$0xff]
        %v1653 = vld [vmem:[#allocation7 + $0x90] sm:$0xff]
        %v1654 = vld [vmem:[#allocation7 + $0x98] sm:$0xff]
        %v1655 = vld [vmem:[#allocation7 + $0xa0] sm:$0xff]
        %v1656 = vld [vmem:[#allocation7 + $0xa8] sm:$0xff]
        %v1657 = vld [vmem:[#allocation7 + $0xb0] sm:$0xff]
        %v1658 = vld [vmem:[#allocation7 + $0xb8] sm:$0xff]
        %v1659 = vld [vmem:[#allocation7 + $0xc0] sm:$0xff]
        %v1660 = vld [vmem:[#allocation7 + $0xc8] sm:$0xff]
        %v1661 = vld [vmem:[#allocation7 + $0xd0] sm:$0xff]
        %v1662 = vld [vmem:[#allocation7 + $0xd8] sm:$0xff]
        %v1663 = vld [vmem:[#allocation7 + $0xe0] sm:$0xff]
        %v1664 = vld [vmem:[#allocation7 + $0xe8] sm:$0xff]
        %v1665 = vld [vmem:[#allocation7 + $0xf0] sm:$0xff]
        %v1666 = vld [vmem:[#allocation7 + $0xf8] sm:$0xff]
        %v1699 = vunpack.c.l.b16 %v1635
        %v1700 = vunpack.c.h.b16 %v1635
        %v1701 = vunpack.c.l.b16 %v1636
        %v1702 = vunpack.c.h.b16 %v1636
        %v1703 = vunpack.c.l.b16 %v1637
        %v1704 = vunpack.c.h.b16 %v1637
        %v1705 = vunpack.c.l.b16 %v1638
        %v1706 = vunpack.c.h.b16 %v1638
        %v1707 = vunpack.c.l.b16 %v1639
        %v1708 = vunpack.c.h.b16 %v1639
        %v1709 = vunpack.c.l.b16 %v1640
        %v1710 = vunpack.c.h.b16 %v1640
        %v1711 = vunpack.c.l.b16 %v1641
        %v1712 = vunpack.c.h.b16 %v1641
        %v1713 = vunpack.c.l.b16 %v1642
        %v1714 = vunpack.c.h.b16 %v1642
        %v1715 = vunpack.c.l.b16 %v1643
        %v1716 = vunpack.c.h.b16 %v1643
        %v1717 = vunpack.c.l.b16 %v1644
        %v1718 = vunpack.c.h.b16 %v1644
        %v1719 = vunpack.c.l.b16 %v1645
        %v1720 = vunpack.c.h.b16 %v1645
        %v1721 = vunpack.c.l.b16 %v1646
        %v1722 = vunpack.c.h.b16 %v1646
        %v1723 = vunpack.c.l.b16 %v1647
        %v1724 = vunpack.c.h.b16 %v1647
        %v1725 = vunpack.c.l.b16 %v1648
        %v1726 = vunpack.c.h.b16 %v1648
        %v1727 = vunpack.c.l.b16 %v1649
        %v1728 = vunpack.c.h.b16 %v1649
        %v1729 = vunpack.c.l.b16 %v1650
        %v1730 = vunpack.c.h.b16 %v1650
        %v1731 = vunpack.c.l.b16 %v1651
        %v1732 = vunpack.c.h.b16 %v1651
        %v1733 = vunpack.c.l.b16 %v1652
        %v1734 = vunpack.c.h.b16 %v1652
        %v1735 = vunpack.c.l.b16 %v1653
        %v1736 = vunpack.c.h.b16 %v1653
        %v1737 = vunpack.c.l.b16 %v1654
        %v1738 = vunpack.c.h.b16 %v1654
        %v1739 = vunpack.c.l.b16 %v1655
        %v1740 = vunpack.c.h.b16 %v1655
        %v1741 = vunpack.c.l.b16 %v1656
        %v1742 = vunpack.c.h.b16 %v1656
        %v1743 = vunpack.c.l.b16 %v1657
        %v1744 = vunpack.c.h.b16 %v1657
        %v1745 = vunpack.c.l.b16 %v1658
        %v1746 = vunpack.c.h.b16 %v1658
        %v1747 = vunpack.c.l.b16 %v1659
        %v1748 = vunpack.c.h.b16 %v1659
        %v1749 = vunpack.c.l.b16 %v1660
        %v1750 = vunpack.c.h.b16 %v1660
        %v1751 = vunpack.c.l.b16 %v1661
        %v1752 = vunpack.c.h.b16 %v1661
        %v1753 = vunpack.c.l.b16 %v1662
        %v1754 = vunpack.c.h.b16 %v1662
        %v1755 = vunpack.c.l.b16 %v1663
        %v1756 = vunpack.c.h.b16 %v1663
        %v1757 = vunpack.c.l.b16 %v1664
        %v1758 = vunpack.c.h.b16 %v1664
        %v1759 = vunpack.c.l.b16 %v1665
        %v1760 = vunpack.c.h.b16 %v1665
        %v1761 = vunpack.c.l.b16 %v1666
        %v1762 = vunpack.c.h.b16 %v1666
        %v1763 = vpack.c.b16 %v1703, %v1699
        %v1764 = vpack.c.b16 %v1704, %v1700
        %v1765 = vpack.c.b16 %v1705, %v1701
        %v1766 = vpack.c.b16 %v1706, %v1702
        %v1767 = vpack.c.b16 %v1711, %v1707
        %v1768 = vpack.c.b16 %v1712, %v1708
        %v1769 = vpack.c.b16 %v1713, %v1709
        %v1770 = vpack.c.b16 %v1714, %v1710
        %v1771 = vpack.c.b16 %v1719, %v1715
        %v1772 = vpack.c.b16 %v1720, %v1716
        %v1773 = vpack.c.b16 %v1721, %v1717
        %v1774 = vpack.c.b16 %v1722, %v1718
        %v1775 = vpack.c.b16 %v1727, %v1723
        %v1776 = vpack.c.b16 %v1728, %v1724
        %v1777 = vpack.c.b16 %v1729, %v1725
        %v1778 = vpack.c.b16 %v1730, %v1726
        %v1779 = vpack.c.b16 %v1735, %v1731
        %v1780 = vpack.c.b16 %v1736, %v1732
        %v1781 = vpack.c.b16 %v1737, %v1733
        %v1782 = vpack.c.b16 %v1738, %v1734
        %v1783 = vpack.c.b16 %v1743, %v1739
        %v1784 = vpack.c.b16 %v1744, %v1740
        %v1785 = vpack.c.b16 %v1745, %v1741
        %v1786 = vpack.c.b16 %v1746, %v1742
        %v1787 = vpack.c.b16 %v1751, %v1747
        %v1788 = vpack.c.b16 %v1752, %v1748
        %v1789 = vpack.c.b16 %v1753, %v1749
        %v1790 = vpack.c.b16 %v1754, %v1750
        %v1791 = vpack.c.b16 %v1759, %v1755
        %v1792 = vpack.c.b16 %v1760, %v1756
        %v1793 = vpack.c.b16 %v1761, %v1757
        %v1794 = vpack.c.b16 %v1762, %v1758
        %1827 = vmatprep.subr.bf16.mxu0 %v1792
        %1828 = vmatpush1.bf16.msra.mxu0 %v1791
        %1829 = vmatprep.subr.bf16.mxu0 %v1788
        %1830 = vmatpush1.bf16.msra.mxu0 %v1787
        %1831 = vmatprep.subr.bf16.mxu0 %v1784
        %1832 = vmatpush1.bf16.msra.mxu0 %v1783
        %1833 = vmatprep.subr.bf16.mxu0 %v1780
        %1834 = vmatpush1.bf16.msra.mxu0 %v1779
        %1835 = vmatprep.subr.bf16.mxu0 %v1776
        %1836 = vmatpush1.bf16.msra.mxu0 %v1775
        %1837 = vmatprep.subr.bf16.mxu0 %v1772
        %1838 = vmatpush1.bf16.msra.mxu0 %v1771
        %1839 = vmatprep.subr.bf16.mxu0 %v1768
        %1840 = vmatpush1.bf16.msra.mxu0 %v1767
        %1841 = vmatprep.subr.bf16.mxu0 %v1764
        %1842 = vmatpush1.bf16.msra.mxu0 %v1763
        %1843 = vmatprep.subr.bf16.mxu0 0
        %1844 = vmatpush2.bf16.msra.mxu0 0
        %1845 = vmatprep.subr.bf16.mxu0 0
        %1846 = vmatpush2.bf16.msra.mxu0 0
        %1847 = vmatprep.subr.bf16.mxu0 0
        %1848 = vmatpush2.bf16.msra.mxu0 0
        %1849 = vmatprep.subr.bf16.mxu0 0
        %1850 = vmatpush2.bf16.msra.mxu0 0
        %1851 = vmatprep.subr.bf16.mxu0 0
        %1852 = vmatpush2.bf16.msra.mxu0 0
        %1853 = vmatprep.subr.bf16.mxu0 0
        %1854 = vmatpush2.bf16.msra.mxu0 0
        %1855 = vmatprep.subr.bf16.mxu0 0
        %1856 = vmatpush2.bf16.msra.mxu0 0
        %1857 = vmatprep.subr.bf16.mxu0 0
        %1858 = vmatpush2.bf16.msra.mxu0 0
        %1859 = vmatprep.mubr.bf16.mxu0 0
        %1860 = vmatmul.mubr.bf16.gmra.mxu0 %v1634
        %v1861 = vpop.f32.mrf.mxu0
        %v1862 = vadd.f32 0.0, %v1861
        %v1863 = vpop.f32.mrf.mxu0
        %v1864 = vadd.f32 0.0, %v1863
        %v1865 = vpop.f32.mrf.mxu0
        %v1866 = vpop.f32.mrf.mxu0
        %1867 = vdwg.mxu0
        %1868 = vmatprep.subr.bf16.mxu0 %v1794
        %1869 = vmatpush1.bf16.msra.mxu0 %v1793
        %1870 = vmatprep.subr.bf16.mxu0 %v1790
        %1871 = vmatpush1.bf16.msra.mxu0 %v1789
        %1872 = vmatprep.subr.bf16.mxu0 %v1786
        %1873 = vmatpush1.bf16.msra.mxu0 %v1785
        %1874 = vmatprep.subr.bf16.mxu0 %v1782
        %1875 = vmatpush1.bf16.msra.mxu0 %v1781
        %1876 = vmatprep.subr.bf16.mxu0 %v1778
        %1877 = vmatpush1.bf16.msra.mxu0 %v1777
        %1878 = vmatprep.subr.bf16.mxu0 %v1774
        %1879 = vmatpush1.bf16.msra.mxu0 %v1773
        %1880 = vmatprep.subr.bf16.mxu0 %v1770
        %1881 = vmatpush1.bf16.msra.mxu0 %v1769
        %1882 = vmatprep.subr.bf16.mxu0 %v1766
        %1883 = vmatpush1.bf16.msra.mxu0 %v1765
        %1884 = vmatprep.subr.bf16.mxu0 0
        %1885 = vmatpush2.bf16.msra.mxu0 0
        %1886 = vmatprep.subr.bf16.mxu0 0
        %1887 = vmatpush2.bf16.msra.mxu0 0
        %1888 = vmatprep.subr.bf16.mxu0 0
        %1889 = vmatpush2.bf16.msra.mxu0 0
        %1890 = vmatprep.subr.bf16.mxu0 0
        %1891 = vmatpush2.bf16.msra.mxu0 0
        %1892 = vmatprep.subr.bf16.mxu0 0
        %1893 = vmatpush2.bf16.msra.mxu0 0
        %1894 = vmatprep.subr.bf16.mxu0 0
        %1895 = vmatpush2.bf16.msra.mxu0 0
        %1896 = vmatprep.subr.bf16.mxu0 0
        %1897 = vmatpush2.bf16.msra.mxu0 0
        %1898 = vmatprep.subr.bf16.mxu0 0
        %1899 = vmatpush2.bf16.msra.mxu0 0
        %1900 = vmatprep.mubr.bf16.mxu0 0
        %1901 = vmatmul.mubr.bf16.gmra.mxu0 %v1634
        %v1902 = vpop.f32.mrf.mxu0
        %v1903 = vadd.f32 0.0, %v1902
        %v1904 = vpop.f32.mrf.mxu0
        %v1905 = vadd.f32 0.0, %v1904
        %v1906 = vpop.f32.mrf.mxu0
        %v1907 = vpop.f32.mrf.mxu0
        %1908 = vdwg.mxu0
        %s1909 = scalar_lea.vmem [#allocation2], 24
        %v1910 = vld [vmem:[%s1909] sm:$0xf]
        %1911 = vrot.lane.b32.xlu0 %v1862, 1
        %v1912 = vpop.permute.xlu0 %1911
        %1913 = vrot.lane.b32.xlu0 %v1864, 1
        %v1914 = vpop.permute.xlu0 %1913
        %1915 = vrot.lane.b32.xlu0 %v1903, 1
        %v1916 = vpop.permute.xlu0 %1915
        %1917 = vrot.lane.b32.xlu0 %v1905, 1
        %v1918 = vpop.permute.xlu0 %1917
        %v1919 = vsel %vm324, %v1916, %v1918
        %v1920 = vsel %vm324, %v1914, %v1916
        %v1921 = vsel %vm324, %v1912, %v1914
        %v1922 = vsel %vm324, %v1918, %v1912
        %1923 = vrot.lane.b32.xlu0 %v1862, 127
        %v1924 = vpop.permute.xlu0 %1923
        %1925 = vrot.lane.b32.xlu0 %v1864, 127
        %v1926 = vpop.permute.xlu0 %1925
        %1927 = vrot.lane.b32.xlu0 %v1903, 127
        %v1928 = vpop.permute.xlu0 %1927
        %1929 = vrot.lane.b32.xlu0 %v1905, 127
        %v1930 = vpop.permute.xlu0 %1929
        %v1931 = vsel %vm337, %v1928, %v1930
        %v1932 = vsel %vm337, %v1926, %v1928
        %v1933 = vsel %vm337, %v1924, %v1926
        %v1934 = vsel %vm337, %v1930, %v1924
        %1935 = vrot.lane.b32.xlu0 %v1922, 16
        %v1936 = vpop.permute.xlu0 %1935
        %1937 = vrot.lane.b32.xlu0 %v1862, 16
        %v1938 = vpop.permute.xlu0 %1937
        %1939 = vrot.lane.b32.xlu0 %v1933, 16
        %v1940 = vpop.permute.xlu0 %1939
        %1941 = vrot.lane.b32.xlu0 %v1921, 16
        %v1942 = vpop.permute.xlu0 %1941
        %1943 = vrot.lane.b32.xlu0 %v1864, 16
        %v1944 = vpop.permute.xlu0 %1943
        %1945 = vrot.lane.b32.xlu0 %v1932, 16
        %v1946 = vpop.permute.xlu0 %1945
        %1947 = vrot.lane.b32.xlu0 %v1920, 16
        %v1948 = vpop.permute.xlu0 %1947
        %1949 = vrot.lane.b32.xlu0 %v1903, 16
        %v1950 = vpop.permute.xlu0 %1949
        %1951 = vrot.lane.b32.xlu0 %v1931, 16
        %v1952 = vpop.permute.xlu0 %1951
        %1953 = vrot.lane.b32.xlu0 %v1919, 16
        %v1954 = vpop.permute.xlu0 %1953
        %1955 = vrot.lane.b32.xlu0 %v1905, 16
        %v1956 = vpop.permute.xlu0 %1955
        %1957 = vrot.lane.b32.xlu0 %v1934, 16
        %v1958 = vpop.permute.xlu0 %1957
        %v1959 = vsel %vm366, %v1948, %v1954
        %v1960 = vsel %vm366, %v1950, %v1956
        %v1961 = vsel %vm366, %v1952, %v1958
        %v1962 = vsel %vm366, %v1942, %v1948
        %v1963 = vsel %vm366, %v1944, %v1950
        %v1964 = vsel %vm366, %v1946, %v1952
        %v1965 = vsel %vm366, %v1936, %v1942
        %v1966 = vsel %vm366, %v1938, %v1944
        %v1967 = vsel %vm366, %v1940, %v1946
        %v1968 = vsel %vm366, %v1954, %v1936
        %v1969 = vsel %vm366, %v1956, %v1938
        %v1970 = vsel %vm366, %v1958, %v1940
        %1971 = vrot.lane.b32.xlu0 %v1922, 112
        %v1972 = vpop.permute.xlu0 %1971
        %1973 = vrot.lane.b32.xlu0 %v1862, 112
        %v1974 = vpop.permute.xlu0 %1973
        %1975 = vrot.lane.b32.xlu0 %v1933, 112
        %v1976 = vpop.permute.xlu0 %1975
        %1977 = vrot.lane.b32.xlu0 %v1921, 112
        %v1978 = vpop.permute.xlu0 %1977
        %1979 = vrot.lane.b32.xlu0 %v1864, 112
        %v1980 = vpop.permute.xlu0 %1979
        %1981 = vrot.lane.b32.xlu0 %v1932, 112
        %v1982 = vpop.permute.xlu0 %1981
        %1983 = vrot.lane.b32.xlu0 %v1920, 112
        %v1984 = vpop.permute.xlu0 %1983
        %1985 = vrot.lane.b32.xlu0 %v1903, 112
        %v1986 = vpop.permute.xlu0 %1985
        %1987 = vrot.lane.b32.xlu0 %v1931, 112
        %v1988 = vpop.permute.xlu0 %1987
        %1989 = vrot.lane.b32.xlu0 %v1919, 112
        %v1990 = vpop.permute.xlu0 %1989
        %1991 = vrot.lane.b32.xlu0 %v1905, 112
        %v1992 = vpop.permute.xlu0 %1991
        %1993 = vrot.lane.b32.xlu0 %v1934, 112
        %v1994 = vpop.permute.xlu0 %1993
        %v1995 = vsel %vm403, %v1984, %v1990
        %v1996 = vsel %vm403, %v1986, %v1992
        %v1997 = vsel %vm403, %v1988, %v1994
        %v1998 = vsel %vm403, %v1978, %v1984
        %v1999 = vsel %vm403, %v1980, %v1986
        %v2000 = vsel %vm403, %v1982, %v1988
        %v2001 = vsel %vm403, %v1972, %v1978
        %v2002 = vsel %vm403, %v1974, %v1980
        %v2003 = vsel %vm403, %v1976, %v1982
        %v2004 = vsel %vm403, %v1990, %v1972
        %v2005 = vsel %vm403, %v1992, %v1974
        %v2006 = vsel %vm403, %v1994, %v1976
        %v2007 = vmul.f32 %v1968, %v416
        %v2008 = vmul.f32 %v1965, %v417
        %v2009 = vmul.f32 %v1962, %v418
        %v2010 = vmul.f32 %v1959, %v419
        %v2011 = vmul.f32 %v1969, %v420
        %v2012 = vmul.f32 %v1966, %v421
        %v2013 = vmul.f32 %v1963, %v422
        %v2014 = vmul.f32 %v1960, %v423
        %v2015 = vmul.f32 %v1970, %v424
        %v2016 = vmul.f32 %v1967, %v425
        %v2017 = vmul.f32 %v1964, %v426
        %v2018 = vmul.f32 %v1961, %v427
        %v2019 = vmul.f32 %v1922, %v428
        %v2020 = vmul.f32 %v1921, %v429
        %v2021 = vmul.f32 %v1920, %v430
        %v2022 = vmul.f32 %v1919, %v431
        %v2023 = vmul.f32 %v1862, %v432
        %v2024 = vmul.f32 %v1864, %v433
        %v2025 = vmul.f32 %v1903, %v434
        %v2026 = vmul.f32 %v1905, %v435
        %v2027 = vmul.f32 %v1933, %v436
        %v2028 = vmul.f32 %v1932, %v437
        %v2029 = vmul.f32 %v1931, %v438
        %v2030 = vmul.f32 %v1934, %v439
        %v2031 = vmul.f32 %v2001, %v440
        %v2032 = vmul.f32 %v1998, %v441
        %v2033 = vmul.f32 %v1995, %v442
        %v2034 = vmul.f32 %v2004, %v443
        %v2035 = vmul.f32 %v2002, %v444
        %v2036 = vmul.f32 %v1999, %v445
        %v2037 = vmul.f32 %v1996, %v446
        %v2038 = vmul.f32 %v2005, %v447
        %v2039 = vmul.f32 %v2003, %v448
        %v2040 = vmul.f32 %v2000, %v449
        %v2041 = vmul.f32 %v1997, %v450
        %v2042 = vmul.f32 %v2006, %v451
        %v2043 = vpack.c.bf16 %v2011, %v2007
        %v2044 = vpack.c.bf16 %v2012, %v2008
        %v2045 = vpack.c.bf16 %v2013, %v2009
        %v2046 = vpack.c.bf16 %v2014, %v2010
        %v2047 = vpack.c.bf16 %v2019, %v2015
        %v2048 = vpack.c.bf16 %v2020, %v2016
        %v2049 = vpack.c.bf16 %v2021, %v2017
        %v2050 = vpack.c.bf16 %v2022, %v2018
        %v2051 = vpack.c.bf16 %v2027, %v2023
        %v2052 = vpack.c.bf16 %v2028, %v2024
        %v2053 = vpack.c.bf16 %v2029, %v2025
        %v2054 = vpack.c.bf16 %v2030, %v2026
        %v2055 = vpack.c.bf16 %v2035, %v2031
        %v2056 = vpack.c.bf16 %v2036, %v2032
        %v2057 = vpack.c.bf16 %v2037, %v2033
        %v2058 = vpack.c.bf16 %v2038, %v2034
        %v2059 = vpack.c.bf16 %v2039, %v2039
        %v2060 = vpack.c.bf16 %v2040, %v2040
        %v2061 = vpack.c.bf16 %v2041, %v2041
        %v2062 = vpack.c.bf16 %v2042, %v2042
        %s2063 = scalar_lea.vmem [#allocation2], 28
        %v2064 = vld [vmem:[%s2063] sm:$0xf]
        %2065 = vrot.lane.b32.xlu0 %v884, 1
        %v2066 = vpop.permute.xlu0 %2065
        %2067 = vrot.lane.b32.xlu0 %v885, 1
        %v2068 = vpop.permute.xlu0 %2067
        %2069 = vrot.lane.b32.xlu0 %v886, 1
        %v2070 = vpop.permute.xlu0 %2069
        %2071 = vrot.lane.b32.xlu0 %v887, 1
        %v2072 = vpop.permute.xlu0 %2071
        %v2073 = vsel %vm324, %v2070, %v2072
        %v2074 = vsel %vm324, %v2068, %v2070
        %v2075 = vsel %vm324, %v2066, %v2068
        %v2076 = vsel %vm324, %v2072, %v2066
        %2077 = vrot.lane.b32.xlu0 %v2076, 16
        %v2078 = vpop.permute.xlu0 %2077
        %2079 = vrot.lane.b32.xlu0 %v884, 16
        %v2080 = vpop.permute.xlu0 %2079
        %2081 = vrot.lane.b32.xlu0 %v898, 16
        %v2082 = vpop.permute.xlu0 %2081
        %2083 = vrot.lane.b32.xlu0 %v2075, 16
        %v2084 = vpop.permute.xlu0 %2083
        %2085 = vrot.lane.b32.xlu0 %v885, 16
        %v2086 = vpop.permute.xlu0 %2085
        %2087 = vrot.lane.b32.xlu0 %v897, 16
        %v2088 = vpop.permute.xlu0 %2087
        %2089 = vrot.lane.b32.xlu0 %v2074, 16
        %v2090 = vpop.permute.xlu0 %2089
        %2091 = vrot.lane.b32.xlu0 %v886, 16
        %v2092 = vpop.permute.xlu0 %2091
        %2093 = vrot.lane.b32.xlu0 %v896, 16
        %v2094 = vpop.permute.xlu0 %2093
        %2095 = vrot.lane.b32.xlu0 %v2073, 16
        %v2096 = vpop.permute.xlu0 %2095
        %2097 = vrot.lane.b32.xlu0 %v887, 16
        %v2098 = vpop.permute.xlu0 %2097
        %2099 = vrot.lane.b32.xlu0 %v899, 16
        %v2100 = vpop.permute.xlu0 %2099
        %v2101 = vsel %vm366, %v2090, %v2096
        %v2102 = vsel %vm366, %v2092, %v2098
        %v2103 = vsel %vm366, %v2094, %v2100
        %v2104 = vsel %vm366, %v2084, %v2090
        %v2105 = vsel %vm366, %v2086, %v2092
        %v2106 = vsel %vm366, %v2088, %v2094
        %v2107 = vsel %vm366, %v2078, %v2084
        %v2108 = vsel %vm366, %v2080, %v2086
        %v2109 = vsel %vm366, %v2082, %v2088
        %v2110 = vsel %vm366, %v2096, %v2078
        %v2111 = vsel %vm366, %v2098, %v2080
        %v2112 = vsel %vm366, %v2100, %v2082
        %2113 = vrot.lane.b32.xlu0 %v2076, 112
        %v2114 = vpop.permute.xlu0 %2113
        %2115 = vrot.lane.b32.xlu0 %v898, 112
        %v2116 = vpop.permute.xlu0 %2115
        %2117 = vrot.lane.b32.xlu0 %v2075, 112
        %v2118 = vpop.permute.xlu0 %2117
        %2119 = vrot.lane.b32.xlu0 %v897, 112
        %v2120 = vpop.permute.xlu0 %2119
        %2121 = vrot.lane.b32.xlu0 %v2074, 112
        %v2122 = vpop.permute.xlu0 %2121
        %2123 = vrot.lane.b32.xlu0 %v896, 112
        %v2124 = vpop.permute.xlu0 %2123
        %2125 = vrot.lane.b32.xlu0 %v2073, 112
        %v2126 = vpop.permute.xlu0 %2125
        %2127 = vrot.lane.b32.xlu0 %v899, 112
        %v2128 = vpop.permute.xlu0 %2127
        %v2129 = vsel %vm403, %v2122, %v2126
        %v2130 = vsel %vm403, %v2124, %v2128
        %v2131 = vsel %vm403, %v2118, %v2122
        %v2132 = vsel %vm403, %v2120, %v2124
        %v2133 = vsel %vm403, %v2114, %v2118
        %v2134 = vsel %vm403, %v2116, %v2120
        %v2135 = vsel %vm403, %v2126, %v2114
        %v2136 = vsel %vm403, %v2128, %v2116
        %v2137 = vmul.f32 %v2110, %v416
        %v2138 = vmul.f32 %v2107, %v417
        %v2139 = vmul.f32 %v2104, %v418
        %v2140 = vmul.f32 %v2101, %v419
        %v2141 = vmul.f32 %v2111, %v420
        %v2142 = vmul.f32 %v2108, %v421
        %v2143 = vmul.f32 %v2105, %v422
        %v2144 = vmul.f32 %v2102, %v423
        %v2145 = vmul.f32 %v2112, %v424
        %v2146 = vmul.f32 %v2109, %v425
        %v2147 = vmul.f32 %v2106, %v426
        %v2148 = vmul.f32 %v2103, %v427
        %v2149 = vmul.f32 %v2076, %v428
        %v2150 = vmul.f32 %v2075, %v429
        %v2151 = vmul.f32 %v2074, %v430
        %v2152 = vmul.f32 %v2073, %v431
        %v2153 = vmul.f32 %v884, %v432
        %v2154 = vmul.f32 %v885, %v433
        %v2155 = vmul.f32 %v886, %v434
        %v2156 = vmul.f32 %v887, %v435
        %v2157 = vmul.f32 %v898, %v436
        %v2158 = vmul.f32 %v897, %v437
        %v2159 = vmul.f32 %v896, %v438
        %v2160 = vmul.f32 %v899, %v439
        %v2161 = vmul.f32 %v2133, %v440
        %v2162 = vmul.f32 %v2131, %v441
        %v2163 = vmul.f32 %v2129, %v442
        %v2164 = vmul.f32 %v2135, %v443
        %v2165 = vmul.f32 %v914, %v444
        %v2166 = vmul.f32 %v913, %v445
        %v2167 = vmul.f32 %v912, %v446
        %v2168 = vmul.f32 %v915, %v447
        %v2169 = vmul.f32 %v2134, %v448
        %v2170 = vmul.f32 %v2132, %v449
        %v2171 = vmul.f32 %v2130, %v450
        %v2172 = vmul.f32 %v2136, %v451
        %v2173 = vpack.c.bf16 %v2141, %v2137
        %v2174 = vpack.c.bf16 %v2142, %v2138
        %v2175 = vpack.c.bf16 %v2143, %v2139
        %v2176 = vpack.c.bf16 %v2144, %v2140
        %v2177 = vpack.c.bf16 %v2149, %v2145
        %v2178 = vpack.c.bf16 %v2150, %v2146
        %v2179 = vpack.c.bf16 %v2151, %v2147
        %v2180 = vpack.c.bf16 %v2152, %v2148
        %v2181 = vpack.c.bf16 %v2157, %v2153
        %v2182 = vpack.c.bf16 %v2158, %v2154
        %v2183 = vpack.c.bf16 %v2159, %v2155
        %v2184 = vpack.c.bf16 %v2160, %v2156
        %v2185 = vpack.c.bf16 %v2165, %v2161
        %v2186 = vpack.c.bf16 %v2166, %v2162
        %v2187 = vpack.c.bf16 %v2167, %v2163
        %v2188 = vpack.c.bf16 %v2168, %v2164
        %v2189 = vpack.c.bf16 %v2169, %v2169
        %v2190 = vpack.c.bf16 %v2170, %v2170
        %v2191 = vpack.c.bf16 %v2171, %v2171
        %v2192 = vpack.c.bf16 %v2172, %v2172
        %v2194 = vsel %vm515, %v2064, 0
        %v2197 = vsel %vm519, %v2189, 0
        %v2200 = vsel %vm519, %v2190, 0
        %v2203 = vsel %vm519, %v2191, 0
        %v2206 = vsel %vm519, %v2192, 0
        %2208 = vmatprep.subr.bf16.mxu0 0
        %2209 = vmatpush1.bf16.msra.mxu0 0
        %2210 = vmatprep.subr.bf16.mxu0 0
        %2211 = vmatpush1.bf16.msra.mxu0 0
        %2212 = vmatprep.subr.bf16.mxu0 0
        %2213 = vmatpush1.bf16.msra.mxu0 0
        %2214 = vmatprep.subr.bf16.mxu0 %v2200
        %2215 = vmatpush1.bf16.msra.mxu0 %v2197
        %2216 = vmatprep.subr.bf16.mxu0 %v2186
        %2217 = vmatpush1.bf16.msra.mxu0 %v2185
        %2218 = vmatprep.subr.bf16.mxu0 %v2182
        %2219 = vmatpush1.bf16.msra.mxu0 %v2181
        %2220 = vmatprep.subr.bf16.mxu0 %v2178
        %2221 = vmatpush1.bf16.msra.mxu0 %v2177
        %2222 = vmatprep.subr.bf16.mxu0 %v2174
        %2223 = vmatpush1.bf16.msra.mxu0 %v2173
        %2224 = vmatprep.subr.bf16.mxu0 0
        %2225 = vmatpush2.bf16.msra.mxu0 0
        %2226 = vmatprep.subr.bf16.mxu0 0
        %2227 = vmatpush2.bf16.msra.mxu0 0
        %2228 = vmatprep.subr.bf16.mxu0 0
        %2229 = vmatpush2.bf16.msra.mxu0 0
        %2230 = vmatprep.subr.bf16.mxu0 0
        %2231 = vmatpush2.bf16.msra.mxu0 0
        %2232 = vmatprep.subr.bf16.mxu0 0
        %2233 = vmatpush2.bf16.msra.mxu0 0
        %2234 = vmatprep.subr.bf16.mxu0 0
        %2235 = vmatpush2.bf16.msra.mxu0 0
        %2236 = vmatprep.subr.bf16.mxu0 0
        %2237 = vmatpush2.bf16.msra.mxu0 0
        %2238 = vmatprep.subr.bf16.mxu0 0
        %2239 = vmatpush2.bf16.msra.mxu0 0
        %2240 = vmatprep.mubr.bf16.mxu0 0
        %2241 = vmatmul.mubr.bf16.gmra.mxu0 %v2194
        %v2242 = vpop.f32.mrf.mxu0
        %v2243 = vadd.f32 0.0, %v2242
        %v2244 = vpop.f32.mrf.mxu0
        %v2245 = vadd.f32 0.0, %v2244
        %v2246 = vpop.f32.mrf.mxu0
        %v2247 = vpop.f32.mrf.mxu0
        %2248 = vdwg.mxu0
        %2249 = vmatprep.subr.bf16.mxu0 0
        %2250 = vmatpush1.bf16.msra.mxu0 0
        %2251 = vmatprep.subr.bf16.mxu0 0
        %2252 = vmatpush1.bf16.msra.mxu0 0
        %2253 = vmatprep.subr.bf16.mxu0 0
        %2254 = vmatpush1.bf16.msra.mxu0 0
        %2255 = vmatprep.subr.bf16.mxu0 %v2206
        %2256 = vmatpush1.bf16.msra.mxu0 %v2203
        %2257 = vmatprep.subr.bf16.mxu0 %v2188
        %2258 = vmatpush1.bf16.msra.mxu0 %v2187
        %2259 = vmatprep.subr.bf16.mxu0 %v2184
        %2260 = vmatpush1.bf16.msra.mxu0 %v2183
        %2261 = vmatprep.subr.bf16.mxu0 %v2180
        %2262 = vmatpush1.bf16.msra.mxu0 %v2179
        %2263 = vmatprep.subr.bf16.mxu0 %v2176
        %2264 = vmatpush1.bf16.msra.mxu0 %v2175
        %2265 = vmatprep.subr.bf16.mxu0 0
        %2266 = vmatpush2.bf16.msra.mxu0 0
        %2267 = vmatprep.subr.bf16.mxu0 0
        %2268 = vmatpush2.bf16.msra.mxu0 0
        %2269 = vmatprep.subr.bf16.mxu0 0
        %2270 = vmatpush2.bf16.msra.mxu0 0
        %2271 = vmatprep.subr.bf16.mxu0 0
        %2272 = vmatpush2.bf16.msra.mxu0 0
        %2273 = vmatprep.subr.bf16.mxu0 0
        %2274 = vmatpush2.bf16.msra.mxu0 0
        %2275 = vmatprep.subr.bf16.mxu0 0
        %2276 = vmatpush2.bf16.msra.mxu0 0
        %2277 = vmatprep.subr.bf16.mxu0 0
        %2278 = vmatpush2.bf16.msra.mxu0 0
        %2279 = vmatprep.subr.bf16.mxu0 0
        %2280 = vmatpush2.bf16.msra.mxu0 0
        %2281 = vmatprep.mubr.bf16.mxu0 0
        %2282 = vmatmul.mubr.bf16.gmra.mxu0 %v2194
        %v2283 = vpop.f32.mrf.mxu0
        %v2284 = vadd.f32 0.0, %v2283
        %v2285 = vpop.f32.mrf.mxu0
        %v2286 = vadd.f32 0.0, %v2285
        %v2287 = vpop.f32.mrf.mxu0
        %v2288 = vpop.f32.mrf.mxu0
        %2289 = vdwg.mxu0
        %v2291 = vsel %vm515, %v1910, 0
        %v2294 = vsel %vm519, %v2059, 0
        %v2297 = vsel %vm519, %v2060, 0
        %v2300 = vsel %vm519, %v2061, 0
        %v2303 = vsel %vm519, %v2062, 0
        %2305 = vmatprep.subr.bf16.mxu0 0
        %2306 = vmatpush1.bf16.msra.mxu0 0
        %2307 = vmatprep.subr.bf16.mxu0 0
        %2308 = vmatpush1.bf16.msra.mxu0 0
        %2309 = vmatprep.subr.bf16.mxu0 0
        %2310 = vmatpush1.bf16.msra.mxu0 0
        %2311 = vmatprep.subr.bf16.mxu0 %v2297
        %2312 = vmatpush1.bf16.msra.mxu0 %v2294
        %2313 = vmatprep.subr.bf16.mxu0 %v2056
        %2314 = vmatpush1.bf16.msra.mxu0 %v2055
        %2315 = vmatprep.subr.bf16.mxu0 %v2052
        %2316 = vmatpush1.bf16.msra.mxu0 %v2051
        %2317 = vmatprep.subr.bf16.mxu0 %v2048
        %2318 = vmatpush1.bf16.msra.mxu0 %v2047
        %2319 = vmatprep.subr.bf16.mxu0 %v2044
        %2320 = vmatpush1.bf16.msra.mxu0 %v2043
        %2321 = vmatprep.subr.bf16.mxu0 0
        %2322 = vmatpush2.bf16.msra.mxu0 0
        %2323 = vmatprep.subr.bf16.mxu0 0
        %2324 = vmatpush2.bf16.msra.mxu0 0
        %2325 = vmatprep.subr.bf16.mxu0 0
        %2326 = vmatpush2.bf16.msra.mxu0 0
        %2327 = vmatprep.subr.bf16.mxu0 0
        %2328 = vmatpush2.bf16.msra.mxu0 0
        %2329 = vmatprep.subr.bf16.mxu0 0
        %2330 = vmatpush2.bf16.msra.mxu0 0
        %2331 = vmatprep.subr.bf16.mxu0 0
        %2332 = vmatpush2.bf16.msra.mxu0 0
        %2333 = vmatprep.subr.bf16.mxu0 0
        %2334 = vmatpush2.bf16.msra.mxu0 0
        %2335 = vmatprep.subr.bf16.mxu0 0
        %2336 = vmatpush2.bf16.msra.mxu0 0
        %2337 = vmatprep.mubr.bf16.mxu0 0
        %2338 = vmatmul.mubr.bf16.gmra.mxu0 %v2291
        %v2339 = vpop.f32.mrf.mxu0
        %v2340 = vadd.f32 %v2243, %v2339
        %v2341 = vpop.f32.mrf.mxu0
        %v2342 = vadd.f32 %v2245, %v2341
        %v2343 = vpop.f32.mrf.mxu0
        %v2344 = vpop.f32.mrf.mxu0
        %2345 = vdwg.mxu0
        %2346 = vmatprep.subr.bf16.mxu0 0
        %2347 = vmatpush1.bf16.msra.mxu0 0
        %2348 = vmatprep.subr.bf16.mxu0 0
        %2349 = vmatpush1.bf16.msra.mxu0 0
        %2350 = vmatprep.subr.bf16.mxu0 0
        %2351 = vmatpush1.bf16.msra.mxu0 0
        %2352 = vmatprep.subr.bf16.mxu0 %v2303
        %2353 = vmatpush1.bf16.msra.mxu0 %v2300
        %2354 = vmatprep.subr.bf16.mxu0 %v2058
        %2355 = vmatpush1.bf16.msra.mxu0 %v2057
        %2356 = vmatprep.subr.bf16.mxu0 %v2054
        %2357 = vmatpush1.bf16.msra.mxu0 %v2053
        %2358 = vmatprep.subr.bf16.mxu0 %v2050
        %2359 = vmatpush1.bf16.msra.mxu0 %v2049
        %2360 = vmatprep.subr.bf16.mxu0 %v2046
        %2361 = vmatpush1.bf16.msra.mxu0 %v2045
        %2362 = vmatprep.subr.bf16.mxu0 0
        %2363 = vmatpush2.bf16.msra.mxu0 0
        %2364 = vmatprep.subr.bf16.mxu0 0
        %2365 = vmatpush2.bf16.msra.mxu0 0
        %2366 = vmatprep.subr.bf16.mxu0 0
        %2367 = vmatpush2.bf16.msra.mxu0 0
        %2368 = vmatprep.subr.bf16.mxu0 0
        %2369 = vmatpush2.bf16.msra.mxu0 0
        %2370 = vmatprep.subr.bf16.mxu0 0
        %2371 = vmatpush2.bf16.msra.mxu0 0
        %2372 = vmatprep.subr.bf16.mxu0 0
        %2373 = vmatpush2.bf16.msra.mxu0 0
        %2374 = vmatprep.subr.bf16.mxu0 0
        %2375 = vmatpush2.bf16.msra.mxu0 0
        %2376 = vmatprep.subr.bf16.mxu0 0
        %2377 = vmatpush2.bf16.msra.mxu0 0
        %2378 = vmatprep.mubr.bf16.mxu0 0
        %2379 = vmatmul.mubr.bf16.gmra.mxu0 %v2291
        %v2380 = vpop.f32.mrf.mxu0
        %v2381 = vadd.f32 %v2284, %v2380
        %v2382 = vpop.f32.mrf.mxu0
        %v2383 = vadd.f32 %v2286, %v2382
        %v2384 = vpop.f32.mrf.mxu0
        %v2385 = vpop.f32.mrf.mxu0
        %2386 = vdwg.mxu0
        %s2387 = scalar_lea.vmem [#allocation4], 48
        %v2388 = vld [vmem:[%s2387] sm:$0xff]
        %2390 = vset.pattern.permute.xlu0 0
        %2391 = vperm.xlu0 %2390, %v2388
        %v2392 = vpop.permute.xlu0 %2391
        %v2394 = vadd.f32 %v2340, %v2392
        %v2395 = vadd.f32 %v2342, %v2392
        %v2396 = vadd.f32 %v2381, %v2392
        %v2397 = vadd.f32 %v2383, %v2392
        %v2398 = vmul.f32 %v2394, 0.2
        %v2399 = vmul.f32 %v2395, 0.2
        %v2400 = vmul.f32 %v2396, 0.2
        %v2401 = vmul.f32 %v2397, 0.2
        %v2402 = vmax.f32 %v2394, %v2398
        %v2403 = vmax.f32 %v2395, %v2399
        %v2404 = vmax.f32 %v2396, %v2400
        %v2405 = vmax.f32 %v2397, %v2401
        %2406 = vrot.lane.b32.xlu0 %v2402, 1
        %v2407 = vpop.permute.xlu0 %2406
        %2408 = vrot.lane.b32.xlu0 %v2403, 1
        %v2409 = vpop.permute.xlu0 %2408
        %2410 = vrot.lane.b32.xlu0 %v2404, 1
        %v2411 = vpop.permute.xlu0 %2410
        %2412 = vrot.lane.b32.xlu0 %v2405, 1
        %v2413 = vpop.permute.xlu0 %2412
        %v2414 = vsel %vm324, %v2411, %v2413
        %v2415 = vsel %vm324, %v2409, %v2411
        %v2416 = vsel %vm324, %v2407, %v2409
        %v2417 = vsel %vm324, %v2413, %v2407
        %2418 = vrot.lane.b32.xlu0 %v2402, 127
        %v2419 = vpop.permute.xlu0 %2418
        %2420 = vrot.lane.b32.xlu0 %v2403, 127
        %v2421 = vpop.permute.xlu0 %2420
        %2422 = vrot.lane.b32.xlu0 %v2404, 127
        %v2423 = vpop.permute.xlu0 %2422
        %2424 = vrot.lane.b32.xlu0 %v2405, 127
        %v2425 = vpop.permute.xlu0 %2424
        %v2426 = vsel %vm337, %v2423, %v2425
        %v2427 = vsel %vm337, %v2421, %v2423
        %v2428 = vsel %vm337, %v2419, %v2421
        %v2429 = vsel %vm337, %v2425, %v2419
        %2430 = vrot.lane.b32.xlu0 %v2417, 16
        %v2431 = vpop.permute.xlu0 %2430
        %2432 = vrot.lane.b32.xlu0 %v2402, 16
        %v2433 = vpop.permute.xlu0 %2432
        %2434 = vrot.lane.b32.xlu0 %v2428, 16
        %v2435 = vpop.permute.xlu0 %2434
        %2436 = vrot.lane.b32.xlu0 %v2416, 16
        %v2437 = vpop.permute.xlu0 %2436
        %2438 = vrot.lane.b32.xlu0 %v2403, 16
        %v2439 = vpop.permute.xlu0 %2438
        %2440 = vrot.lane.b32.xlu0 %v2427, 16
        %v2441 = vpop.permute.xlu0 %2440
        %2442 = vrot.lane.b32.xlu0 %v2415, 16
        %v2443 = vpop.permute.xlu0 %2442
        %2444 = vrot.lane.b32.xlu0 %v2404, 16
        %v2445 = vpop.permute.xlu0 %2444
        %2446 = vrot.lane.b32.xlu0 %v2426, 16
        %v2447 = vpop.permute.xlu0 %2446
        %2448 = vrot.lane.b32.xlu0 %v2414, 16
        %v2449 = vpop.permute.xlu0 %2448
        %2450 = vrot.lane.b32.xlu0 %v2405, 16
        %v2451 = vpop.permute.xlu0 %2450
        %2452 = vrot.lane.b32.xlu0 %v2429, 16
        %v2453 = vpop.permute.xlu0 %2452
        %v2454 = vsel %vm366, %v2443, %v2449
        %v2455 = vsel %vm366, %v2445, %v2451
        %v2456 = vsel %vm366, %v2447, %v2453
        %v2457 = vsel %vm366, %v2437, %v2443
        %v2458 = vsel %vm366, %v2439, %v2445
        %v2459 = vsel %vm366, %v2441, %v2447
        %v2460 = vsel %vm366, %v2431, %v2437
        %v2461 = vsel %vm366, %v2433, %v2439
        %v2462 = vsel %vm366, %v2435, %v2441
        %v2463 = vsel %vm366, %v2449, %v2431
        %v2464 = vsel %vm366, %v2451, %v2433
        %v2465 = vsel %vm366, %v2453, %v2435
        %2466 = vrot.lane.b32.xlu0 %v2417, 112
        %v2467 = vpop.permute.xlu0 %2466
        %2468 = vrot.lane.b32.xlu0 %v2402, 112
        %v2469 = vpop.permute.xlu0 %2468
        %2470 = vrot.lane.b32.xlu0 %v2428, 112
        %v2471 = vpop.permute.xlu0 %2470
        %2472 = vrot.lane.b32.xlu0 %v2416, 112
        %v2473 = vpop.permute.xlu0 %2472
        %2474 = vrot.lane.b32.xlu0 %v2403, 112
        %v2475 = vpop.permute.xlu0 %2474
        %2476 = vrot.lane.b32.xlu0 %v2427, 112
        %v2477 = vpop.permute.xlu0 %2476
        %2478 = vrot.lane.b32.xlu0 %v2415, 112
        %v2479 = vpop.permute.xlu0 %2478
        %2480 = vrot.lane.b32.xlu0 %v2404, 112
        %v2481 = vpop.permute.xlu0 %2480
        %2482 = vrot.lane.b32.xlu0 %v2426, 112
        %v2483 = vpop.permute.xlu0 %2482
        %2484 = vrot.lane.b32.xlu0 %v2414, 112
        %v2485 = vpop.permute.xlu0 %2484
        %2486 = vrot.lane.b32.xlu0 %v2405, 112
        %v2487 = vpop.permute.xlu0 %2486
        %2488 = vrot.lane.b32.xlu0 %v2429, 112
        %v2489 = vpop.permute.xlu0 %2488
        %v2490 = vsel %vm403, %v2479, %v2485
        %v2491 = vsel %vm403, %v2481, %v2487
        %v2492 = vsel %vm403, %v2483, %v2489
        %v2493 = vsel %vm403, %v2473, %v2479
        %v2494 = vsel %vm403, %v2475, %v2481
        %v2495 = vsel %vm403, %v2477, %v2483
        %v2496 = vsel %vm403, %v2467, %v2473
        %v2497 = vsel %vm403, %v2469, %v2475
        %v2498 = vsel %vm403, %v2471, %v2477
        %v2499 = vsel %vm403, %v2485, %v2467
        %v2500 = vsel %vm403, %v2487, %v2469
        %v2501 = vsel %vm403, %v2489, %v2471
        %v2502 = vmul.f32 %v2463, %v416
        %v2503 = vmul.f32 %v2460, %v417
        %v2504 = vmul.f32 %v2457, %v418
        %v2505 = vmul.f32 %v2454, %v419
        %v2506 = vmul.f32 %v2464, %v420
        %v2507 = vmul.f32 %v2461, %v421
        %v2508 = vmul.f32 %v2458, %v422
        %v2509 = vmul.f32 %v2455, %v423
        %v2510 = vmul.f32 %v2465, %v424
        %v2511 = vmul.f32 %v2462, %v425
        %v2512 = vmul.f32 %v2459, %v426
        %v2513 = vmul.f32 %v2456, %v427
        %v2514 = vmul.f32 %v2417, %v428
        %v2515 = vmul.f32 %v2416, %v429
        %v2516 = vmul.f32 %v2415, %v430
        %v2517 = vmul.f32 %v2414, %v431
        %v2518 = vmul.f32 %v2402, %v432
        %v2519 = vmul.f32 %v2403, %v433
        %v2520 = vmul.f32 %v2404, %v434
        %v2521 = vmul.f32 %v2405, %v435
        %v2522 = vmul.f32 %v2428, %v436
        %v2523 = vmul.f32 %v2427, %v437
        %v2524 = vmul.f32 %v2426, %v438
        %v2525 = vmul.f32 %v2429, %v439
        %v2526 = vmul.f32 %v2496, %v440
        %v2527 = vmul.f32 %v2493, %v441
        %v2528 = vmul.f32 %v2490, %v442
        %v2529 = vmul.f32 %v2499, %v443
        %v2530 = vmul.f32 %v2497, %v444
        %v2531 = vmul.f32 %v2494, %v445
        %v2532 = vmul.f32 %v2491, %v446
        %v2533 = vmul.f32 %v2500, %v447
        %v2534 = vmul.f32 %v2498, %v448
        %v2535 = vmul.f32 %v2495, %v449
        %v2536 = vmul.f32 %v2492, %v450
        %v2537 = vmul.f32 %v2501, %v451
        %v2538 = vpack.c.bf16 %v2506, %v2502
        %v2539 = vpack.c.bf16 %v2507, %v2503
        %v2540 = vpack.c.bf16 %v2508, %v2504
        %v2541 = vpack.c.bf16 %v2509, %v2505
        %v2542 = vpack.c.bf16 %v2514, %v2510
        %v2543 = vpack.c.bf16 %v2515, %v2511
        %v2544 = vpack.c.bf16 %v2516, %v2512
        %v2545 = vpack.c.bf16 %v2517, %v2513
        %v2546 = vpack.c.bf16 %v2522, %v2518
        %v2547 = vpack.c.bf16 %v2523, %v2519
        %v2548 = vpack.c.bf16 %v2524, %v2520
        %v2549 = vpack.c.bf16 %v2525, %v2521
        %v2550 = vpack.c.bf16 %v2530, %v2526
        %v2551 = vpack.c.bf16 %v2531, %v2527
        %v2552 = vpack.c.bf16 %v2532, %v2528
        %v2553 = vpack.c.bf16 %v2533, %v2529
        %v2554 = vpack.c.bf16 %v2534, %v2534
        %v2555 = vpack.c.bf16 %v2535, %v2535
        %v2556 = vpack.c.bf16 %v2536, %v2536
        %v2557 = vpack.c.bf16 %v2537, %v2537
        %s2558 = scalar_lea.vmem [#allocation2], 32
        %v2559 = vld [vmem:[%s2558] sm:$0xf]
        %s2560 = scalar_lea.vmem [#allocation4], 64
        %v2561 = vld [vmem:[%s2560] sm:$0xff]
        %2563 = vset.pattern.permute.xlu0 0
        %2564 = vperm.xlu0 %2563, %v2561
        %v2565 = vpop.permute.xlu0 %2564
        %v2568 = vsel %vm515, %v2559, 0
        %v2571 = vsel %vm519, %v2554, 0
        %v2574 = vsel %vm519, %v2555, 0
        %v2577 = vsel %vm519, %v2556, 0
        %v2580 = vsel %vm519, %v2557, 0
        %2582 = vmatprep.subr.bf16.mxu0 0
        %2583 = vmatpush1.bf16.msra.mxu0 0
        %2584 = vmatprep.subr.bf16.mxu0 0
        %2585 = vmatpush1.bf16.msra.mxu0 0
        %2586 = vmatprep.subr.bf16.mxu0 0
        %2587 = vmatpush1.bf16.msra.mxu0 0
        %2588 = vmatprep.subr.bf16.mxu0 %v2574
        %2589 = vmatpush1.bf16.msra.mxu0 %v2571
        %2590 = vmatprep.subr.bf16.mxu0 %v2551
        %2591 = vmatpush1.bf16.msra.mxu0 %v2550
        %2592 = vmatprep.subr.bf16.mxu0 %v2547
        %2593 = vmatpush1.bf16.msra.mxu0 %v2546
        %2594 = vmatprep.subr.bf16.mxu0 %v2543
        %2595 = vmatpush1.bf16.msra.mxu0 %v2542
        %2596 = vmatprep.subr.bf16.mxu0 %v2539
        %2597 = vmatpush1.bf16.msra.mxu0 %v2538
        %2598 = vmatprep.subr.bf16.mxu0 0
        %2599 = vmatpush2.bf16.msra.mxu0 0
        %2600 = vmatprep.subr.bf16.mxu0 0
        %2601 = vmatpush2.bf16.msra.mxu0 0
        %2602 = vmatprep.subr.bf16.mxu0 0
        %2603 = vmatpush2.bf16.msra.mxu0 0
        %2604 = vmatprep.subr.bf16.mxu0 0
        %2605 = vmatpush2.bf16.msra.mxu0 0
        %2606 = vmatprep.subr.bf16.mxu0 0
        %2607 = vmatpush2.bf16.msra.mxu0 0
        %2608 = vmatprep.subr.bf16.mxu0 0
        %2609 = vmatpush2.bf16.msra.mxu0 0
        %2610 = vmatprep.subr.bf16.mxu0 0
        %2611 = vmatpush2.bf16.msra.mxu0 0
        %2612 = vmatprep.subr.bf16.mxu0 0
        %2613 = vmatpush2.bf16.msra.mxu0 0
        %2614 = vmatprep.mubr.bf16.mxu0 0
        %2615 = vmatmul.mubr.bf16.gmra.mxu0 %v2568
        %v2616 = vpop.f32.mrf.mxu0
        %v2617 = vadd.f32 %v2565, %v2616
        %v2618 = vpop.f32.mrf.mxu0
        %v2619 = vadd.f32 %v2565, %v2618
        %v2620 = vpop.f32.mrf.mxu0
        %v2621 = vpop.f32.mrf.mxu0
        %2622 = vdwg.mxu0
        %2623 = vmatprep.subr.bf16.mxu0 0
        %2624 = vmatpush1.bf16.msra.mxu0 0
        %2625 = vmatprep.subr.bf16.mxu0 0
        %2626 = vmatpush1.bf16.msra.mxu0 0
        %2627 = vmatprep.subr.bf16.mxu0 0
        %2628 = vmatpush1.bf16.msra.mxu0 0
        %2629 = vmatprep.subr.bf16.mxu0 %v2580
        %2630 = vmatpush1.bf16.msra.mxu0 %v2577
        %2631 = vmatprep.subr.bf16.mxu0 %v2553
        %2632 = vmatpush1.bf16.msra.mxu0 %v2552
        %2633 = vmatprep.subr.bf16.mxu0 %v2549
        %2634 = vmatpush1.bf16.msra.mxu0 %v2548
        %2635 = vmatprep.subr.bf16.mxu0 %v2545
        %2636 = vmatpush1.bf16.msra.mxu0 %v2544
        %2637 = vmatprep.subr.bf16.mxu0 %v2541
        %2638 = vmatpush1.bf16.msra.mxu0 %v2540
        %2639 = vmatprep.subr.bf16.mxu0 0
        %2640 = vmatpush2.bf16.msra.mxu0 0
        %2641 = vmatprep.subr.bf16.mxu0 0
        %2642 = vmatpush2.bf16.msra.mxu0 0
        %2643 = vmatprep.subr.bf16.mxu0 0
        %2644 = vmatpush2.bf16.msra.mxu0 0
        %2645 = vmatprep.subr.bf16.mxu0 0
        %2646 = vmatpush2.bf16.msra.mxu0 0
        %2647 = vmatprep.subr.bf16.mxu0 0
        %2648 = vmatpush2.bf16.msra.mxu0 0
        %2649 = vmatprep.subr.bf16.mxu0 0
        %2650 = vmatpush2.bf16.msra.mxu0 0
        %2651 = vmatprep.subr.bf16.mxu0 0
        %2652 = vmatpush2.bf16.msra.mxu0 0
        %2653 = vmatprep.subr.bf16.mxu0 0
        %2654 = vmatpush2.bf16.msra.mxu0 0
        %2655 = vmatprep.mubr.bf16.mxu0 0
        %2656 = vmatmul.mubr.bf16.gmra.mxu0 %v2568
        %v2657 = vpop.f32.mrf.mxu0
        %v2658 = vadd.f32 %v2565, %v2657
        %v2659 = vpop.f32.mrf.mxu0
        %v2660 = vadd.f32 %v2565, %v2659
        %v2661 = vpop.f32.mrf.mxu0
        %v2662 = vpop.f32.mrf.mxu0
        %2663 = vdwg.mxu0
        %v2664 = vmul.f32 %v2617, 0.2
        %v2665 = vmul.f32 %v2619, 0.2
        %v2666 = vmul.f32 %v2658, 0.2
        %v2667 = vmul.f32 %v2660, 0.2
        %v2668 = vmax.f32 %v2617, %v2664
        %v2669 = vmax.f32 %v2619, %v2665
        %v2670 = vmax.f32 %v2658, %v2666
        %v2671 = vmax.f32 %v2660, %v2667
        %2672 = vrot.lane.b32.xlu0 %v2668, 1
        %v2673 = vpop.permute.xlu0 %2672
        %2674 = vrot.lane.b32.xlu0 %v2669, 1
        %v2675 = vpop.permute.xlu0 %2674
        %2676 = vrot.lane.b32.xlu0 %v2670, 1
        %v2677 = vpop.permute.xlu0 %2676
        %2678 = vrot.lane.b32.xlu0 %v2671, 1
        %v2679 = vpop.permute.xlu0 %2678
        %v2680 = vsel %vm324, %v2677, %v2679
        %v2681 = vsel %vm324, %v2675, %v2677
        %v2682 = vsel %vm324, %v2673, %v2675
        %v2683 = vsel %vm324, %v2679, %v2673
        %2684 = vrot.lane.b32.xlu0 %v2668, 127
        %v2685 = vpop.permute.xlu0 %2684
        %2686 = vrot.lane.b32.xlu0 %v2669, 127
        %v2687 = vpop.permute.xlu0 %2686
        %2688 = vrot.lane.b32.xlu0 %v2670, 127
        %v2689 = vpop.permute.xlu0 %2688
        %2690 = vrot.lane.b32.xlu0 %v2671, 127
        %v2691 = vpop.permute.xlu0 %2690
        %v2692 = vsel %vm337, %v2689, %v2691
        %v2693 = vsel %vm337, %v2687, %v2689
        %v2694 = vsel %vm337, %v2685, %v2687
        %v2695 = vsel %vm337, %v2691, %v2685
        %2696 = vrot.lane.b32.xlu0 %v2683, 16
        %v2697 = vpop.permute.xlu0 %2696
        %2698 = vrot.lane.b32.xlu0 %v2668, 16
        %v2699 = vpop.permute.xlu0 %2698
        %2700 = vrot.lane.b32.xlu0 %v2694, 16
        %v2701 = vpop.permute.xlu0 %2700
        %2702 = vrot.lane.b32.xlu0 %v2682, 16
        %v2703 = vpop.permute.xlu0 %2702
        %2704 = vrot.lane.b32.xlu0 %v2669, 16
        %v2705 = vpop.permute.xlu0 %2704
        %2706 = vrot.lane.b32.xlu0 %v2693, 16
        %v2707 = vpop.permute.xlu0 %2706
        %2708 = vrot.lane.b32.xlu0 %v2681, 16
        %v2709 = vpop.permute.xlu0 %2708
        %2710 = vrot.lane.b32.xlu0 %v2670, 16
        %v2711 = vpop.permute.xlu0 %2710
        %2712 = vrot.lane.b32.xlu0 %v2692, 16
        %v2713 = vpop.permute.xlu0 %2712
        %2714 = vrot.lane.b32.xlu0 %v2680, 16
        %v2715 = vpop.permute.xlu0 %2714
        %2716 = vrot.lane.b32.xlu0 %v2671, 16
        %v2717 = vpop.permute.xlu0 %2716
        %2718 = vrot.lane.b32.xlu0 %v2695, 16
        %v2719 = vpop.permute.xlu0 %2718
        %v2720 = vsel %vm366, %v2709, %v2715
        %v2721 = vsel %vm366, %v2711, %v2717
        %v2722 = vsel %vm366, %v2713, %v2719
        %v2723 = vsel %vm366, %v2703, %v2709
        %v2724 = vsel %vm366, %v2705, %v2711
        %v2725 = vsel %vm366, %v2707, %v2713
        %v2726 = vsel %vm366, %v2697, %v2703
        %v2727 = vsel %vm366, %v2699, %v2705
        %v2728 = vsel %vm366, %v2701, %v2707
        %v2729 = vsel %vm366, %v2715, %v2697
        %v2730 = vsel %vm366, %v2717, %v2699
        %v2731 = vsel %vm366, %v2719, %v2701
        %2732 = vrot.lane.b32.xlu0 %v2683, 112
        %v2733 = vpop.permute.xlu0 %2732
        %2734 = vrot.lane.b32.xlu0 %v2668, 112
        %v2735 = vpop.permute.xlu0 %2734
        %2736 = vrot.lane.b32.xlu0 %v2694, 112
        %v2737 = vpop.permute.xlu0 %2736
        %2738 = vrot.lane.b32.xlu0 %v2682, 112
        %v2739 = vpop.permute.xlu0 %2738
        %2740 = vrot.lane.b32.xlu0 %v2669, 112
        %v2741 = vpop.permute.xlu0 %2740
        %2742 = vrot.lane.b32.xlu0 %v2693, 112
        %v2743 = vpop.permute.xlu0 %2742
        %2744 = vrot.lane.b32.xlu0 %v2681, 112
        %v2745 = vpop.permute.xlu0 %2744
        %2746 = vrot.lane.b32.xlu0 %v2670, 112
        %v2747 = vpop.permute.xlu0 %2746
        %2748 = vrot.lane.b32.xlu0 %v2692, 112
        %v2749 = vpop.permute.xlu0 %2748
        %2750 = vrot.lane.b32.xlu0 %v2680, 112
        %v2751 = vpop.permute.xlu0 %2750
        %2752 = vrot.lane.b32.xlu0 %v2671, 112
        %v2753 = vpop.permute.xlu0 %2752
        %2754 = vrot.lane.b32.xlu0 %v2695, 112
        %v2755 = vpop.permute.xlu0 %2754
        %v2756 = vsel %vm403, %v2745, %v2751
        %v2757 = vsel %vm403, %v2747, %v2753
        %v2758 = vsel %vm403, %v2749, %v2755
        %v2759 = vsel %vm403, %v2739, %v2745
        %v2760 = vsel %vm403, %v2741, %v2747
        %v2761 = vsel %vm403, %v2743, %v2749
        %v2762 = vsel %vm403, %v2733, %v2739
        %v2763 = vsel %vm403, %v2735, %v2741
        %v2764 = vsel %vm403, %v2737, %v2743
        %v2765 = vsel %vm403, %v2751, %v2733
        %v2766 = vsel %vm403, %v2753, %v2735
        %v2767 = vsel %vm403, %v2755, %v2737
        %v2768 = vmul.f32 %v2729, %v416
        %v2769 = vmul.f32 %v2726, %v417
        %v2770 = vmul.f32 %v2723, %v418
        %v2771 = vmul.f32 %v2720, %v419
        %v2772 = vmul.f32 %v2730, %v420
        %v2773 = vmul.f32 %v2727, %v421
        %v2774 = vmul.f32 %v2724, %v422
        %v2775 = vmul.f32 %v2721, %v423
        %v2776 = vmul.f32 %v2731, %v424
        %v2777 = vmul.f32 %v2728, %v425
        %v2778 = vmul.f32 %v2725, %v426
        %v2779 = vmul.f32 %v2722, %v427
        %v2780 = vmul.f32 %v2683, %v428
        %v2781 = vmul.f32 %v2682, %v429
        %v2782 = vmul.f32 %v2681, %v430
        %v2783 = vmul.f32 %v2680, %v431
        %v2784 = vmul.f32 %v2668, %v432
        %v2785 = vmul.f32 %v2669, %v433
        %v2786 = vmul.f32 %v2670, %v434
        %v2787 = vmul.f32 %v2671, %v435
        %v2788 = vmul.f32 %v2694, %v436
        %v2789 = vmul.f32 %v2693, %v437
        %v2790 = vmul.f32 %v2692, %v438
        %v2791 = vmul.f32 %v2695, %v439
        %v2792 = vmul.f32 %v2762, %v440
        %v2793 = vmul.f32 %v2759, %v441
        %v2794 = vmul.f32 %v2756, %v442
        %v2795 = vmul.f32 %v2765, %v443
        %v2796 = vmul.f32 %v2763, %v444
        %v2797 = vmul.f32 %v2760, %v445
        %v2798 = vmul.f32 %v2757, %v446
        %v2799 = vmul.f32 %v2766, %v447
        %v2800 = vmul.f32 %v2764, %v448
        %v2801 = vmul.f32 %v2761, %v449
        %v2802 = vmul.f32 %v2758, %v450
        %v2803 = vmul.f32 %v2767, %v451
        %v2804 = vpack.c.bf16 %v2772, %v2768
        %v2805 = vpack.c.bf16 %v2773, %v2769
        %v2806 = vpack.c.bf16 %v2774, %v2770
        %v2807 = vpack.c.bf16 %v2775, %v2771
        %v2808 = vpack.c.bf16 %v2780, %v2776
        %v2809 = vpack.c.bf16 %v2781, %v2777
        %v2810 = vpack.c.bf16 %v2782, %v2778
        %v2811 = vpack.c.bf16 %v2783, %v2779
        %v2812 = vpack.c.bf16 %v2788, %v2784
        %v2813 = vpack.c.bf16 %v2789, %v2785
        %v2814 = vpack.c.bf16 %v2790, %v2786
        %v2815 = vpack.c.bf16 %v2791, %v2787
        %v2816 = vpack.c.bf16 %v2796, %v2792
        %v2817 = vpack.c.bf16 %v2797, %v2793
        %v2818 = vpack.c.bf16 %v2798, %v2794
        %v2819 = vpack.c.bf16 %v2799, %v2795
        %v2820 = vpack.c.bf16 %v2800, %v2800
        %v2821 = vpack.c.bf16 %v2801, %v2801
        %v2822 = vpack.c.bf16 %v2802, %v2802
        %v2823 = vpack.c.bf16 %v2803, %v2803
        %s2824 = scalar_lea.vmem [#allocation2], 36
        %v2825 = vld [vmem:[%s2824] sm:$0xf]
        %s2826 = scalar_lea.vmem [#allocation4], 72
        %v2827 = vld [vmem:[%s2826] sm:$0xff]
        %2829 = vset.pattern.permute.xlu0 0
        %2830 = vperm.xlu0 %2829, %v2827
        %v2831 = vpop.permute.xlu0 %2830
        %v2834 = vsel %vm515, %v2825, 0
        %v2837 = vsel %vm519, %v2820, 0
        %v2840 = vsel %vm519, %v2821, 0
        %v2843 = vsel %vm519, %v2822, 0
        %v2846 = vsel %vm519, %v2823, 0
        %2848 = vmatprep.subr.bf16.mxu0 0
        %2849 = vmatpush1.bf16.msra.mxu0 0
        %2850 = vmatprep.subr.bf16.mxu0 0
        %2851 = vmatpush1.bf16.msra.mxu0 0
        %2852 = vmatprep.subr.bf16.mxu0 0
        %2853 = vmatpush1.bf16.msra.mxu0 0
        %2854 = vmatprep.subr.bf16.mxu0 %v2840
        %2855 = vmatpush1.bf16.msra.mxu0 %v2837
        %2856 = vmatprep.subr.bf16.mxu0 %v2817
        %2857 = vmatpush1.bf16.msra.mxu0 %v2816
        %2858 = vmatprep.subr.bf16.mxu0 %v2813
        %2859 = vmatpush1.bf16.msra.mxu0 %v2812
        %2860 = vmatprep.subr.bf16.mxu0 %v2809
        %2861 = vmatpush1.bf16.msra.mxu0 %v2808
        %2862 = vmatprep.subr.bf16.mxu0 %v2805
        %2863 = vmatpush1.bf16.msra.mxu0 %v2804
        %2864 = vmatprep.subr.bf16.mxu0 0
        %2865 = vmatpush2.bf16.msra.mxu0 0
        %2866 = vmatprep.subr.bf16.mxu0 0
        %2867 = vmatpush2.bf16.msra.mxu0 0
        %2868 = vmatprep.subr.bf16.mxu0 0
        %2869 = vmatpush2.bf16.msra.mxu0 0
        %2870 = vmatprep.subr.bf16.mxu0 0
        %2871 = vmatpush2.bf16.msra.mxu0 0
        %2872 = vmatprep.subr.bf16.mxu0 0
        %2873 = vmatpush2.bf16.msra.mxu0 0
        %2874 = vmatprep.subr.bf16.mxu0 0
        %2875 = vmatpush2.bf16.msra.mxu0 0
        %2876 = vmatprep.subr.bf16.mxu0 0
        %2877 = vmatpush2.bf16.msra.mxu0 0
        %2878 = vmatprep.subr.bf16.mxu0 0
        %2879 = vmatpush2.bf16.msra.mxu0 0
        %2880 = vmatprep.mubr.bf16.mxu0 0
        %2881 = vmatmul.mubr.bf16.gmra.mxu0 %v2834
        %v2882 = vpop.f32.mrf.mxu0
        %v2883 = vadd.f32 %v2831, %v2882
        %v2884 = vpop.f32.mrf.mxu0
        %v2885 = vadd.f32 %v2831, %v2884
        %v2886 = vpop.f32.mrf.mxu0
        %v2887 = vpop.f32.mrf.mxu0
        %2888 = vdwg.mxu0
        %2889 = vmatprep.subr.bf16.mxu0 0
        %2890 = vmatpush1.bf16.msra.mxu0 0
        %2891 = vmatprep.subr.bf16.mxu0 0
        %2892 = vmatpush1.bf16.msra.mxu0 0
        %2893 = vmatprep.subr.bf16.mxu0 0
        %2894 = vmatpush1.bf16.msra.mxu0 0
        %2895 = vmatprep.subr.bf16.mxu0 %v2846
        %2896 = vmatpush1.bf16.msra.mxu0 %v2843
        %2897 = vmatprep.subr.bf16.mxu0 %v2819
        %2898 = vmatpush1.bf16.msra.mxu0 %v2818
        %2899 = vmatprep.subr.bf16.mxu0 %v2815
        %2900 = vmatpush1.bf16.msra.mxu0 %v2814
        %2901 = vmatprep.subr.bf16.mxu0 %v2811
        %2902 = vmatpush1.bf16.msra.mxu0 %v2810
        %2903 = vmatprep.subr.bf16.mxu0 %v2807
        %2904 = vmatpush1.bf16.msra.mxu0 %v2806
        %2905 = vmatprep.subr.bf16.mxu0 0
        %2906 = vmatpush2.bf16.msra.mxu0 0
        %2907 = vmatprep.subr.bf16.mxu0 0
        %2908 = vmatpush2.bf16.msra.mxu0 0
        %2909 = vmatprep.subr.bf16.mxu0 0
        %2910 = vmatpush2.bf16.msra.mxu0 0
        %2911 = vmatprep.subr.bf16.mxu0 0
        %2912 = vmatpush2.bf16.msra.mxu0 0
        %2913 = vmatprep.subr.bf16.mxu0 0
        %2914 = vmatpush2.bf16.msra.mxu0 0
        %2915 = vmatprep.subr.bf16.mxu0 0
        %2916 = vmatpush2.bf16.msra.mxu0 0
        %2917 = vmatprep.subr.bf16.mxu0 0
        %2918 = vmatpush2.bf16.msra.mxu0 0
        %2919 = vmatprep.subr.bf16.mxu0 0
        %2920 = vmatpush2.bf16.msra.mxu0 0
        %2921 = vmatprep.mubr.bf16.mxu0 0
        %2922 = vmatmul.mubr.bf16.gmra.mxu0 %v2834
        %v2923 = vpop.f32.mrf.mxu0
        %v2924 = vadd.f32 %v2831, %v2923
        %v2925 = vpop.f32.mrf.mxu0
        %v2926 = vadd.f32 %v2831, %v2925
        %v2927 = vpop.f32.mrf.mxu0
        %v2928 = vpop.f32.mrf.mxu0
        %2929 = vdwg.mxu0
        %v2930 = vmul.f32 %v2883, 0.2
        %v2931 = vmul.f32 %v2885, 0.2
        %v2932 = vmul.f32 %v2924, 0.2
        %v2933 = vmul.f32 %v2926, 0.2
        %v2934 = vmax.f32 %v2883, %v2930
        %v2935 = vmax.f32 %v2885, %v2931
        %v2936 = vmax.f32 %v2924, %v2932
        %v2937 = vmax.f32 %v2926, %v2933
        %s2938 = scalar_lea.vmem [#allocation2], 40
        %v2939 = vld [vmem:[%s2938] sm:$0xf]
        %v2940 = vpack.c.bf16 %v2934, %v2934
        %v2941 = vpack.c.bf16 %v2935, %v2935
        %v2942 = vpack.c.bf16 %v2936, %v2936
        %v2943 = vpack.c.bf16 %v2937, %v2937
        %s2944 = scalar_lea.vmem [#allocation4], 80
        %v2945 = vld [vmem:[%s2944] sm:$0xff]
        %2947 = vset.pattern.permute.xlu0 0
        %2948 = vperm.xlu0 %2947, %v2945
        %v2949 = vpop.permute.xlu0 %2948
        %vm2951 = vcmask 64512
        %v2953 = vsel %vm2951, %v2939, 0
        %v2956 = vsel %vm519, %v2940, 0
        %v2959 = vsel %vm519, %v2941, 0
        %v2962 = vsel %vm519, %v2942, 0
        %v2965 = vsel %vm519, %v2943, 0
        %2967 = vmatprep.subr.bf16.mxu0 0
        %2968 = vmatpush1.bf16.msra.mxu0 0
        %2969 = vmatprep.subr.bf16.mxu0 0
        %2970 = vmatpush1.bf16.msra.mxu0 0
        %2971 = vmatprep.subr.bf16.mxu0 0
        %2972 = vmatpush1.bf16.msra.mxu0 0
        %2973 = vmatprep.subr.bf16.mxu0 0
        %2974 = vmatpush1.bf16.msra.mxu0 0
        %2975 = vmatprep.subr.bf16.mxu0 0
        %2976 = vmatpush1.bf16.msra.mxu0 0
        %2977 = vmatprep.subr.bf16.mxu0 0
        %2978 = vmatpush1.bf16.msra.mxu0 0
        %2979 = vmatprep.subr.bf16.mxu0 0
        %2980 = vmatpush1.bf16.msra.mxu0 0
        %2981 = vmatprep.subr.bf16.mxu0 %v2959
        %2982 = vmatpush1.bf16.msra.mxu0 %v2956
        %2983 = vmatprep.subr.bf16.mxu0 0
        %2984 = vmatpush2.bf16.msra.mxu0 0
        %2985 = vmatprep.subr.bf16.mxu0 0
        %2986 = vmatpush2.bf16.msra.mxu0 0
        %2987 = vmatprep.subr.bf16.mxu0 0
        %2988 = vmatpush2.bf16.msra.mxu0 0
        %2989 = vmatprep.subr.bf16.mxu0 0
        %2990 = vmatpush2.bf16.msra.mxu0 0
        %2991 = vmatprep.subr.bf16.mxu0 0
        %2992 = vmatpush2.bf16.msra.mxu0 0
        %2993 = vmatprep.subr.bf16.mxu0 0
        %2994 = vmatpush2.bf16.msra.mxu0 0
        %2995 = vmatprep.subr.bf16.mxu0 0
        %2996 = vmatpush2.bf16.msra.mxu0 0
        %2997 = vmatprep.subr.bf16.mxu0 0
        %2998 = vmatpush2.bf16.msra.mxu0 0
        %2999 = vmatprep.mubr.bf16.mxu0 0
        %3000 = vmatmul.mubr.bf16.gmra.mxu0 %v2953
        %v3001 = vpop.f32.mrf.mxu0
        %v3002 = vadd.f32 %v2949, %v3001
        %v3003 = vpop.f32.mrf.mxu0
        %v3004 = vadd.f32 %v2949, %v3003
        %v3005 = vpop.f32.mrf.mxu0
        %v3006 = vpop.f32.mrf.mxu0
        %3007 = vdwg.mxu0
        %3008 = vmatprep.subr.bf16.mxu0 0
        %3009 = vmatpush1.bf16.msra.mxu0 0
        %3010 = vmatprep.subr.bf16.mxu0 0
        %3011 = vmatpush1.bf16.msra.mxu0 0
        %3012 = vmatprep.subr.bf16.mxu0 0
        %3013 = vmatpush1.bf16.msra.mxu0 0
        %3014 = vmatprep.subr.bf16.mxu0 0
        %3015 = vmatpush1.bf16.msra.mxu0 0
        %3016 = vmatprep.subr.bf16.mxu0 0
        %3017 = vmatpush1.bf16.msra.mxu0 0
        %3018 = vmatprep.subr.bf16.mxu0 0
        %3019 = vmatpush1.bf16.msra.mxu0 0
        %3020 = vmatprep.subr.bf16.mxu0 0
        %3021 = vmatpush1.bf16.msra.mxu0 0
        %3022 = vmatprep.subr.bf16.mxu0 %v2965
        %3023 = vmatpush1.bf16.msra.mxu0 %v2962
        %3024 = vmatprep.subr.bf16.mxu0 0
        %3025 = vmatpush2.bf16.msra.mxu0 0
        %3026 = vmatprep.subr.bf16.mxu0 0
        %3027 = vmatpush2.bf16.msra.mxu0 0
        %3028 = vmatprep.subr.bf16.mxu0 0
        %3029 = vmatpush2.bf16.msra.mxu0 0
        %3030 = vmatprep.subr.bf16.mxu0 0
        %3031 = vmatpush2.bf16.msra.mxu0 0
        %3032 = vmatprep.subr.bf16.mxu0 0
        %3033 = vmatpush2.bf16.msra.mxu0 0
        %3034 = vmatprep.subr.bf16.mxu0 0
        %3035 = vmatpush2.bf16.msra.mxu0 0
        %3036 = vmatprep.subr.bf16.mxu0 0
        %3037 = vmatpush2.bf16.msra.mxu0 0
        %3038 = vmatprep.subr.bf16.mxu0 0
        %3039 = vmatpush2.bf16.msra.mxu0 0
        %3040 = vmatprep.mubr.bf16.mxu0 0
        %3041 = vmatmul.mubr.bf16.gmra.mxu0 %v2953
        %v3042 = vpop.f32.mrf.mxu0
        %v3043 = vadd.f32 %v2949, %v3042
        %v3044 = vpop.f32.mrf.mxu0
        %v3045 = vadd.f32 %v2949, %v3044
        %v3046 = vpop.f32.mrf.mxu0
        %v3047 = vpop.f32.mrf.mxu0
        %3048 = vdwg.mxu0
        %v3053 = vcombine.low %v3002, %v3004
        %v3054 = vcombine.low %v3043, %v3045
        %v3056 = vunpack.c.l.s4 1966171168
        %v3057 = vunpack.c.0.s8 %v3056
        %v3058 = vlaneseq
        %v3059 = vshrl.u32 %v3058, 7
        %v3060 = vsub.s32 %v3057, %v3059
        %v3061 = vrot.slane %v3053, %v3060
        %v3063 = vunpack.c.l.s4 1966171168
        %v3064 = vunpack.c.0.s8 %v3063
        %v3065 = vlaneseq
        %v3066 = vshrl.u32 %v3065, 7
        %v3067 = vsub.s32 %v3064, %v3066
        %v3068 = vrot.slane %v3054, %v3067
        %v3069 = vcombine.low %v3061, %v3068
        %v3071 = vunpack.c.l.s4 1966171168
        %v3072 = vunpack.c.0.s8 %v3071
        %v3073 = vlaneseq
        %v3074 = vshrl.u32 %v3073, 7
        %v3075 = vsub.s32 %v3072, %v3074
        %v3076 = vrot.slane %v3069, %v3075
        %v3078 = vlaneseq
        %vm3079 = vcmp.ge.s32.totalorder %v3078, 0
        %vm3080 = vcmp.lt.s32.totalorder %v3078, 512
        %vm3081 = vmand %vm3079, %vm3080
        %3082 = vst.msk [vmem:[%s308] sm:$0xf] %vm3081, %v3076
        %p3083 = scmp.lt.s32.totalorder %s20, 1
        %s3084 = scalar_select %p3083, %s20, 1
        %s3085 = smul.addr %s3084, 4
        %s3086 = scalar_lea.vmem %s6, %s3085
        // Predicated region
        $region61: #{forward.1} parent=43 // pred_check
          %p3087 = pneg %p169
        $region62: #{forward.1} parent=43 // pred_check_branch
          %3089 = sbr.rel (%p3087) target = $region64
        $region63: #{forward.1} parent=43 // pred_region
          _
        $region64: #{forward.1} parent=43 // pred_fallthru
          _
      $region44: #{forward.1} parent=5 // pred_fallthru
        _
      %p3090 = scmp.le.s32.totalorder 2, %s15
      // Predicated region
      $region65: #{forward.1} parent=5 // pred_check
        %p3091 = pneg %p3090
      $region66: #{forward.1} parent=5 // pred_check_branch
        %3093 = sbr.rel (%p3091) target = $region68
      $region67: #{forward.1} parent=5 // pred_region
        %s3094 = ssub.s32 %s15, 2
        // Predicated region
        $region69: #{forward.1} parent=67 // pred_check
          %p3095 = pneg %p175
        $region70: #{forward.1} parent=67 // pred_check_branch
          %3097 = sbr.rel (%p3095) target = $region72
        $region71: #{forward.1} parent=67 // pred_region
          %p3098 = scmp.lt.s32.totalorder %s21, 1
          %s3099 = scalar_select %p3098, %s21, 1
          %s3100 = smul.addr %s3099, 4
          %s3101 = scalar_lea.vmem %s6, %s3100
        $region72: #{forward.1} parent=67 // pred_fallthru
          _
      $region68: #{forward.1} parent=5 // pred_fallthru
        _
    $region6: #{forward.1} parent=1 // loop_footer
      %s19 = sadd.s32 1, %s15
    $region7: #{forward.1} parent=1 // loop_footer_branch
      %14 = sbr.rel target = $region3
    $region8: #{forward.1} parent=1 // loop_exit
      _
    %3102 = vsyncpa [#allocation3], 1
    %s3103 = scalar_lea.sflag [#allocation3], 1
    %3104 = vsyncpa %s3103, 1
    %3105 = vsyncpa [#allocation5], 1
    %3106 = vsyncpa [#allocation8], 1

</llo_original>
